<compile_context>
chip_gen: v7x
topology: tpu7x:2x2x1
jax: 0.10.0
libtpu: 0.0.40
codegen_flags: <defaults>
</compile_context>

<pallas_src>
import functools
import math

import jax
import jax.numpy as jnp
from jax.experimental import pallas as pl
from jax.experimental.pallas import tpu as pltpu


def _layernorm(x, gamma, beta, eps=1e-5):
    mu = jnp.mean(x, axis=-1, keepdims=True)
    var = jnp.mean((x - mu) ** 2, axis=-1, keepdims=True)
    return (x - mu) * jax.lax.rsqrt(var + eps) * gamma + beta


# ----------------------------- fused Pallas kernel -----------------------------

def text_encoder_kernel(prompts_ref, pos_ref, comp_ref, eot_oh_ref,
                        ln1_g, ln1_b, wqkv, bqkv, wo, bo,
                        ln2_g, ln2_b, wfc, bfc, wpj, bpj,
                        lnf_g, lnf_b, proj,
                        o_ref, x_sc, mask_sc,
                        *, num_heads, n_ctx, n_deep):
    l = pl.program_id(1)               # transformer layer (carried axis)
    depth = pl.num_programs(1)
    Nb, L, D = x_sc.shape
    dh = D // num_heads
    bf16 = jnp.bfloat16

    # --- init: x = prompts + positional_embedding; build causal mask once ---
    @pl.when(l == 0)
    def _init():
        x_sc[...] = prompts_ref[...] + pos_ref[...][None, :, :]
        r_ids = jax.lax.broadcasted_iota(jnp.int32, (L, L), 0)
        c_ids = jax.lax.broadcasted_iota(jnp.int32, (L, L), 1)
        mask_sc[...] = jnp.where(c_ids > r_ids, jnp.float32(-1e30), jnp.float32(0.0))

    # --- MaPLe deep compound-prompt injection before layers 1..n_deep ---
    if n_deep > 0:
        @pl.when(jnp.logical_and(l >= 1, l <= n_deep))
        def _inject():
            ctx = comp_ref[l - 1]                          # (n_ctx, D)
            x_sc[:, 1:1 + n_ctx, :] = jnp.broadcast_to(ctx[None], (Nb, n_ctx, D))

    x = x_sc[...]                                          # (Nb, L, D) f32 residual stream
    x2 = x.reshape(Nb * L, D)

    # --- attention branch: x + out_proj(MHA(ln_1(x))) ---
    xn = _layernorm(x2, ln1_g[...], ln1_b[...]).astype(bf16)
    # 1/sqrt(dh) is pre-folded into the Q columns of wqkv/bqkv (host side).
    qkv = jnp.dot(xn, wqkv[...], preferred_element_type=jnp.float32) + bqkv[...]
    qkv = qkv.reshape(Nb, L, 3 * D).astype(bf16)           # single f32->bf16 cast

    # hoist the (Nb, L, L) mask broadcast out of the per-head loop
    mask_b = jnp.broadcast_to(mask_sc[...][None], (Nb, L, L))

    head_outs = []
    for h in range(num_heads):                             # static head loop
        qh = qkv[:, :, h * dh:(h + 1) * dh]
        kh = qkv[:, :, D + h * dh:D + (h + 1) * dh]
        vh = qkv[:, :, 2 * D + h * dh:2 * D + (h + 1) * dh]
        s = jnp.einsum("bqd,bkd->bqk", qh, kh,
                       preferred_element_type=jnp.float32) + mask_b
        s = s - jnp.max(s, axis=-1, keepdims=True)
        p = jnp.exp(s)
        p = p * pl.reciprocal(jnp.sum(p, axis=-1, keepdims=True), approx=True)
        head_outs.append(
            jnp.einsum("bqk,bkd->bqd", p.astype(bf16), vh,
                       preferred_element_type=jnp.float32))
    attn = jnp.concatenate(head_outs, axis=-1).reshape(Nb * L, D)
    attn = jnp.dot(attn.astype(bf16), wo[...],
                   preferred_element_type=jnp.float32) + bo[...]
    x2 = x2 + attn

    # --- MLP branch: x + c_proj(QuickGELU(c_fc(ln_2(x)))) ---
    xn2 = _layernorm(x2, ln2_g[...], ln2_b[...]).astype(bf16)
    hdn = (jnp.dot(xn2, wfc[...], preferred_element_type=jnp.float32)
           + bfc[...]).astype(bf16)                        # bf16 QuickGELU (EUP bf16 path)
    hdn = hdn * jax.nn.sigmoid(1.702 * hdn)
    mlp = jnp.dot(hdn, wpj[...], preferred_element_type=jnp.float32) + bpj[...]
    x2 = x2 + mlp
    x_sc[...] = x2.reshape(Nb, L, D)

    # --- final: masked-sum EOT select, ln_final, @ text_projection (last layer only) ---
    @pl.when(l == depth - 1)
    def _final():
        sel = jnp.sum(x_sc[...] * eot_oh_ref[...], axis=1)           # (Nb, D)
        sn = _layernorm(sel, lnf_g[...], lnf_b[...]).astype(bf16)
        o_ref[...] = jnp.dot(sn, proj[...],
                             preferred_element_type=jnp.float32).astype(o_ref.dtype)


# ----------------------------- wrapper -----------------------------

def text_encoder_forward(prompts, tokenized_prompts, compound_prompts, params,
                         num_heads, n_ctx):
    """Mirrors TextEncoder.forward (batch-major layout, single fused pallas_call)."""
    N, L, D = prompts.shape
    assert D % num_heads == 0
    depth = params["wqkv"].shape[0]
    P = params["proj"].shape[1]
    n_deep = len(compound_prompts)
    if n_deep > 0:
        comp = jnp.stack(compound_prompts, axis=0).astype(jnp.float32)
    else:
        comp = jnp.zeros((1, max(n_ctx, 1), D), jnp.float32)   # unused dummy

    # --- fold attention scale into the Q columns of wqkv / bqkv (zero kernel cost) ---
    scale = 1.0 / math.sqrt(D // num_heads)
    q_scale = jnp.concatenate([jnp.full((D,), scale, jnp.float32),
                               jnp.ones((2 * D,), jnp.float32)], axis=0)
    wqkv_s = (params["wqkv"].astype(jnp.float32)
              * q_scale[None, None, :]).astype(params["wqkv"].dtype)
    bqkv_s = params["bqkv"] * q_scale[None, None, :]

    # --- physical VMEM -> limit (v5e/v6e 128 MiB, v7x 64 MiB) ---
    try:
        phys_vmem = int(pltpu.get_tpu_info().vmem_capacity_bytes)
    except Exception:
        phys_vmem = 64 * 1024 * 1024
    vmem_limit = max(32 * 1024 * 1024,
                     min(100 * 1024 * 1024, (phys_vmem * 3) // 4))

    # --- batch-tile selection: target tall LHS tiles (Nb*L ~ 1024 rows) ---
    row_target = 1024
    nb_cap = max(1, row_target // L)
    Nb = 1
    for cand in range(min(N, nb_cap), 0, -1):
        if N % cand == 0:
            Nb = cand
            break
    # keep >= 2 batch tiles (megacore / v7x dual-TC) only if tiles stay tall
    if N // Nb == 1 and N % 2 == 0 and (N // 2) * L >= 512:
        Nb = N // 2
    # crude VMEM-fit check: double-buffered bf16 layer weights + activation temps
    def _vmem_bytes(nb):
        rows = nb * L
        w = 48 * D * D                        # 2x (12*D^2 bf16) weight blocks
        a = rows * D * 48 + rows * L * 8      # residual + qkv/hdn temps + scores
        return w + a
    while _vmem_bytes(Nb) > vmem_limit // 2 and Nb > 1:
        cand = Nb - 1
        while cand > 1 and N % cand != 0:
            cand -= 1
        Nb = cand
    n_bt = N // Nb

    # one-hot EOT selection mask built host-side (tiny), vectorizes the epilogue gather
    eot = jnp.argmax(tokenized_prompts, axis=-1)
    eot_oh = jax.nn.one_hot(eot, L, dtype=jnp.float32).reshape(N, L, 1)

    kernel = functools.partial(text_encoder_kernel, num_heads=num_heads,
                               n_ctx=n_ctx, n_deep=n_deep)

    layer_spec = lambda d0, d1: pl.BlockSpec((None, d0, d1),
                                             lambda b, l: (l, 0, 0))
    grid_spec = pltpu.PrefetchScalarGridSpec(
        num_scalar_prefetch=0,
        grid=(n_bt, depth),
        in_specs=[
            pl.BlockSpec((Nb, L, D), lambda b, l: (b, 0, 0)),       # prompts
            pl.BlockSpec((L, D), lambda b, l: (0, 0)),              # pos embed
            pl.BlockSpec(comp.shape, lambda b, l: (0, 0, 0)),       # compound prompts
            pl.BlockSpec((Nb, L, 1), lambda b, l: (b, 0, 0)),       # EOT one-hot
            layer_spec(1, D),            # ln1_g
            layer_spec(1, D),            # ln1_b
            layer_spec(D, 3 * D),        # wqkv (bf16, Q pre-scaled)
            layer_spec(1, 3 * D),        # bqkv (Q pre-scaled)
            layer_spec(D, D),            # wo   (bf16)
            layer_spec(1, D),            # bo
            layer_spec(1, D),            # ln2_g
            layer_spec(1, D),            # ln2_b
            layer_spec(D, 4 * D),        # wfc  (bf16)
            layer_spec(1, 4 * D),        # bfc
            layer_spec(4 * D, D),        # wpj  (bf16)
            layer_spec(1, D),            # bpj
            pl.BlockSpec((1, D), lambda b, l: (0, 0)),              # lnf_g
            pl.BlockSpec((1, D), lambda b, l: (0, 0)),              # lnf_b
            pl.BlockSpec((D, P), lambda b, l: (0, 0)),              # text_projection
        ],
        out_specs=pl.BlockSpec((Nb, P), lambda b, l: (b, 0)),
        scratch_shapes=[pltpu.VMEM((Nb, L, D), jnp.float32),        # residual stream
                        pltpu.VMEM((L, L), jnp.float32)],           # causal mask
    )

    return pl.pallas_call(
        kernel,
        grid_spec=grid_spec,
        out_shape=jax.ShapeDtypeStruct((N, P), jnp.float32),
        compiler_params=pltpu.CompilerParams(
            dimension_semantics=("parallel", "arbitrary"),
            vmem_limit_bytes=int(vmem_limit)),
    )(prompts.astype(jnp.float32), params["pos"], comp, eot_oh,
      params["ln1_g"], params["ln1_b"], wqkv_s, bqkv_s,
      params["wo"], params["bo"], params["ln2_g"], params["ln2_b"],
      params["wfc"], params["bfc"], params["wpj"], params["bpj"],
      params["lnf_g"], params["lnf_b"], params["proj"])


# ----------------------------- pure-JAX reference -----------------------------

def ref_forward(prompts, tokenized, compound, params, num_heads, n_ctx):
    f32 = lambda a: a.astype(jnp.float32)
    x = prompts.astype(jnp.float32) + params["pos"][None]
    N, L, D = x.shape
    depth = params["wqkv"].shape[0]
    dh = D // num_heads
    ar = jnp.arange(L)
    mask = jnp.where(ar[None, :] > ar[:, None], jnp.float32(-1e30), jnp.float32(0.0))
    for i in range(depth):
        if i > 0 and (i - 1) < len(compound):
            ctx = compound[i - 1]
            ctx_b = jnp.broadcast_to(ctx[None], (N,) + ctx.shape)
            x = jnp.concatenate([x[:, :1], ctx_b, x[:, 1 + n_ctx:]], axis=1)
        xn = _layernorm(x, f32(params["ln1_g"][i]), f32(params["ln1_b"][i]))
        qkv = jnp.einsum("nld,de->nle", xn, f32(params["wqkv"][i])) + f32(params["bqkv"][i])
        q, k, v = jnp.split(qkv, 3, axis=-1)
        q = q.reshape(N, L, num_heads, dh)
        k = k.reshape(N, L, num_heads, dh)
        v = v.reshape(N, L, num_heads, dh)
        s = jnp.einsum("nqhd,nkhd->nhqk", q, k) / math.sqrt(dh) + mask
        p = jax.nn.softmax(s, axis=-1)
        o = jnp.einsum("nhqk,nkhd->nqhd", p, v).reshape(N, L, D)
        x = x + jnp.einsum("nld,de->nle", o, f32(params["wo"][i])) + f32(params["bo"][i])
        xn2 = _layernorm(x, f32(params["ln2_g"][i]), f32(params["ln2_b"][i]))
        hdn = jnp.einsum("nld,de->nle", xn2, f32(params["wfc"][i])) + f32(params["bfc"][i])
        hdn = hdn * jax.nn.sigmoid(1.702 * hdn)
        x = x + jnp.einsum("nle,ed->nld", hdn, f32(params["wpj"][i])) + f32(params["bpj"][i])
    eot = jnp.argmax(tokenized, axis=-1)
    sel = x[jnp.arange(N), eot]
    sel = _layernorm(sel, f32(params["lnf_g"]), f32(params["lnf_b"]))
    return sel @ f32(params["proj"])


# ----------------------------- parameter init -----------------------------

def init_params(key, depth, L, D, P):
    keys = jax.random.split(key, 2 + depth)

    def nrm(k, shape, scale=0.02):
        return (scale * jax.random.normal(k, shape)).astype(jnp.float32)

    wqkv, bqkv, wo, bo, wfc, bfc, wpj, bpj = ([] for _ in range(8))
    for i in range(depth):
        ks = jax.random.split(keys[2 + i], 8)
        wqkv.append(nrm(ks[0], (D, 3 * D)))
        bqkv.append(nrm(ks[1], (1, 3 * D)))
        wo.append(nrm(ks[2], (D, D)))
        bo.append(nrm(ks[3], (1, D)))
        wfc.append(nrm(ks[4], (D, 4 * D)))
        bfc.append(nrm(ks[5], (1, 4 * D)))
        wpj.append(nrm(ks[6], (4 * D, D)))
        bpj.append(nrm(ks[7], (1, D)))

    return {
        "pos": nrm(keys[0], (L, D), 0.01),                         # positional_embedding
        "lnf_g": jnp.ones((1, D), jnp.float32),                    # ln_final
        "lnf_b": jnp.zeros((1, D), jnp.float32),
        "proj": nrm(keys[1], (D, P), D ** -0.5).astype(jnp.bfloat16),   # text_projection
        # stacked per-layer params, (depth, ...); matmul weights stored in bf16
        "ln1_g": jnp.ones((depth, 1, D), jnp.float32),
        "ln1_b": jnp.zeros((depth, 1, D), jnp.float32),
        "wqkv": jnp.stack(wqkv).astype(jnp.bfloat16),
        "bqkv": jnp.stack(bqkv),
        "wo": jnp.stack(wo).astype(jnp.bfloat16),
        "bo": jnp.stack(bo),
        "ln2_g": jnp.ones((depth, 1, D), jnp.float32),
        "ln2_b": jnp.zeros((depth, 1, D), jnp.float32),
        "wfc": jnp.stack(wfc).astype(jnp.bfloat16),
        "bfc": jnp.stack(bfc),
        "wpj": jnp.stack(wpj).astype(jnp.bfloat16),
        "bpj": jnp.stack(bpj),
    }


# ----------------------------- main -----------------------------

if __name__ == "__main__":
    N, L, D, H, P = 2, 8, 32, 4, 32     # batch, seq (mult of 8), width, heads, proj dim
    n_ctx = 2                           # compound-prompt context length
    depth = 2                           # transformer layers
    n_deep = 1                          # deep compound prompts (layers > 0)

    key = jax.random.PRNGKey(0)
    kp, kt, kc, kw = jax.random.split(key, 4)
    params = init_params(kw, depth, L, D, P)

    prompts = (0.02 * jax.random.normal(kp, (N, L, D))).astype(jnp.float32)
    compound = [(0.02 * jax.random.normal(jax.random.fold_in(kc, i),
                                          (n_ctx, D))).astype(jnp.float32)
                for i in range(n_deep)]

    # tokenized prompts: integer tokens; argmax(-1) picks the EOT position.
    tokenized = jax.random.randint(kt, (N, L), 1, 100, dtype=jnp.int32)
    eot_pos = jnp.array([L - 1, L - 3], dtype=jnp.int32)
    tokenized = tokenized.at[jnp.arange(N), eot_pos].set(49407)

    out = text_encoder_forward(prompts, tokenized, compound, params, H, n_ctx)
    out = jax.block_until_ready(out)

    ref = ref_forward(prompts, tokenized, compound, params, H, n_ctx)
    assert out.shape == (N, P), out.shape
    max_err = float(jnp.max(jnp.abs(out - ref)))
    # bf16 matmul inputs + bf16 QuickGELU + approx reciprocal vs f32 reference
    assert jnp.allclose(out, ref, atol=2e-2, rtol=2e-2), max_err
    print("KERNEL_OK")
</pallas_src>

<mosaic_0001>
module attributes {stable_mosaic.version = 11 : i64} {
  func.func @text_encoder_kernel(%arg0: i32, %arg1: i32, %arg2: memref<2x8x32xf32, #tpu.memory_space<vmem>>, %arg3: memref<8x32xf32, #tpu.memory_space<vmem>>, %arg4: memref<1x2x32xf32, #tpu.memory_space<vmem>>, %arg5: memref<2x8x1xf32, #tpu.memory_space<vmem>>, %arg6: memref<1x1x32xf32, #tpu.memory_space<vmem>>, %arg7: memref<1x1x32xf32, #tpu.memory_space<vmem>>, %arg8: memref<1x32x96xbf16, #tpu.memory_space<vmem>>, %arg9: memref<1x1x96xf32, #tpu.memory_space<vmem>>, %arg10: memref<1x32x32xbf16, #tpu.memory_space<vmem>>, %arg11: memref<1x1x32xf32, #tpu.memory_space<vmem>>, %arg12: memref<1x1x32xf32, #tpu.memory_space<vmem>>, %arg13: memref<1x1x32xf32, #tpu.memory_space<vmem>>, %arg14: memref<1x32x128xbf16, #tpu.memory_space<vmem>>, %arg15: memref<1x1x128xf32, #tpu.memory_space<vmem>>, %arg16: memref<1x128x32xbf16, #tpu.memory_space<vmem>>, %arg17: memref<1x1x32xf32, #tpu.memory_space<vmem>>, %arg18: memref<1x32xf32, #tpu.memory_space<vmem>>, %arg19: memref<1x32xf32, #tpu.memory_space<vmem>>, %arg20: memref<32x32xbf16, #tpu.memory_space<vmem>>, %arg21: memref<2x32xf32, #tpu.memory_space<vmem>>, %arg22: memref<2x8x32xf32, #tpu.memory_space<vmem>>, %arg23: memref<8x8xf32, #tpu.memory_space<vmem>>) attributes {dimension_semantics = [#tpu.dimension_semantics<parallel>, #tpu.dimension_semantics<arbitrary>], iteration_bounds = array<i64: 1, 2>, scalar_prefetch = 0 : i64, scratch_operands = 2 : i64, tpu.core_type = #tpu.core_type<tc>, window_params = [{transform_indices = @transform_0, window_bounds = array<i64: 2, 8, 32>}, {pipeline_mode = #tpu.pipeline_mode<synchronous>, transform_indices = @transform_1, window_bounds = array<i64: 8, 32>}, {pipeline_mode = #tpu.pipeline_mode<synchronous>, transform_indices = @transform_2, window_bounds = array<i64: 1, 2, 32>}, {transform_indices = @transform_3, window_bounds = array<i64: 2, 8, 1>}, {transform_indices = @transform_4, window_bounds = array<i64: 1, 1, 32>}, {transform_indices = @transform_5, window_bounds = array<i64: 1, 1, 32>}, {transform_indices = @transform_6, window_bounds = array<i64: 1, 32, 96>}, {transform_indices = @transform_7, window_bounds = array<i64: 1, 1, 96>}, {transform_indices = @transform_8, window_bounds = array<i64: 1, 32, 32>}, {transform_indices = @transform_9, window_bounds = array<i64: 1, 1, 32>}, {transform_indices = @transform_10, window_bounds = array<i64: 1, 1, 32>}, {transform_indices = @transform_11, window_bounds = array<i64: 1, 1, 32>}, {transform_indices = @transform_12, window_bounds = array<i64: 1, 32, 128>}, {transform_indices = @transform_13, window_bounds = array<i64: 1, 1, 128>}, {transform_indices = @transform_14, window_bounds = array<i64: 1, 128, 32>}, {transform_indices = @transform_15, window_bounds = array<i64: 1, 1, 32>}, {pipeline_mode = #tpu.pipeline_mode<synchronous>, transform_indices = @transform_16, window_bounds = array<i64: 1, 32>}, {pipeline_mode = #tpu.pipeline_mode<synchronous>, transform_indices = @transform_17, window_bounds = array<i64: 1, 32>}, {pipeline_mode = #tpu.pipeline_mode<synchronous>, transform_indices = @transform_18, window_bounds = array<i64: 32, 32>}, {transform_indices = @transform_19, window_bounds = array<i64: 2, 32>}]} {
    %c0_i32 = arith.constant 0 : i32
    %0 = arith.cmpi eq, %arg1, %c0_i32 : i32
    %1 = arith.extui %0 : i1 to i32
    %c0_i32_0 = arith.constant 0 : i32
    %2 = arith.cmpi ne, %1, %c0_i32_0 : i32
    scf.if %2 {
      %c0_79 = arith.constant 0 : index
      %c0_80 = arith.constant 0 : index
      %c0_81 = arith.constant 0 : index
      %185 = vector.load %arg2[%c0_79, %c0_80, %c0_81] : memref<2x8x32xf32, #tpu.memory_space<vmem>>, vector<2x8x32xf32>
      %c0_82 = arith.constant 0 : index
      %c0_83 = arith.constant 0 : index
      %186 = vector.load %arg3[%c0_82, %c0_83] : memref<8x32xf32, #tpu.memory_space<vmem>>, vector<8x32xf32>
      %187 = vector.shape_cast %186 : vector<8x32xf32> to vector<1x8x32xf32>
      %188 = vector.broadcast %187 : vector<1x8x32xf32> to vector<2x8x32xf32>
      %189 = arith.addf %185, %188 : vector<2x8x32xf32>
      %c0_84 = arith.constant 0 : index
      %c0_85 = arith.constant 0 : index
      %c0_86 = arith.constant 0 : index
      %190 = vector.load %arg22[%c0_84, %c0_85, %c0_86] : memref<2x8x32xf32, #tpu.memory_space<vmem>>, vector<2x8x32xf32>
      tpu.vector_store %arg22[%c0_84, %c0_85, %c0_86], %189 {strides = array<i32>} : memref<2x8x32xf32, #tpu.memory_space<vmem>>, vector<2x8x32xf32>,
      %191 = tpu.iota {dimensions = array<i32: 0>} : vector<8x8xi32>
      %192 = tpu.iota {dimensions = array<i32: 1>} : vector<8x8xi32>
      %193 = arith.cmpi sgt, %192, %191 : vector<8x8xi32>
      %cst_87 = arith.constant -1.000000e+30 : f32
      %cst_88 = arith.constant 0.000000e+00 : f32
      %194 = vector.broadcast %cst_87 : f32 to vector<8x8xf32>
      %195 = vector.broadcast %cst_88 : f32 to vector<8x8xf32>
      %196 = arith.select %193, %194, %195 : vector<8x8xi1>, vector<8x8xf32>
      %c0_89 = arith.constant 0 : index
      %c0_90 = arith.constant 0 : index
      %197 = vector.load %arg23[%c0_89, %c0_90] : memref<8x8xf32, #tpu.memory_space<vmem>>, vector<8x8xf32>
      tpu.vector_store %arg23[%c0_89, %c0_90], %196 {strides = array<i32>} : memref<8x8xf32, #tpu.memory_space<vmem>>, vector<8x8xf32>,
    } else {
    }
    %c1_i32 = arith.constant 1 : i32
    %3 = arith.cmpi sge, %arg1, %c1_i32 : i32
    %c1_i32_1 = arith.constant 1 : i32
    %4 = arith.cmpi sle, %arg1, %c1_i32_1 : i32
    %5 = arith.andi %3, %4 : i1
    %6 = arith.extui %5 : i1 to i32
    %c0_i32_2 = arith.constant 0 : i32
    %7 = arith.cmpi ne, %6, %c0_i32_2 : i32
    scf.if %7 {
      %c1_i32_79 = arith.constant 1 : i32
      %185 = arith.subi %arg1, %c1_i32_79 : i32
      %186 = arith.index_cast %185 : i32 to index
      %c0_80 = arith.constant 0 : index
      %c0_81 = arith.constant 0 : index
      %187 = vector.load %arg4[%186, %c0_80, %c0_81] : memref<1x2x32xf32, #tpu.memory_space<vmem>>, vector<1x2x32xf32>
      %188 = vector.shape_cast %187 : vector<1x2x32xf32> to vector<2x32xf32>
      %189 = vector.shape_cast %188 : vector<2x32xf32> to vector<1x2x32xf32>
      %190 = vector.shape_cast %189 : vector<1x2x32xf32> to vector<1x2x32xf32>
      %191 = vector.broadcast %190 : vector<1x2x32xf32> to vector<2x2x32xf32>
      %c0_82 = arith.constant 0 : index
      %c1 = arith.constant 1 : index
      %c0_83 = arith.constant 0 : index
      %192 = vector.load %arg22[%c0_82, %c1, %c0_83] : memref<2x8x32xf32, #tpu.memory_space<vmem>>, vector<2x2x32xf32>
      tpu.vector_store %arg22[%c0_82, %c1, %c0_83], %191 {strides = array<i32>} : memref<2x8x32xf32, #tpu.memory_space<vmem>>, vector<2x2x32xf32>,
    } else {
    }
    %c0 = arith.constant 0 : index
    %c0_3 = arith.constant 0 : index
    %c0_4 = arith.constant 0 : index
    %8 = vector.load %arg22[%c0, %c0_3, %c0_4] : memref<2x8x32xf32, #tpu.memory_space<vmem>>, vector<2x8x32xf32>
    %9 = vector.shape_cast %8 : vector<2x8x32xf32> to vector<16x32xf32>
    %c0_5 = arith.constant 0 : index
    %c0_6 = arith.constant 0 : index
    %c0_7 = arith.constant 0 : index
    %10 = vector.load %arg6[%c0_5, %c0_6, %c0_7] : memref<1x1x32xf32, #tpu.memory_space<vmem>>, vector<1x1x32xf32>
    %11 = vector.shape_cast %10 : vector<1x1x32xf32> to vector<1x32xf32>
    %c0_8 = arith.constant 0 : index
    %c0_9 = arith.constant 0 : index
    %c0_10 = arith.constant 0 : index
    %12 = vector.load %arg7[%c0_8, %c0_9, %c0_10] : memref<1x1x32xf32, #tpu.memory_space<vmem>>, vector<1x1x32xf32>
    %13 = vector.shape_cast %12 : vector<1x1x32xf32> to vector<1x32xf32>
    %cst = arith.constant dense<0.000000e+00> : vector<16xf32>
    %14 = vector.multi_reduction <add>, %9, %cst [1] : vector<16x32xf32> to vector<16xf32>
    %15 = vector.shape_cast %14 : vector<16xf32> to vector<16x1xf32>
    %cst_11 = arith.constant 3.200000e+01 : f32
    %16 = vector.broadcast %cst_11 : f32 to vector<16x1xf32>
    %17 = arith.divf %15, %16 : vector<16x1xf32>
    %18 = vector.broadcast %17 : vector<16x1xf32> to vector<16x32xf32>
    %19 = arith.subf %9, %18 : vector<16x32xf32>
    %20 = arith.mulf %19, %19 : vector<16x32xf32>
    %cst_12 = arith.constant dense<0.000000e+00> : vector<16xf32>
    %21 = vector.multi_reduction <add>, %20, %cst_12 [1] : vector<16x32xf32> to vector<16xf32>
    %22 = vector.shape_cast %21 : vector<16xf32> to vector<16x1xf32>
    %cst_13 = arith.constant 3.200000e+01 : f32
    %23 = vector.broadcast %cst_13 : f32 to vector<16x1xf32>
    %24 = arith.divf %22, %23 : vector<16x1xf32>
    %25 = vector.broadcast %17 : vector<16x1xf32> to vector<16x32xf32>
    %26 = arith.subf %9, %25 : vector<16x32xf32>
    %cst_14 = arith.constant 9.99999974E-6 : f32
    %27 = vector.broadcast %cst_14 : f32 to vector<16x1xf32>
    %28 = arith.addf %24, %27 : vector<16x1xf32>
    %29 = math.rsqrt %28 : vector<16x1xf32>
    %30 = vector.broadcast %29 : vector<16x1xf32> to vector<16x32xf32>
    %31 = arith.mulf %26, %30 : vector<16x32xf32>
    %32 = vector.broadcast %11 : vector<1x32xf32> to vector<16x32xf32>
    %33 = arith.mulf %31, %32 : vector<16x32xf32>
    %34 = vector.broadcast %13 : vector<1x32xf32> to vector<16x32xf32>
    %35 = arith.addf %33, %34 : vector<16x32xf32>
    %36 = arith.truncf %35 : vector<16x32xf32> to vector<16x32xbf16>
    %c0_15 = arith.constant 0 : index
    %c0_16 = arith.constant 0 : index
    %c0_17 = arith.constant 0 : index
    %37 = vector.load %arg8[%c0_15, %c0_16, %c0_17] : memref<1x32x96xbf16, #tpu.memory_space<vmem>>, vector<1x32x96xbf16>
    %38 = vector.shape_cast %37 : vector<1x32x96xbf16> to vector<32x96xbf16>
    %cst_18 = arith.constant dense<0.000000e+00> : vector<16x96xf32>
    %39 = tpu.matmul %36, %38, %cst_18 {dimension_numbers = #tpu.dot_dimension_numbers<[1], [0], [0], [1], [0, 0, 1, 1], [], []>} : vector<16x32xbf16>, vector<32x96xbf16>, vector<16x96xf32> -> vector<16x96xf32>
    %c0_19 = arith.constant 0 : index
    %c0_20 = arith.constant 0 : index
    %c0_21 = arith.constant 0 : index
    %40 = vector.load %arg9[%c0_19, %c0_20, %c0_21] : memref<1x1x96xf32, #tpu.memory_space<vmem>>, vector<1x1x96xf32>
    %41 = vector.shape_cast %40 : vector<1x1x96xf32> to vector<1x96xf32>
    %42 = vector.broadcast %41 : vector<1x96xf32> to vector<16x96xf32>
    %43 = arith.addf %39, %42 : vector<16x96xf32>
    %44 = vector.shape_cast %43 : vector<16x96xf32> to vector<2x8x96xf32>
    %45 = arith.truncf %44 : vector<2x8x96xf32> to vector<2x8x96xbf16>
    %c0_22 = arith.constant 0 : index
    %c0_23 = arith.constant 0 : index
    %46 = vector.load %arg23[%c0_22, %c0_23] : memref<8x8xf32, #tpu.memory_space<vmem>>, vector<8x8xf32>
    %47 = vector.shape_cast %46 : vector<8x8xf32> to vector<1x8x8xf32>
    %48 = vector.shape_cast %47 : vector<1x8x8xf32> to vector<1x8x8xf32>
    %49 = vector.broadcast %48 : vector<1x8x8xf32> to vector<2x8x8xf32>
    %50 = vector.extract_strided_slice %45 {offsets = [0, 0, 0], sizes = [2, 8, 8], strides = [1, 1, 1]} : vector<2x8x96xbf16> to vector<2x8x8xbf16>
    %51 = vector.extract_strided_slice %45 {offsets = [0, 0, 32], sizes = [2, 8, 8], strides = [1, 1, 1]} : vector<2x8x96xbf16> to vector<2x8x8xbf16>
    %52 = vector.extract_strided_slice %45 {offsets = [0, 0, 64], sizes = [2, 8, 8], strides = [1, 1, 1]} : vector<2x8x96xbf16> to vector<2x8x8xbf16>
    "tpu.trace_start"() <{level = 10 : i32, message = "bqd,bkd->bqk"}> : () -> ()
    %cst_24 = arith.constant dense<0.000000e+00> : vector<2x8x8xf32>
    %53 = tpu.matmul %50, %51, %cst_24 {dimension_numbers = #tpu.dot_dimension_numbers<[2], [2], [1], [1], [0, 0, 0, 1, 1, 1], [0], [0]>} : vector<2x8x8xbf16>, vector<2x8x8xbf16>, vector<2x8x8xf32> -> vector<2x8x8xf32>
    "tpu.trace_stop"() : () -> ()
    %54 = arith.addf %53, %49 : vector<2x8x8xf32>
    %cst_25 = arith.constant dense<0xFF800000> : vector<2x8xf32>
    %55 = vector.multi_reduction <maximumf>, %54, %cst_25 [2] : vector<2x8x8xf32> to vector<2x8xf32>
    %56 = vector.shape_cast %55 : vector<2x8xf32> to vector<2x8x1xf32>
    %57 = vector.broadcast %56 : vector<2x8x1xf32> to vector<2x8x8xf32>
    %58 = arith.subf %54, %57 : vector<2x8x8xf32>
    %59 = math.exp %58 : vector<2x8x8xf32>
    %cst_26 = arith.constant dense<0.000000e+00> : vector<2x8xf32>
    %60 = vector.multi_reduction <add>, %59, %cst_26 [2] : vector<2x8x8xf32> to vector<2x8xf32>
    %61 = vector.shape_cast %60 : vector<2x8xf32> to vector<2x8x1xf32>
    %62 = tpu.reciprocal %61 {approx = true} : vector<2x8x1xf32> -> vector<2x8x1xf32>
    %63 = vector.broadcast %62 : vector<2x8x1xf32> to vector<2x8x8xf32>
    %64 = arith.mulf %59, %63 : vector<2x8x8xf32>
    %65 = arith.truncf %64 : vector<2x8x8xf32> to vector<2x8x8xbf16>
    "tpu.trace_start"() <{level = 10 : i32, message = "bqk,bkd->bqd"}> : () -> ()
    %cst_27 = arith.constant dense<0.000000e+00> : vector<2x8x8xf32>
    %66 = tpu.matmul %65, %52, %cst_27 {dimension_numbers = #tpu.dot_dimension_numbers<[2], [1], [1], [2], [0, 0, 0, 1, 1, 2], [0], [0]>} : vector<2x8x8xbf16>, vector<2x8x8xbf16>, vector<2x8x8xf32> -> vector<2x8x8xf32>
    "tpu.trace_stop"() : () -> ()
    %67 = vector.extract_strided_slice %45 {offsets = [0, 0, 8], sizes = [2, 8, 8], strides = [1, 1, 1]} : vector<2x8x96xbf16> to vector<2x8x8xbf16>
    %68 = vector.extract_strided_slice %45 {offsets = [0, 0, 40], sizes = [2, 8, 8], strides = [1, 1, 1]} : vector<2x8x96xbf16> to vector<2x8x8xbf16>
    %69 = vector.extract_strided_slice %45 {offsets = [0, 0, 72], sizes = [2, 8, 8], strides = [1, 1, 1]} : vector<2x8x96xbf16> to vector<2x8x8xbf16>
    "tpu.trace_start"() <{level = 10 : i32, message = "bqd,bkd->bqk"}> : () -> ()
    %cst_28 = arith.constant dense<0.000000e+00> : vector<2x8x8xf32>
    %70 = tpu.matmul %67, %68, %cst_28 {dimension_numbers = #tpu.dot_dimension_numbers<[2], [2], [1], [1], [0, 0, 0, 1, 1, 1], [0], [0]>} : vector<2x8x8xbf16>, vector<2x8x8xbf16>, vector<2x8x8xf32> -> vector<2x8x8xf32>
    "tpu.trace_stop"() : () -> ()
    %71 = arith.addf %70, %49 : vector<2x8x8xf32>
    %cst_29 = arith.constant dense<0xFF800000> : vector<2x8xf32>
    %72 = vector.multi_reduction <maximumf>, %71, %cst_29 [2] : vector<2x8x8xf32> to vector<2x8xf32>
    %73 = vector.shape_cast %72 : vector<2x8xf32> to vector<2x8x1xf32>
    %74 = vector.broadcast %73 : vector<2x8x1xf32> to vector<2x8x8xf32>
    %75 = arith.subf %71, %74 : vector<2x8x8xf32>
    %76 = math.exp %75 : vector<2x8x8xf32>
    %cst_30 = arith.constant dense<0.000000e+00> : vector<2x8xf32>
    %77 = vector.multi_reduction <add>, %76, %cst_30 [2] : vector<2x8x8xf32> to vector<2x8xf32>
    %78 = vector.shape_cast %77 : vector<2x8xf32> to vector<2x8x1xf32>
    %79 = tpu.reciprocal %78 {approx = true} : vector<2x8x1xf32> -> vector<2x8x1xf32>
    %80 = vector.broadcast %79 : vector<2x8x1xf32> to vector<2x8x8xf32>
    %81 = arith.mulf %76, %80 : vector<2x8x8xf32>
    %82 = arith.truncf %81 : vector<2x8x8xf32> to vector<2x8x8xbf16>
    "tpu.trace_start"() <{level = 10 : i32, message = "bqk,bkd->bqd"}> : () -> ()
    %cst_31 = arith.constant dense<0.000000e+00> : vector<2x8x8xf32>
    %83 = tpu.matmul %82, %69, %cst_31 {dimension_numbers = #tpu.dot_dimension_numbers<[2], [1], [1], [2], [0, 0, 0, 1, 1, 2], [0], [0]>} : vector<2x8x8xbf16>, vector<2x8x8xbf16>, vector<2x8x8xf32> -> vector<2x8x8xf32>
    "tpu.trace_stop"() : () -> ()
    %84 = vector.extract_strided_slice %45 {offsets = [0, 0, 16], sizes = [2, 8, 8], strides = [1, 1, 1]} : vector<2x8x96xbf16> to vector<2x8x8xbf16>
    %85 = vector.extract_strided_slice %45 {offsets = [0, 0, 48], sizes = [2, 8, 8], strides = [1, 1, 1]} : vector<2x8x96xbf16> to vector<2x8x8xbf16>
    %86 = vector.extract_strided_slice %45 {offsets = [0, 0, 80], sizes = [2, 8, 8], strides = [1, 1, 1]} : vector<2x8x96xbf16> to vector<2x8x8xbf16>
    "tpu.trace_start"() <{level = 10 : i32, message = "bqd,bkd->bqk"}> : () -> ()
    %cst_32 = arith.constant dense<0.000000e+00> : vector<2x8x8xf32>
    %87 = tpu.matmul %84, %85, %cst_32 {dimension_numbers = #tpu.dot_dimension_numbers<[2], [2], [1], [1], [0, 0, 0, 1, 1, 1], [0], [0]>} : vector<2x8x8xbf16>, vector<2x8x8xbf16>, vector<2x8x8xf32> -> vector<2x8x8xf32>
    "tpu.trace_stop"() : () -> ()
    %88 = arith.addf %87, %49 : vector<2x8x8xf32>
    %cst_33 = arith.constant dense<0xFF800000> : vector<2x8xf32>
    %89 = vector.multi_reduction <maximumf>, %88, %cst_33 [2] : vector<2x8x8xf32> to vector<2x8xf32>
    %90 = vector.shape_cast %89 : vector<2x8xf32> to vector<2x8x1xf32>
    %91 = vector.broadcast %90 : vector<2x8x1xf32> to vector<2x8x8xf32>
    %92 = arith.subf %88, %91 : vector<2x8x8xf32>
    %93 = math.exp %92 : vector<2x8x8xf32>
    %cst_34 = arith.constant dense<0.000000e+00> : vector<2x8xf32>
    %94 = vector.multi_reduction <add>, %93, %cst_34 [2] : vector<2x8x8xf32> to vector<2x8xf32>
    %95 = vector.shape_cast %94 : vector<2x8xf32> to vector<2x8x1xf32>
    %96 = tpu.reciprocal %95 {approx = true} : vector<2x8x1xf32> -> vector<2x8x1xf32>
    %97 = vector.broadcast %96 : vector<2x8x1xf32> to vector<2x8x8xf32>
    %98 = arith.mulf %93, %97 : vector<2x8x8xf32>
    %99 = arith.truncf %98 : vector<2x8x8xf32> to vector<2x8x8xbf16>
    "tpu.trace_start"() <{level = 10 : i32, message = "bqk,bkd->bqd"}> : () -> ()
    %cst_35 = arith.constant dense<0.000000e+00> : vector<2x8x8xf32>
    %100 = tpu.matmul %99, %86, %cst_35 {dimension_numbers = #tpu.dot_dimension_numbers<[2], [1], [1], [2], [0, 0, 0, 1, 1, 2], [0], [0]>} : vector<2x8x8xbf16>, vector<2x8x8xbf16>, vector<2x8x8xf32> -> vector<2x8x8xf32>
    "tpu.trace_stop"() : () -> ()
    %101 = vector.extract_strided_slice %45 {offsets = [0, 0, 24], sizes = [2, 8, 8], strides = [1, 1, 1]} : vector<2x8x96xbf16> to vector<2x8x8xbf16>
    %102 = vector.extract_strided_slice %45 {offsets = [0, 0, 56], sizes = [2, 8, 8], strides = [1, 1, 1]} : vector<2x8x96xbf16> to vector<2x8x8xbf16>
    %103 = vector.extract_strided_slice %45 {offsets = [0, 0, 88], sizes = [2, 8, 8], strides = [1, 1, 1]} : vector<2x8x96xbf16> to vector<2x8x8xbf16>
    "tpu.trace_start"() <{level = 10 : i32, message = "bqd,bkd->bqk"}> : () -> ()
    %cst_36 = arith.constant dense<0.000000e+00> : vector<2x8x8xf32>
    %104 = tpu.matmul %101, %102, %cst_36 {dimension_numbers = #tpu.dot_dimension_numbers<[2], [2], [1], [1], [0, 0, 0, 1, 1, 1], [0], [0]>} : vector<2x8x8xbf16>, vector<2x8x8xbf16>, vector<2x8x8xf32> -> vector<2x8x8xf32>
    "tpu.trace_stop"() : () -> ()
    %105 = arith.addf %104, %49 : vector<2x8x8xf32>
    %cst_37 = arith.constant dense<0xFF800000> : vector<2x8xf32>
    %106 = vector.multi_reduction <maximumf>, %105, %cst_37 [2] : vector<2x8x8xf32> to vector<2x8xf32>
    %107 = vector.shape_cast %106 : vector<2x8xf32> to vector<2x8x1xf32>
    %108 = vector.broadcast %107 : vector<2x8x1xf32> to vector<2x8x8xf32>
    %109 = arith.subf %105, %108 : vector<2x8x8xf32>
    %110 = math.exp %109 : vector<2x8x8xf32>
    %cst_38 = arith.constant dense<0.000000e+00> : vector<2x8xf32>
    %111 = vector.multi_reduction <add>, %110, %cst_38 [2] : vector<2x8x8xf32> to vector<2x8xf32>
    %112 = vector.shape_cast %111 : vector<2x8xf32> to vector<2x8x1xf32>
    %113 = tpu.reciprocal %112 {approx = true} : vector<2x8x1xf32> -> vector<2x8x1xf32>
    %114 = vector.broadcast %113 : vector<2x8x1xf32> to vector<2x8x8xf32>
    %115 = arith.mulf %110, %114 : vector<2x8x8xf32>
    %116 = arith.truncf %115 : vector<2x8x8xf32> to vector<2x8x8xbf16>
    "tpu.trace_start"() <{level = 10 : i32, message = "bqk,bkd->bqd"}> : () -> ()
    %cst_39 = arith.constant dense<0.000000e+00> : vector<2x8x8xf32>
    %117 = tpu.matmul %116, %103, %cst_39 {dimension_numbers = #tpu.dot_dimension_numbers<[2], [1], [1], [2], [0, 0, 0, 1, 1, 2], [0], [0]>} : vector<2x8x8xbf16>, vector<2x8x8xbf16>, vector<2x8x8xf32> -> vector<2x8x8xf32>
    "tpu.trace_stop"() : () -> ()
    %118 = tpu.concatenate %66, %83, %100, %117 in 2 : vector<2x8x8xf32>, vector<2x8x8xf32>, vector<2x8x8xf32>, vector<2x8x8xf32> -> vector<2x8x32xf32>
    %119 = vector.shape_cast %118 : vector<2x8x32xf32> to vector<16x32xf32>
    %120 = arith.truncf %119 : vector<16x32xf32> to vector<16x32xbf16>
    %c0_40 = arith.constant 0 : index
    %c0_41 = arith.constant 0 : index
    %c0_42 = arith.constant 0 : index
    %121 = vector.load %arg10[%c0_40, %c0_41, %c0_42] : memref<1x32x32xbf16, #tpu.memory_space<vmem>>, vector<1x32x32xbf16>
    %122 = vector.shape_cast %121 : vector<1x32x32xbf16> to vector<32x32xbf16>
    %cst_43 = arith.constant dense<0.000000e+00> : vector<16x32xf32>
    %123 = tpu.matmul %120, %122, %cst_43 {dimension_numbers = #tpu.dot_dimension_numbers<[1], [0], [0], [1], [0, 0, 1, 1], [], []>} : vector<16x32xbf16>, vector<32x32xbf16>, vector<16x32xf32> -> vector<16x32xf32>
    %c0_44 = arith.constant 0 : index
    %c0_45 = arith.constant 0 : index
    %c0_46 = arith.constant 0 : index
    %124 = vector.load %arg11[%c0_44, %c0_45, %c0_46] : memref<1x1x32xf32, #tpu.memory_space<vmem>>, vector<1x1x32xf32>
    %125 = vector.shape_cast %124 : vector<1x1x32xf32> to vector<1x32xf32>
    %126 = vector.broadcast %125 : vector<1x32xf32> to vector<16x32xf32>
    %127 = arith.addf %123, %126 : vector<16x32xf32>
    %128 = arith.addf %9, %127 : vector<16x32xf32>
    %c0_47 = arith.constant 0 : index
    %c0_48 = arith.constant 0 : index
    %c0_49 = arith.constant 0 : index
    %129 = vector.load %arg12[%c0_47, %c0_48, %c0_49] : memref<1x1x32xf32, #tpu.memory_space<vmem>>, vector<1x1x32xf32>
    %130 = vector.shape_cast %129 : vector<1x1x32xf32> to vector<1x32xf32>
    %c0_50 = arith.constant 0 : index
    %c0_51 = arith.constant 0 : index
    %c0_52 = arith.constant 0 : index
    %131 = vector.load %arg13[%c0_50, %c0_51, %c0_52] : memref<1x1x32xf32, #tpu.memory_space<vmem>>, vector<1x1x32xf32>
    %132 = vector.shape_cast %131 : vector<1x1x32xf32> to vector<1x32xf32>
    %cst_53 = arith.constant dense<0.000000e+00> : vector<16xf32>
    %133 = vector.multi_reduction <add>, %128, %cst_53 [1] : vector<16x32xf32> to vector<16xf32>
    %134 = vector.shape_cast %133 : vector<16xf32> to vector<16x1xf32>
    %cst_54 = arith.constant 3.200000e+01 : f32
    %135 = vector.broadcast %cst_54 : f32 to vector<16x1xf32>
    %136 = arith.divf %134, %135 : vector<16x1xf32>
    %137 = vector.broadcast %136 : vector<16x1xf32> to vector<16x32xf32>
    %138 = arith.subf %128, %137 : vector<16x32xf32>
    %139 = arith.mulf %138, %138 : vector<16x32xf32>
    %cst_55 = arith.constant dense<0.000000e+00> : vector<16xf32>
    %140 = vector.multi_reduction <add>, %139, %cst_55 [1] : vector<16x32xf32> to vector<16xf32>
    %141 = vector.shape_cast %140 : vector<16xf32> to vector<16x1xf32>
    %cst_56 = arith.constant 3.200000e+01 : f32
    %142 = vector.broadcast %cst_56 : f32 to vector<16x1xf32>
    %143 = arith.divf %141, %142 : vector<16x1xf32>
    %144 = vector.broadcast %136 : vector<16x1xf32> to vector<16x32xf32>
    %145 = arith.subf %128, %144 : vector<16x32xf32>
    %cst_57 = arith.constant 9.99999974E-6 : f32
    %146 = vector.broadcast %cst_57 : f32 to vector<16x1xf32>
    %147 = arith.addf %143, %146 : vector<16x1xf32>
    %148 = math.rsqrt %147 : vector<16x1xf32>
    %149 = vector.broadcast %148 : vector<16x1xf32> to vector<16x32xf32>
    %150 = arith.mulf %145, %149 : vector<16x32xf32>
    %151 = vector.broadcast %130 : vector<1x32xf32> to vector<16x32xf32>
    %152 = arith.mulf %150, %151 : vector<16x32xf32>
    %153 = vector.broadcast %132 : vector<1x32xf32> to vector<16x32xf32>
    %154 = arith.addf %152, %153 : vector<16x32xf32>
    %155 = arith.truncf %154 : vector<16x32xf32> to vector<16x32xbf16>
    %c0_58 = arith.constant 0 : index
    %c0_59 = arith.constant 0 : index
    %c0_60 = arith.constant 0 : index
    %156 = vector.load %arg14[%c0_58, %c0_59, %c0_60] : memref<1x32x128xbf16, #tpu.memory_space<vmem>>, vector<1x32x128xbf16>
    %157 = vector.shape_cast %156 : vector<1x32x128xbf16> to vector<32x128xbf16>
    %cst_61 = arith.constant dense<0.000000e+00> : vector<16x128xf32>
    %158 = tpu.matmul %155, %157, %cst_61 {dimension_numbers = #tpu.dot_dimension_numbers<[1], [0], [0], [1], [0, 0, 1, 1], [], []>} : vector<16x32xbf16>, vector<32x128xbf16>, vector<16x128xf32> -> vector<16x128xf32>
    %c0_62 = arith.constant 0 : index
    %c0_63 = arith.constant 0 : index
    %c0_64 = arith.constant 0 : index
    %159 = vector.load %arg15[%c0_62, %c0_63, %c0_64] : memref<1x1x128xf32, #tpu.memory_space<vmem>>, vector<1x1x128xf32>
    %160 = vector.shape_cast %159 : vector<1x1x128xf32> to vector<1x128xf32>
    %161 = vector.broadcast %160 : vector<1x128xf32> to vector<16x128xf32>
    %162 = arith.addf %158, %161 : vector<16x128xf32>
    %163 = arith.truncf %162 : vector<16x128xf32> to vector<16x128xbf16>
    %cst_65 = arith.constant 1.703130e+00 : bf16
    %164 = vector.broadcast %cst_65 : bf16 to vector<16x128xbf16>
    %165 = arith.mulf %164, %163 : vector<16x128xbf16>
    %166 = arith.negf %165 : vector<16x128xbf16>
    %167 = math.exp %166 : vector<16x128xbf16>
    %cst_66 = arith.constant 1.000000e+00 : bf16
    %168 = vector.broadcast %cst_66 : bf16 to vector<16x128xbf16>
    %169 = arith.addf %168, %167 : vector<16x128xbf16>
    %170 = arith.divf %168, %169 : vector<16x128xbf16>
    %171 = arith.mulf %163, %170 : vector<16x128xbf16>
    %c0_67 = arith.constant 0 : index
    %c0_68 = arith.constant 0 : index
    %c0_69 = arith.constant 0 : index
    %172 = vector.load %arg16[%c0_67, %c0_68, %c0_69] : memref<1x128x32xbf16, #tpu.memory_space<vmem>>, vector<1x128x32xbf16>
    %173 = vector.shape_cast %172 : vector<1x128x32xbf16> to vector<128x32xbf16>
    %cst_70 = arith.constant dense<0.000000e+00> : vector<16x32xf32>
    %174 = tpu.matmul %171, %173, %cst_70 {dimension_numbers = #tpu.dot_dimension_numbers<[1], [0], [0], [1], [0, 0, 1, 1], [], []>} : vector<16x128xbf16>, vector<128x32xbf16>, vector<16x32xf32> -> vector<16x32xf32>
    %c0_71 = arith.constant 0 : index
    %c0_72 = arith.constant 0 : index
    %c0_73 = arith.constant 0 : index
    %175 = vector.load %arg17[%c0_71, %c0_72, %c0_73] : memref<1x1x32xf32, #tpu.memory_space<vmem>>, vector<1x1x32xf32>
    %176 = vector.shape_cast %175 : vector<1x1x32xf32> to vector<1x32xf32>
    %177 = vector.broadcast %176 : vector<1x32xf32> to vector<16x32xf32>
    %178 = arith.addf %174, %177 : vector<16x32xf32>
    %179 = arith.addf %128, %178 : vector<16x32xf32>
    %180 = vector.shape_cast %179 : vector<16x32xf32> to vector<2x8x32xf32>
    %c0_74 = arith.constant 0 : index
    %c0_75 = arith.constant 0 : index
    %c0_76 = arith.constant 0 : index
    %181 = vector.load %arg22[%c0_74, %c0_75, %c0_76] : memref<2x8x32xf32, #tpu.memory_space<vmem>>, vector<2x8x32xf32>
    tpu.vector_store %arg22[%c0_74, %c0_75, %c0_76], %180 {strides = array<i32>} : memref<2x8x32xf32, #tpu.memory_space<vmem>>, vector<2x8x32xf32>,
    %c1_i32_77 = arith.constant 1 : i32
    %182 = arith.cmpi eq, %arg1, %c1_i32_77 : i32
    %183 = arith.extui %182 : i1 to i32
    %c0_i32_78 = arith.constant 0 : i32
    %184 = arith.cmpi ne, %183, %c0_i32_78 : i32
    scf.if %184 {
      %c0_79 = arith.constant 0 : index
      %c0_80 = arith.constant 0 : index
      %c0_81 = arith.constant 0 : index
      %185 = vector.load %arg22[%c0_79, %c0_80, %c0_81] : memref<2x8x32xf32, #tpu.memory_space<vmem>>, vector<2x8x32xf32>
      %c0_82 = arith.constant 0 : index
      %c0_83 = arith.constant 0 : index
      %c0_84 = arith.constant 0 : index
      %186 = vector.load %arg5[%c0_82, %c0_83, %c0_84] : memref<2x8x1xf32, #tpu.memory_space<vmem>>, vector<2x8x1xf32>
      %187 = vector.broadcast %186 : vector<2x8x1xf32> to vector<2x8x32xf32>
      %188 = arith.mulf %185, %187 : vector<2x8x32xf32>
      %cst_85 = arith.constant dense<0.000000e+00> : vector<2x32xf32>
      %189 = vector.multi_reduction <add>, %188, %cst_85 [1] : vector<2x8x32xf32> to vector<2x32xf32>
      %c0_86 = arith.constant 0 : index
      %c0_87 = arith.constant 0 : index
      %190 = vector.load %arg18[%c0_86, %c0_87] : memref<1x32xf32, #tpu.memory_space<vmem>>, vector<1x32xf32>
      %c0_88 = arith.constant 0 : index
      %c0_89 = arith.constant 0 : index
      %191 = vector.load %arg19[%c0_88, %c0_89] : memref<1x32xf32, #tpu.memory_space<vmem>>, vector<1x32xf32>
      %cst_90 = arith.constant dense<0.000000e+00> : vector<2xf32>
      %192 = vector.multi_reduction <add>, %189, %cst_90 [1] : vector<2x32xf32> to vector<2xf32>
      %193 = vector.shape_cast %192 : vector<2xf32> to vector<2x1xf32>
      %cst_91 = arith.constant 3.200000e+01 : f32
      %194 = vector.broadcast %cst_91 : f32 to vector<2x1xf32>
      %195 = arith.divf %193, %194 : vector<2x1xf32>
      %196 = vector.broadcast %195 : vector<2x1xf32> to vector<2x32xf32>
      %197 = arith.subf %189, %196 : vector<2x32xf32>
      %198 = arith.mulf %197, %197 : vector<2x32xf32>
      %cst_92 = arith.constant dense<0.000000e+00> : vector<2xf32>
      %199 = vector.multi_reduction <add>, %198, %cst_92 [1] : vector<2x32xf32> to vector<2xf32>
      %200 = vector.shape_cast %199 : vector<2xf32> to vector<2x1xf32>
      %cst_93 = arith.constant 3.200000e+01 : f32
      %201 = vector.broadcast %cst_93 : f32 to vector<2x1xf32>
      %202 = arith.divf %200, %201 : vector<2x1xf32>
      %203 = vector.broadcast %195 : vector<2x1xf32> to vector<2x32xf32>
      %204 = arith.subf %189, %203 : vector<2x32xf32>
      %cst_94 = arith.constant 9.99999974E-6 : f32
      %205 = vector.broadcast %cst_94 : f32 to vector<2x1xf32>
      %206 = arith.addf %202, %205 : vector<2x1xf32>
      %207 = math.rsqrt %206 : vector<2x1xf32>
      %208 = vector.broadcast %207 : vector<2x1xf32> to vector<2x32xf32>
      %209 = arith.mulf %204, %208 : vector<2x32xf32>
      %210 = vector.broadcast %190 : vector<1x32xf32> to vector<2x32xf32>
      %211 = arith.mulf %209, %210 : vector<2x32xf32>
      %212 = vector.broadcast %191 : vector<1x32xf32> to vector<2x32xf32>
      %213 = arith.addf %211, %212 : vector<2x32xf32>
      %214 = arith.truncf %213 : vector<2x32xf32> to vector<2x32xbf16>
      %c0_95 = arith.constant 0 : index
      %c0_96 = arith.constant 0 : index
      %215 = vector.load %arg20[%c0_95, %c0_96] : memref<32x32xbf16, #tpu.memory_space<vmem>>, vector<32x32xbf16>
      %cst_97 = arith.constant dense<0.000000e+00> : vector<2x32xf32>
      %216 = tpu.matmul %214, %215, %cst_97 {dimension_numbers = #tpu.dot_dimension_numbers<[1], [0], [0], [1], [0, 0, 1, 1], [], []>} : vector<2x32xbf16>, vector<32x32xbf16>, vector<2x32xf32> -> vector<2x32xf32>
      %c0_98 = arith.constant 0 : index
      %c0_99 = arith.constant 0 : index
      %217 = vector.load %arg21[%c0_98, %c0_99] : memref<2x32xf32, #tpu.memory_space<vmem>>, vector<2x32xf32>
      tpu.vector_store %arg21[%c0_98, %c0_99], %216 {strides = array<i32>} : memref<2x32xf32, #tpu.memory_space<vmem>>, vector<2x32xf32>,
    } else {
    }
    return
  }
  func.func @transform_0(%arg0: i32, %arg1: i32) -> (i32, i32, i32) {
    %c0_i32 = arith.constant 0 : i32
    %c0_i32_0 = arith.constant 0 : i32
    %c0_i32_1 = arith.constant 0 : i32
    return %arg0, %c0_i32, %c0_i32_0 : i32, i32, i32
  }
  func.func @transform_1(%arg0: i32, %arg1: i32) -> (i32, i32) {
    %c0_i32 = arith.constant 0 : i32
    %c0_i32_0 = arith.constant 0 : i32
    %c0_i32_1 = arith.constant 0 : i32
    return %c0_i32, %c0_i32_0 : i32, i32
  }
  func.func @transform_2(%arg0: i32, %arg1: i32) -> (i32, i32, i32) {
    %c0_i32 = arith.constant 0 : i32
    %c0_i32_0 = arith.constant 0 : i32
    %c0_i32_1 = arith.constant 0 : i32
    %c0_i32_2 = arith.constant 0 : i32
    return %c0_i32, %c0_i32_0, %c0_i32_1 : i32, i32, i32
  }
  func.func @transform_3(%arg0: i32, %arg1: i32) -> (i32, i32, i32) {
    %c0_i32 = arith.constant 0 : i32
    %c0_i32_0 = arith.constant 0 : i32
    %c0_i32_1 = arith.constant 0 : i32
    return %arg0, %c0_i32, %c0_i32_0 : i32, i32, i32
  }
  func.func @transform_4(%arg0: i32, %arg1: i32) -> (i32, i32, i32) {
    %c0_i32 = arith.constant 0 : i32
    %c0_i32_0 = arith.constant 0 : i32
    %c0_i32_1 = arith.constant 0 : i32
    return %arg1, %c0_i32, %c0_i32_0 : i32, i32, i32
  }
  func.func @transform_5(%arg0: i32, %arg1: i32) -> (i32, i32, i32) {
    %c0_i32 = arith.constant 0 : i32
    %c0_i32_0 = arith.constant 0 : i32
    %c0_i32_1 = arith.constant 0 : i32
    return %arg1, %c0_i32, %c0_i32_0 : i32, i32, i32
  }
  func.func @transform_6(%arg0: i32, %arg1: i32) -> (i32, i32, i32) {
    %c0_i32 = arith.constant 0 : i32
    %c0_i32_0 = arith.constant 0 : i32
    %c0_i32_1 = arith.constant 0 : i32
    return %arg1, %c0_i32, %c0_i32_0 : i32, i32, i32
  }
  func.func @transform_7(%arg0: i32, %arg1: i32) -> (i32, i32, i32) {
    %c0_i32 = arith.constant 0 : i32
    %c0_i32_0 = arith.constant 0 : i32
    %c0_i32_1 = arith.constant 0 : i32
    return %arg1, %c0_i32, %c0_i32_0 : i32, i32, i32
  }
  func.func @transform_8(%arg0: i32, %arg1: i32) -> (i32, i32, i32) {
    %c0_i32 = arith.constant 0 : i32
    %c0_i32_0 = arith.constant 0 : i32
    %c0_i32_1 = arith.constant 0 : i32
    return %arg1, %c0_i32, %c0_i32_0 : i32, i32, i32
  }
  func.func @transform_9(%arg0: i32, %arg1: i32) -> (i32, i32, i32) {
    %c0_i32 = arith.constant 0 : i32
    %c0_i32_0 = arith.constant 0 : i32
    %c0_i32_1 = arith.constant 0 : i32
    return %arg1, %c0_i32, %c0_i32_0 : i32, i32, i32
  }
  func.func @transform_10(%arg0: i32, %arg1: i32) -> (i32, i32, i32) {
    %c0_i32 = arith.constant 0 : i32
    %c0_i32_0 = arith.constant 0 : i32
    %c0_i32_1 = arith.constant 0 : i32
    return %arg1, %c0_i32, %c0_i32_0 : i32, i32, i32
  }
  func.func @transform_11(%arg0: i32, %arg1: i32) -> (i32, i32, i32) {
    %c0_i32 = arith.constant 0 : i32
    %c0_i32_0 = arith.constant 0 : i32
    %c0_i32_1 = arith.constant 0 : i32
    return %arg1, %c0_i32, %c0_i32_0 : i32, i32, i32
  }
  func.func @transform_12(%arg0: i32, %arg1: i32) -> (i32, i32, i32) {
    %c0_i32 = arith.constant 0 : i32
    %c0_i32_0 = arith.constant 0 : i32
    %c0_i32_1 = arith.constant 0 : i32
    return %arg1, %c0_i32, %c0_i32_0 : i32, i32, i32
  }
  func.func @transform_13(%arg0: i32, %arg1: i32) -> (i32, i32, i32) {
    %c0_i32 = arith.constant 0 : i32
    %c0_i32_0 = arith.constant 0 : i32
    %c0_i32_1 = arith.constant 0 : i32
    return %arg1, %c0_i32, %c0_i32_0 : i32, i32, i32
  }
  func.func @transform_14(%arg0: i32, %arg1: i32) -> (i32, i32, i32) {
    %c0_i32 = arith.constant 0 : i32
    %c0_i32_0 = arith.constant 0 : i32
    %c0_i32_1 = arith.constant 0 : i32
    return %arg1, %c0_i32, %c0_i32_0 : i32, i32, i32
  }
  func.func @transform_15(%arg0: i32, %arg1: i32) -> (i32, i32, i32) {
    %c0_i32 = arith.constant 0 : i32
    %c0_i32_0 = arith.constant 0 : i32
    %c0_i32_1 = arith.constant 0 : i32
    return %arg1, %c0_i32, %c0_i32_0 : i32, i32, i32
  }
  func.func @transform_16(%arg0: i32, %arg1: i32) -> (i32, i32) {
    %c0_i32 = arith.constant 0 : i32
    %c0_i32_0 = arith.constant 0 : i32
    %c0_i32_1 = arith.constant 0 : i32
    return %c0_i32, %c0_i32_0 : i32, i32
  }
  func.func @transform_17(%arg0: i32, %arg1: i32) -> (i32, i32) {
    %c0_i32 = arith.constant 0 : i32
    %c0_i32_0 = arith.constant 0 : i32
    %c0_i32_1 = arith.constant 0 : i32
    return %c0_i32, %c0_i32_0 : i32, i32
  }
  func.func @transform_18(%arg0: i32, %arg1: i32) -> (i32, i32) {
    %c0_i32 = arith.constant 0 : i32
    %c0_i32_0 = arith.constant 0 : i32
    %c0_i32_1 = arith.constant 0 : i32
    return %c0_i32, %c0_i32_0 : i32, i32
  }
  func.func @transform_19(%arg0: i32, %arg1: i32) -> (i32, i32) {
    %c0_i32 = arith.constant 0 : i32
    %c0_i32_0 = arith.constant 0 : i32
    return %arg0, %c0_i32 : i32, i32
  }
}

</mosaic_0001>

<llo_original>
// kernel: tpu_custom_call.1
$region0: #{tpu_custom_call.1}
  #allocation0 [shape = 'u32[]', space=smem, size = 0x4, offset = 0x4, fixed_abs, tag = 'smem constant byte address 0x4 - core index']
  #allocation1 [shape = 'u32[144,128]{1,0:T(1,128)}', space=vmem, size = 0x12000, scoped, tag = 'internal scratch']
  #allocation2 [shape = 'f32[2,8,32]{2,1,0:T(8,128)}', space=vmem, size = 0x2000, scoped, tag = 'scratch operand']
  #allocation3 [shape = 'f32[8,8]{1,0:T(8,128)}', space=vmem, size = 0x1000, scoped, tag = 'scratch operand']
  %s0 = inlined_call_operand.vmem [shape: f32[2,8,32], index: 0, kind: input, shape index: {}]
  %s1 = inlined_call_operand.vmem [shape: f32[8,32], index: 1, kind: input, shape index: {}]
  %s2 = inlined_call_operand.vmem [shape: f32[1,2,32], index: 2, kind: input, shape index: {}]
  %s3 = inlined_call_operand.vmem [shape: f32[2,8,1], index: 3, kind: input, shape index: {}]
  %s4 = inlined_call_operand.vmem [shape: f32[2,1,32], index: 4, kind: input, shape index: {}]
  %s5 = inlined_call_operand.vmem [shape: f32[2,1,32], index: 5, kind: input, shape index: {}]
  %s6 = inlined_call_operand.vmem [shape: bf16[2,32,96], index: 6, kind: input, shape index: {}]
  %s7 = inlined_call_operand.vmem [shape: f32[2,1,96], index: 7, kind: input, shape index: {}]
  %s8 = inlined_call_operand.vmem [shape: bf16[2,32,32], index: 8, kind: input, shape index: {}]
  %s9 = inlined_call_operand.vmem [shape: f32[2,1,32], index: 9, kind: input, shape index: {}]
  %s10 = inlined_call_operand.vmem [shape: f32[2,1,32], index: 10, kind: input, shape index: {}]
  %s11 = inlined_call_operand.vmem [shape: f32[2,1,32], index: 11, kind: input, shape index: {}]
  %s12 = inlined_call_operand.vmem [shape: bf16[2,32,128], index: 12, kind: input, shape index: {}]
  %s13 = inlined_call_operand.vmem [shape: f32[2,1,128], index: 13, kind: input, shape index: {}]
  %s14 = inlined_call_operand.vmem [shape: bf16[2,128,32], index: 14, kind: input, shape index: {}]
  %s15 = inlined_call_operand.vmem [shape: f32[2,1,32], index: 15, kind: input, shape index: {}]
  %s16 = inlined_call_operand.vmem [shape: f32[1,32], index: 16, kind: input, shape index: {}]
  %s17 = inlined_call_operand.vmem [shape: f32[1,32], index: 17, kind: input, shape index: {}]
  %s18 = inlined_call_operand.vmem [shape: bf16[32,32], index: 18, kind: input, shape index: {}]
  %s19 = inlined_call_operand.hbm [shape: f32[2,32], index: 19, kind: output, shape index: {}]
  %s20 = sld [smem:[#allocation0]]
  $region121: #{tpu_custom_call.1} parent=0
    _
  %s22 = ssub.s32 1, %s20
  %s23 = scalar_select 0, %s22, %s20
  $region1: #{tpu_custom_call.1} parent=0
    #allocation4 [shape = 'u8[1024]{0}', space=vmem, size = 0x400, scoped, tag = 'output window, operand 0, single buffered']
    #allocation5 [shape = 's32[2]{0}', space=sflag, size = 0x8, scoped, tag = 'scoped memory for tpu_custom_call.1']
    %24 = vsyncpa [#allocation5], 0
    loop: start=0, step=1, limit=4
    $region2: #{tpu_custom_call.1} parent=1 // loop_pre_header
      _
    $region3: #{tpu_custom_call.1} parent=1 // loop_header
      %s26 = sphi 0, %s30
      %p27 = scmp.ge.s32.totalorder %s26, 4
      %s33 = sphi 0, %s45
      %s34 = sphi 0, %s41
      %s35 = sphi 0, %s33
      %s36 = sphi 0, %s34
      %s37 = sphi 0, %s35
      %s38 = sphi 0, %s36
      %s48 = sphi 0, %s50
      %s51 = sphi 0, %s48
      %s52 = sphi 0, %s51
      %s68 = sphi 0, %s52
      %s72 = sphi 0, %s72
      %s74 = sphi 0, %s72
      %s75 = sphi 0, %s74
      %s89 = sphi 0, %s75
      %s93 = sphi 0, %s93
      %s95 = sphi 0, %s93
      %s96 = sphi 0, %s95
      %s110 = sphi 0, %s96
      %s116 = sphi 0, %s118
      %s119 = sphi 0, %s116
      %s120 = sphi 0, %s119
      %s136 = sphi 0, %s120
      %s142 = sphi 0, %s144
      %s145 = sphi 0, %s142
      %s146 = sphi 0, %s145
      %s162 = sphi 0, %s146
      %s168 = sphi 0, %s170
      %s171 = sphi 0, %s168
      %s172 = sphi 0, %s171
      %s188 = sphi 0, %s172
      %s194 = sphi 0, %s196
      %s197 = sphi 0, %s194
      %s198 = sphi 0, %s197
      %s214 = sphi 0, %s198
      %s220 = sphi 0, %s222
      %s223 = sphi 0, %s220
      %s224 = sphi 0, %s223
      %s240 = sphi 0, %s224
      %s246 = sphi 0, %s248
      %s249 = sphi 0, %s246
      %s250 = sphi 0, %s249
      %s266 = sphi 0, %s250
      %s272 = sphi 0, %s274
      %s275 = sphi 0, %s272
      %s276 = sphi 0, %s275
      %s292 = sphi 0, %s276
      %s298 = sphi 0, %s300
      %s301 = sphi 0, %s298
      %s302 = sphi 0, %s301
      %s318 = sphi 0, %s302
      %s324 = sphi 0, %s326
      %s327 = sphi 0, %s324
      %s328 = sphi 0, %s327
      %s344 = sphi 0, %s328
      %s350 = sphi 0, %s352
      %s353 = sphi 0, %s350
      %s354 = sphi 0, %s353
      %s370 = sphi 0, %s354
      %s376 = sphi 0, %s378
      %s379 = sphi 0, %s376
      %s380 = sphi 0, %s379
      %s396 = sphi 0, %s380
      %s402 = sphi 0, %s404
      %s405 = sphi 0, %s402
      %s406 = sphi 0, %s405
      %s422 = sphi 0, %s406
      %s428 = sphi 0, %s430
      %s431 = sphi 0, %s428
      %s432 = sphi 0, %s431
      %s448 = sphi 0, %s432
      %s452 = sphi 0, %s452
      %s454 = sphi 0, %s452
      %s455 = sphi 0, %s454
      %s469 = sphi 0, %s455
      %s473 = sphi 0, %s473
      %s475 = sphi 0, %s473
      %s476 = sphi 0, %s475
      %s490 = sphi 0, %s476
      %s494 = sphi 0, %s494
      %s496 = sphi 0, %s494
      %s497 = sphi 0, %s496
      %s511 = sphi 0, %s497
      %s517 = sphi 0, %s519
      %s520 = sphi 0, %s517
      %s521 = sphi 0, %s520
      %s537 = sphi 0, %s521
    $region4: #{tpu_custom_call.1} parent=1 // loop_header_branch
      %29 = sbr.rel (%p27) target = $region8
    $region5: #{tpu_custom_call.1} parent=1 // loop_body
      %s31 = ssub.s32 %s26, 1
      %s32 = ssub.s32 %s26, 2
      %s39 = sadd.s32 1, %s34
      %p40 = scmp.ge.s32.totalorder %s39, 2
      %s41 = scalar_select %p40, 0, %s39
      %s42 = sadd.s32 1, %s33
      %s43 = scalar_select %p40, %s42, %s33
      %p44 = scmp.ge.s32.totalorder %s43, 1
      %s45 = scalar_select %p44, 0, %s43
      %s46 = ssub.s32 %s33, %s45
      %p47 = scmp.eq.s32.totalorder %s46, 0
      %s49 = sadd.s32 %s48, 1
      %s50 = scalar_select %p47, %s48, %s49
      %p53 = pneg %p47
      %p54 = scmp.eq.s32.totalorder %s26, 1
      %p55 = por %p53, %p54
      %p56 = scmp.ne.s32.totalorder %s48, %s51
      %p57 = scmp.eq.s32.totalorder %s26, 0
      %p58 = por %p56, %p57
      %p59 = scmp.ne.s32.totalorder %s48, %s51
      %p60 = scmp.eq.s32.totalorder %s31, 1
      %p61 = por %p59, %p60
      %p62 = scmp.ne.s32.totalorder %s51, %s52
      %p63 = scmp.eq.s32.totalorder %s31, 0
      %p64 = por %p62, %p63
      %p65 = scmp.ne.s32.totalorder %s51, %s52
      %p66 = scmp.eq.s32.totalorder %s32, 1
      %p67 = por %p65, %p66
      %p69 = scmp.ne.s32.totalorder %s52, %s68
      %p70 = scmp.eq.s32.totalorder %s32, 0
      %p71 = por %p69, %p70
      %s73 = sadd.s32 %s72, 1
      %p76 = scmp.eq.s32.totalorder %s26, 1
      %p77 = scmp.ne.s32.totalorder %s72, %s74
      %p78 = scmp.eq.s32.totalorder %s26, 0
      %p79 = por %p77, %p78
      %p80 = scmp.ne.s32.totalorder %s72, %s74
      %p81 = scmp.eq.s32.totalorder %s31, 1
      %p82 = por %p80, %p81
      %p83 = scmp.ne.s32.totalorder %s74, %s75
      %p84 = scmp.eq.s32.totalorder %s31, 0
      %p85 = por %p83, %p84
      %p86 = scmp.ne.s32.totalorder %s74, %s75
      %p87 = scmp.eq.s32.totalorder %s32, 1
      %p88 = por %p86, %p87
      %p90 = scmp.ne.s32.totalorder %s75, %s89
      %p91 = scmp.eq.s32.totalorder %s32, 0
      %p92 = por %p90, %p91
      %s94 = sadd.s32 %s93, 1
      %p97 = scmp.eq.s32.totalorder %s26, 1
      %p98 = scmp.ne.s32.totalorder %s93, %s95
      %p99 = scmp.eq.s32.totalorder %s26, 0
      %p100 = por %p98, %p99
      %p101 = scmp.ne.s32.totalorder %s93, %s95
      %p102 = scmp.eq.s32.totalorder %s31, 1
      %p103 = por %p101, %p102
      %p104 = scmp.ne.s32.totalorder %s95, %s96
      %p105 = scmp.eq.s32.totalorder %s31, 0
      %p106 = por %p104, %p105
      %p107 = scmp.ne.s32.totalorder %s95, %s96
      %p108 = scmp.eq.s32.totalorder %s32, 1
      %p109 = por %p107, %p108
      %p111 = scmp.ne.s32.totalorder %s96, %s110
      %p112 = scmp.eq.s32.totalorder %s32, 0
      %p113 = por %p111, %p112
      %s114 = ssub.s32 %s33, %s45
      %p115 = scmp.eq.s32.totalorder %s114, 0
      %s117 = sadd.s32 %s116, 1
      %s118 = scalar_select %p115, %s116, %s117
      %p121 = pneg %p115
      %p122 = scmp.eq.s32.totalorder %s26, 1
      %p123 = por %p121, %p122
      %p124 = scmp.ne.s32.totalorder %s116, %s119
      %p125 = scmp.eq.s32.totalorder %s26, 0
      %p126 = por %p124, %p125
      %p127 = scmp.ne.s32.totalorder %s116, %s119
      %p128 = scmp.eq.s32.totalorder %s31, 1
      %p129 = por %p127, %p128
      %p130 = scmp.ne.s32.totalorder %s119, %s120
      %p131 = scmp.eq.s32.totalorder %s31, 0
      %p132 = por %p130, %p131
      %p133 = scmp.ne.s32.totalorder %s119, %s120
      %p134 = scmp.eq.s32.totalorder %s32, 1
      %p135 = por %p133, %p134
      %p137 = scmp.ne.s32.totalorder %s120, %s136
      %p138 = scmp.eq.s32.totalorder %s32, 0
      %p139 = por %p137, %p138
      %s140 = ssub.s32 %s34, %s41
      %p141 = scmp.eq.s32.totalorder %s140, 0
      %s143 = sadd.s32 %s142, 1
      %s144 = scalar_select %p141, %s142, %s143
      %p147 = pneg %p141
      %p148 = scmp.eq.s32.totalorder %s26, 1
      %p149 = por %p147, %p148
      %p150 = scmp.ne.s32.totalorder %s142, %s145
      %p151 = scmp.eq.s32.totalorder %s26, 0
      %p152 = por %p150, %p151
      %p153 = scmp.ne.s32.totalorder %s142, %s145
      %p154 = scmp.eq.s32.totalorder %s31, 1
      %p155 = por %p153, %p154
      %p156 = scmp.ne.s32.totalorder %s145, %s146
      %p157 = scmp.eq.s32.totalorder %s31, 0
      %p158 = por %p156, %p157
      %p159 = scmp.ne.s32.totalorder %s145, %s146
      %p160 = scmp.eq.s32.totalorder %s32, 1
      %p161 = por %p159, %p160
      %p163 = scmp.ne.s32.totalorder %s146, %s162
      %p164 = scmp.eq.s32.totalorder %s32, 0
      %p165 = por %p163, %p164
      %s166 = ssub.s32 %s34, %s41
      %p167 = scmp.eq.s32.totalorder %s166, 0
      %s169 = sadd.s32 %s168, 1
      %s170 = scalar_select %p167, %s168, %s169
      %p173 = pneg %p167
      %p174 = scmp.eq.s32.totalorder %s26, 1
      %p175 = por %p173, %p174
      %p176 = scmp.ne.s32.totalorder %s168, %s171
      %p177 = scmp.eq.s32.totalorder %s26, 0
      %p178 = por %p176, %p177
      %p179 = scmp.ne.s32.totalorder %s168, %s171
      %p180 = scmp.eq.s32.totalorder %s31, 1
      %p181 = por %p179, %p180
      %p182 = scmp.ne.s32.totalorder %s171, %s172
      %p183 = scmp.eq.s32.totalorder %s31, 0
      %p184 = por %p182, %p183
      %p185 = scmp.ne.s32.totalorder %s171, %s172
      %p186 = scmp.eq.s32.totalorder %s32, 1
      %p187 = por %p185, %p186
      %p189 = scmp.ne.s32.totalorder %s172, %s188
      %p190 = scmp.eq.s32.totalorder %s32, 0
      %p191 = por %p189, %p190
      %s192 = ssub.s32 %s34, %s41
      %p193 = scmp.eq.s32.totalorder %s192, 0
      %s195 = sadd.s32 %s194, 1
      %s196 = scalar_select %p193, %s194, %s195
      %p199 = pneg %p193
      %p200 = scmp.eq.s32.totalorder %s26, 1
      %p201 = por %p199, %p200
      %p202 = scmp.ne.s32.totalorder %s194, %s197
      %p203 = scmp.eq.s32.totalorder %s26, 0
      %p204 = por %p202, %p203
      %p205 = scmp.ne.s32.totalorder %s194, %s197
      %p206 = scmp.eq.s32.totalorder %s31, 1
      %p207 = por %p205, %p206
      %p208 = scmp.ne.s32.totalorder %s197, %s198
      %p209 = scmp.eq.s32.totalorder %s31, 0
      %p210 = por %p208, %p209
      %p211 = scmp.ne.s32.totalorder %s197, %s198
      %p212 = scmp.eq.s32.totalorder %s32, 1
      %p213 = por %p211, %p212
      %p215 = scmp.ne.s32.totalorder %s198, %s214
      %p216 = scmp.eq.s32.totalorder %s32, 0
      %p217 = por %p215, %p216
      %s218 = ssub.s32 %s34, %s41
      %p219 = scmp.eq.s32.totalorder %s218, 0
      %s221 = sadd.s32 %s220, 1
      %s222 = scalar_select %p219, %s220, %s221
      %p225 = pneg %p219
      %p226 = scmp.eq.s32.totalorder %s26, 1
      %p227 = por %p225, %p226
      %p228 = scmp.ne.s32.totalorder %s220, %s223
      %p229 = scmp.eq.s32.totalorder %s26, 0
      %p230 = por %p228, %p229
      %p231 = scmp.ne.s32.totalorder %s220, %s223
      %p232 = scmp.eq.s32.totalorder %s31, 1
      %p233 = por %p231, %p232
      %p234 = scmp.ne.s32.totalorder %s223, %s224
      %p235 = scmp.eq.s32.totalorder %s31, 0
      %p236 = por %p234, %p235
      %p237 = scmp.ne.s32.totalorder %s223, %s224
      %p238 = scmp.eq.s32.totalorder %s32, 1
      %p239 = por %p237, %p238
      %p241 = scmp.ne.s32.totalorder %s224, %s240
      %p242 = scmp.eq.s32.totalorder %s32, 0
      %p243 = por %p241, %p242
      %s244 = ssub.s32 %s34, %s41
      %p245 = scmp.eq.s32.totalorder %s244, 0
      %s247 = sadd.s32 %s246, 1
      %s248 = scalar_select %p245, %s246, %s247
      %p251 = pneg %p245
      %p252 = scmp.eq.s32.totalorder %s26, 1
      %p253 = por %p251, %p252
      %p254 = scmp.ne.s32.totalorder %s246, %s249
      %p255 = scmp.eq.s32.totalorder %s26, 0
      %p256 = por %p254, %p255
      %p257 = scmp.ne.s32.totalorder %s246, %s249
      %p258 = scmp.eq.s32.totalorder %s31, 1
      %p259 = por %p257, %p258
      %p260 = scmp.ne.s32.totalorder %s249, %s250
      %p261 = scmp.eq.s32.totalorder %s31, 0
      %p262 = por %p260, %p261
      %p263 = scmp.ne.s32.totalorder %s249, %s250
      %p264 = scmp.eq.s32.totalorder %s32, 1
      %p265 = por %p263, %p264
      %p267 = scmp.ne.s32.totalorder %s250, %s266
      %p268 = scmp.eq.s32.totalorder %s32, 0
      %p269 = por %p267, %p268
      %s270 = ssub.s32 %s34, %s41
      %p271 = scmp.eq.s32.totalorder %s270, 0
      %s273 = sadd.s32 %s272, 1
      %s274 = scalar_select %p271, %s272, %s273
      %p277 = pneg %p271
      %p278 = scmp.eq.s32.totalorder %s26, 1
      %p279 = por %p277, %p278
      %p280 = scmp.ne.s32.totalorder %s272, %s275
      %p281 = scmp.eq.s32.totalorder %s26, 0
      %p282 = por %p280, %p281
      %p283 = scmp.ne.s32.totalorder %s272, %s275
      %p284 = scmp.eq.s32.totalorder %s31, 1
      %p285 = por %p283, %p284
      %p286 = scmp.ne.s32.totalorder %s275, %s276
      %p287 = scmp.eq.s32.totalorder %s31, 0
      %p288 = por %p286, %p287
      %p289 = scmp.ne.s32.totalorder %s275, %s276
      %p290 = scmp.eq.s32.totalorder %s32, 1
      %p291 = por %p289, %p290
      %p293 = scmp.ne.s32.totalorder %s276, %s292
      %p294 = scmp.eq.s32.totalorder %s32, 0
      %p295 = por %p293, %p294
      %s296 = ssub.s32 %s34, %s41
      %p297 = scmp.eq.s32.totalorder %s296, 0
      %s299 = sadd.s32 %s298, 1
      %s300 = scalar_select %p297, %s298, %s299
      %p303 = pneg %p297
      %p304 = scmp.eq.s32.totalorder %s26, 1
      %p305 = por %p303, %p304
      %p306 = scmp.ne.s32.totalorder %s298, %s301
      %p307 = scmp.eq.s32.totalorder %s26, 0
      %p308 = por %p306, %p307
      %p309 = scmp.ne.s32.totalorder %s298, %s301
      %p310 = scmp.eq.s32.totalorder %s31, 1
      %p311 = por %p309, %p310
      %p312 = scmp.ne.s32.totalorder %s301, %s302
      %p313 = scmp.eq.s32.totalorder %s31, 0
      %p314 = por %p312, %p313
      %p315 = scmp.ne.s32.totalorder %s301, %s302
      %p316 = scmp.eq.s32.totalorder %s32, 1
      %p317 = por %p315, %p316
      %p319 = scmp.ne.s32.totalorder %s302, %s318
      %p320 = scmp.eq.s32.totalorder %s32, 0
      %p321 = por %p319, %p320
      %s322 = ssub.s32 %s34, %s41
      %p323 = scmp.eq.s32.totalorder %s322, 0
      %s325 = sadd.s32 %s324, 1
      %s326 = scalar_select %p323, %s324, %s325
      %p329 = pneg %p323
      %p330 = scmp.eq.s32.totalorder %s26, 1
      %p331 = por %p329, %p330
      %p332 = scmp.ne.s32.totalorder %s324, %s327
      %p333 = scmp.eq.s32.totalorder %s26, 0
      %p334 = por %p332, %p333
      %p335 = scmp.ne.s32.totalorder %s324, %s327
      %p336 = scmp.eq.s32.totalorder %s31, 1
      %p337 = por %p335, %p336
      %p338 = scmp.ne.s32.totalorder %s327, %s328
      %p339 = scmp.eq.s32.totalorder %s31, 0
      %p340 = por %p338, %p339
      %p341 = scmp.ne.s32.totalorder %s327, %s328
      %p342 = scmp.eq.s32.totalorder %s32, 1
      %p343 = por %p341, %p342
      %p345 = scmp.ne.s32.totalorder %s328, %s344
      %p346 = scmp.eq.s32.totalorder %s32, 0
      %p347 = por %p345, %p346
      %s348 = ssub.s32 %s34, %s41
      %p349 = scmp.eq.s32.totalorder %s348, 0
      %s351 = sadd.s32 %s350, 1
      %s352 = scalar_select %p349, %s350, %s351
      %p355 = pneg %p349
      %p356 = scmp.eq.s32.totalorder %s26, 1
      %p357 = por %p355, %p356
      %p358 = scmp.ne.s32.totalorder %s350, %s353
      %p359 = scmp.eq.s32.totalorder %s26, 0
      %p360 = por %p358, %p359
      %p361 = scmp.ne.s32.totalorder %s350, %s353
      %p362 = scmp.eq.s32.totalorder %s31, 1
      %p363 = por %p361, %p362
      %p364 = scmp.ne.s32.totalorder %s353, %s354
      %p365 = scmp.eq.s32.totalorder %s31, 0
      %p366 = por %p364, %p365
      %p367 = scmp.ne.s32.totalorder %s353, %s354
      %p368 = scmp.eq.s32.totalorder %s32, 1
      %p369 = por %p367, %p368
      %p371 = scmp.ne.s32.totalorder %s354, %s370
      %p372 = scmp.eq.s32.totalorder %s32, 0
      %p373 = por %p371, %p372
      %s374 = ssub.s32 %s34, %s41
      %p375 = scmp.eq.s32.totalorder %s374, 0
      %s377 = sadd.s32 %s376, 1
      %s378 = scalar_select %p375, %s376, %s377
      %p381 = pneg %p375
      %p382 = scmp.eq.s32.totalorder %s26, 1
      %p383 = por %p381, %p382
      %p384 = scmp.ne.s32.totalorder %s376, %s379
      %p385 = scmp.eq.s32.totalorder %s26, 0
      %p386 = por %p384, %p385
      %p387 = scmp.ne.s32.totalorder %s376, %s379
      %p388 = scmp.eq.s32.totalorder %s31, 1
      %p389 = por %p387, %p388
      %p390 = scmp.ne.s32.totalorder %s379, %s380
      %p391 = scmp.eq.s32.totalorder %s31, 0
      %p392 = por %p390, %p391
      %p393 = scmp.ne.s32.totalorder %s379, %s380
      %p394 = scmp.eq.s32.totalorder %s32, 1
      %p395 = por %p393, %p394
      %p397 = scmp.ne.s32.totalorder %s380, %s396
      %p398 = scmp.eq.s32.totalorder %s32, 0
      %p399 = por %p397, %p398
      %s400 = ssub.s32 %s34, %s41
      %p401 = scmp.eq.s32.totalorder %s400, 0
      %s403 = sadd.s32 %s402, 1
      %s404 = scalar_select %p401, %s402, %s403
      %p407 = pneg %p401
      %p408 = scmp.eq.s32.totalorder %s26, 1
      %p409 = por %p407, %p408
      %p410 = scmp.ne.s32.totalorder %s402, %s405
      %p411 = scmp.eq.s32.totalorder %s26, 0
      %p412 = por %p410, %p411
      %p413 = scmp.ne.s32.totalorder %s402, %s405
      %p414 = scmp.eq.s32.totalorder %s31, 1
      %p415 = por %p413, %p414
      %p416 = scmp.ne.s32.totalorder %s405, %s406
      %p417 = scmp.eq.s32.totalorder %s31, 0
      %p418 = por %p416, %p417
      %p419 = scmp.ne.s32.totalorder %s405, %s406
      %p420 = scmp.eq.s32.totalorder %s32, 1
      %p421 = por %p419, %p420
      %p423 = scmp.ne.s32.totalorder %s406, %s422
      %p424 = scmp.eq.s32.totalorder %s32, 0
      %p425 = por %p423, %p424
      %s426 = ssub.s32 %s34, %s41
      %p427 = scmp.eq.s32.totalorder %s426, 0
      %s429 = sadd.s32 %s428, 1
      %s430 = scalar_select %p427, %s428, %s429
      %p433 = pneg %p427
      %p434 = scmp.eq.s32.totalorder %s26, 1
      %p435 = por %p433, %p434
      %p436 = scmp.ne.s32.totalorder %s428, %s431
      %p437 = scmp.eq.s32.totalorder %s26, 0
      %p438 = por %p436, %p437
      %p439 = scmp.ne.s32.totalorder %s428, %s431
      %p440 = scmp.eq.s32.totalorder %s31, 1
      %p441 = por %p439, %p440
      %p442 = scmp.ne.s32.totalorder %s431, %s432
      %p443 = scmp.eq.s32.totalorder %s31, 0
      %p444 = por %p442, %p443
      %p445 = scmp.ne.s32.totalorder %s431, %s432
      %p446 = scmp.eq.s32.totalorder %s32, 1
      %p447 = por %p445, %p446
      %p449 = scmp.ne.s32.totalorder %s432, %s448
      %p450 = scmp.eq.s32.totalorder %s32, 0
      %p451 = por %p449, %p450
      %s453 = sadd.s32 %s452, 1
      %p456 = scmp.eq.s32.totalorder %s26, 1
      %p457 = scmp.ne.s32.totalorder %s452, %s454
      %p458 = scmp.eq.s32.totalorder %s26, 0
      %p459 = por %p457, %p458
      %p460 = scmp.ne.s32.totalorder %s452, %s454
      %p461 = scmp.eq.s32.totalorder %s31, 1
      %p462 = por %p460, %p461
      %p463 = scmp.ne.s32.totalorder %s454, %s455
      %p464 = scmp.eq.s32.totalorder %s31, 0
      %p465 = por %p463, %p464
      %p466 = scmp.ne.s32.totalorder %s454, %s455
      %p467 = scmp.eq.s32.totalorder %s32, 1
      %p468 = por %p466, %p467
      %p470 = scmp.ne.s32.totalorder %s455, %s469
      %p471 = scmp.eq.s32.totalorder %s32, 0
      %p472 = por %p470, %p471
      %s474 = sadd.s32 %s473, 1
      %p477 = scmp.eq.s32.totalorder %s26, 1
      %p478 = scmp.ne.s32.totalorder %s473, %s475
      %p479 = scmp.eq.s32.totalorder %s26, 0
      %p480 = por %p478, %p479
      %p481 = scmp.ne.s32.totalorder %s473, %s475
      %p482 = scmp.eq.s32.totalorder %s31, 1
      %p483 = por %p481, %p482
      %p484 = scmp.ne.s32.totalorder %s475, %s476
      %p485 = scmp.eq.s32.totalorder %s31, 0
      %p486 = por %p484, %p485
      %p487 = scmp.ne.s32.totalorder %s475, %s476
      %p488 = scmp.eq.s32.totalorder %s32, 1
      %p489 = por %p487, %p488
      %p491 = scmp.ne.s32.totalorder %s476, %s490
      %p492 = scmp.eq.s32.totalorder %s32, 0
      %p493 = por %p491, %p492
      %s495 = sadd.s32 %s494, 1
      %p498 = scmp.eq.s32.totalorder %s26, 1
      %p499 = scmp.ne.s32.totalorder %s494, %s496
      %p500 = scmp.eq.s32.totalorder %s26, 0
      %p501 = por %p499, %p500
      %p502 = scmp.ne.s32.totalorder %s494, %s496
      %p503 = scmp.eq.s32.totalorder %s31, 1
      %p504 = por %p502, %p503
      %p505 = scmp.ne.s32.totalorder %s496, %s497
      %p506 = scmp.eq.s32.totalorder %s31, 0
      %p507 = por %p505, %p506
      %p508 = scmp.ne.s32.totalorder %s496, %s497
      %p509 = scmp.eq.s32.totalorder %s32, 1
      %p510 = por %p508, %p509
      %p512 = scmp.ne.s32.totalorder %s497, %s511
      %p513 = scmp.eq.s32.totalorder %s32, 0
      %p514 = por %p512, %p513
      %s515 = ssub.s32 %s33, %s45
      %p516 = scmp.eq.s32.totalorder %s515, 0
      %s518 = sadd.s32 %s517, 1
      %s519 = scalar_select %p516, %s517, %s518
      %p522 = pneg %p516
      %p523 = scmp.eq.s32.totalorder %s26, 1
      %p524 = por %p522, %p523
      %p525 = scmp.ne.s32.totalorder %s517, %s520
      %p526 = scmp.eq.s32.totalorder %s26, 0
      %p527 = por %p525, %p526
      %p528 = scmp.ne.s32.totalorder %s517, %s520
      %p529 = scmp.eq.s32.totalorder %s31, 1
      %p530 = por %p528, %p529
      %p531 = scmp.ne.s32.totalorder %s520, %s521
      %p532 = scmp.eq.s32.totalorder %s31, 0
      %p533 = por %p531, %p532
      %p534 = scmp.ne.s32.totalorder %s520, %s521
      %p535 = scmp.eq.s32.totalorder %s32, 1
      %p536 = por %p534, %p535
      %p538 = scmp.ne.s32.totalorder %s521, %s537
      %p539 = scmp.eq.s32.totalorder %s32, 0
      %p540 = por %p538, %p539
      %p541 = scmp.le.s32.totalorder 1, %s26
      %p542 = scmp.lt.s32.totalorder %s26, 3
      %p543 = pnand %p541, %p542
      %p544 = pneg %p543
      // Predicated region
      $region9: #{tpu_custom_call.1} parent=5 // pred_check
        _
      $region10: #{tpu_custom_call.1} parent=5 // pred_check_branch
        %546 = sbr.rel (%p543) target = $region12
      $region11: #{tpu_custom_call.1} parent=5 // pred_region
        %s547 = ssub.s32 %s26, 1
        // Predicated region
        $region13: #{tpu_custom_call.1} parent=11 // pred_check
          %p548 = pneg %p64
        $region14: #{tpu_custom_call.1} parent=11 // pred_check_branch
          %550 = sbr.rel (%p548) target = $region16
        $region15: #{tpu_custom_call.1} parent=11 // pred_region
          %s551 = smul.u32 2, %s35
          %p552 = scmp.lt.s32.totalorder %s551, 1
          %s553 = scalar_select %p552, %s551, 1
          %s554 = smul.addr %s553, 8
          %s555 = scalar_lea.vmem %s0, %s554
          %s556 = smul.u32 2, %s35
        $region16: #{tpu_custom_call.1} parent=11 // pred_fallthru
          _
        // Predicated region
        $region17: #{tpu_custom_call.1} parent=11 // pred_check
          %p557 = pneg %p85
        $region18: #{tpu_custom_call.1} parent=11 // pred_check_branch
          %559 = sbr.rel (%p557) target = $region20
        $region19: #{tpu_custom_call.1} parent=11 // pred_region
          _
        $region20: #{tpu_custom_call.1} parent=11 // pred_fallthru
          _
        // Predicated region
        $region21: #{tpu_custom_call.1} parent=11 // pred_check
          %p560 = pneg %p106
        $region22: #{tpu_custom_call.1} parent=11 // pred_check_branch
          %562 = sbr.rel (%p560) target = $region24
        $region23: #{tpu_custom_call.1} parent=11 // pred_region
          _
        $region24: #{tpu_custom_call.1} parent=11 // pred_fallthru
          _
        // Predicated region
        $region25: #{tpu_custom_call.1} parent=11 // pred_check
          %p563 = pneg %p132
        $region26: #{tpu_custom_call.1} parent=11 // pred_check_branch
          %565 = sbr.rel (%p563) target = $region28
        $region27: #{tpu_custom_call.1} parent=11 // pred_region
          %s566 = smul.u32 2, %s35
          %p567 = scmp.lt.s32.totalorder %s566, 1
          %s568 = scalar_select %p567, %s566, 1
          %s569 = smul.addr %s568, 8
          %s570 = scalar_lea.vmem %s3, %s569
          %s571 = smul.u32 2, %s35
        $region28: #{tpu_custom_call.1} parent=11 // pred_fallthru
          _
        // Predicated region
        $region29: #{tpu_custom_call.1} parent=11 // pred_check
          %p572 = pneg %p465
        $region30: #{tpu_custom_call.1} parent=11 // pred_check_branch
          %574 = sbr.rel (%p572) target = $region32
        $region31: #{tpu_custom_call.1} parent=11 // pred_region
          _
        $region32: #{tpu_custom_call.1} parent=11 // pred_fallthru
          _
        // Predicated region
        $region33: #{tpu_custom_call.1} parent=11 // pred_check
          %p575 = pneg %p486
        $region34: #{tpu_custom_call.1} parent=11 // pred_check_branch
          %577 = sbr.rel (%p575) target = $region36
        $region35: #{tpu_custom_call.1} parent=11 // pred_region
          _
        $region36: #{tpu_custom_call.1} parent=11 // pred_fallthru
          _
        // Predicated region
        $region37: #{tpu_custom_call.1} parent=11 // pred_check
          %p578 = pneg %p507
        $region38: #{tpu_custom_call.1} parent=11 // pred_check_branch
          %580 = sbr.rel (%p578) target = $region40
        $region39: #{tpu_custom_call.1} parent=11 // pred_region
          _
        $region40: #{tpu_custom_call.1} parent=11 // pred_fallthru
          _
      $region12: #{tpu_custom_call.1} parent=5 // pred_fallthru
        _
      %p581 = scmp.lt.s32.totalorder %s26, 2
      // Predicated region
      $region41: #{tpu_custom_call.1} parent=5 // pred_check
        %p582 = pneg %p581
      $region42: #{tpu_custom_call.1} parent=5 // pred_check_branch
        %584 = sbr.rel (%p582) target = $region44
      $region43: #{tpu_custom_call.1} parent=5 // pred_region
        // Predicated region
        $region45: #{tpu_custom_call.1} parent=43 // pred_check
          %p585 = pneg %p152
        $region46: #{tpu_custom_call.1} parent=43 // pred_check_branch
          %587 = sbr.rel (%p585) target = $region48
        $region47: #{tpu_custom_call.1} parent=43 // pred_region
          %p588 = scmp.lt.s32.totalorder %s34, 1
          %s589 = scalar_select %p588, %s34, 1
          %s590 = scalar_lea.vmem %s4, %s589
        $region48: #{tpu_custom_call.1} parent=43 // pred_fallthru
          _
        // Predicated region
        $region49: #{tpu_custom_call.1} parent=43 // pred_check
          %p591 = pneg %p178
        $region50: #{tpu_custom_call.1} parent=43 // pred_check_branch
          %593 = sbr.rel (%p591) target = $region52
        $region51: #{tpu_custom_call.1} parent=43 // pred_region
          %p594 = scmp.lt.s32.totalorder %s34, 1
          %s595 = scalar_select %p594, %s34, 1
          %s596 = scalar_lea.vmem %s5, %s595
        $region52: #{tpu_custom_call.1} parent=43 // pred_fallthru
          _
        // Predicated region
        $region53: #{tpu_custom_call.1} parent=43 // pred_check
          %p597 = pneg %p204
        $region54: #{tpu_custom_call.1} parent=43 // pred_check_branch
          %599 = sbr.rel (%p597) target = $region56
        $region55: #{tpu_custom_call.1} parent=43 // pred_region
          %p600 = scmp.lt.s32.totalorder %s34, 1
          %s601 = scalar_select %p600, %s34, 1
          %s602 = smul.addr %s601, 4
          %s603 = smul.addr %s602, 4
          %s604 = scalar_lea.vmem %s6, %s603
        $region56: #{tpu_custom_call.1} parent=43 // pred_fallthru
          _
        // Predicated region
        $region57: #{tpu_custom_call.1} parent=43 // pred_check
          %p605 = pneg %p230
        $region58: #{tpu_custom_call.1} parent=43 // pred_check_branch
          %607 = sbr.rel (%p605) target = $region60
        $region59: #{tpu_custom_call.1} parent=43 // pred_region
          %p608 = scmp.lt.s32.totalorder %s34, 1
          %s609 = scalar_select %p608, %s34, 1
          %s610 = scalar_lea.vmem %s7, %s609
        $region60: #{tpu_custom_call.1} parent=43 // pred_fallthru
          _
        // Predicated region
        $region61: #{tpu_custom_call.1} parent=43 // pred_check
          %p611 = pneg %p256
        $region62: #{tpu_custom_call.1} parent=43 // pred_check_branch
          %613 = sbr.rel (%p611) target = $region64
        $region63: #{tpu_custom_call.1} parent=43 // pred_region
          %p614 = scmp.lt.s32.totalorder %s34, 1
          %s615 = scalar_select %p614, %s34, 1
          %s616 = smul.addr %s615, 4
          %s617 = smul.addr %s616, 4
          %s618 = scalar_lea.vmem %s8, %s617
        $region64: #{tpu_custom_call.1} parent=43 // pred_fallthru
          _
        // Predicated region
        $region65: #{tpu_custom_call.1} parent=43 // pred_check
          %p619 = pneg %p282
        $region66: #{tpu_custom_call.1} parent=43 // pred_check_branch
          %621 = sbr.rel (%p619) target = $region68
        $region67: #{tpu_custom_call.1} parent=43 // pred_region
          %p622 = scmp.lt.s32.totalorder %s34, 1
          %s623 = scalar_select %p622, %s34, 1
          %s624 = scalar_lea.vmem %s9, %s623
        $region68: #{tpu_custom_call.1} parent=43 // pred_fallthru
          _
        // Predicated region
        $region69: #{tpu_custom_call.1} parent=43 // pred_check
          %p625 = pneg %p308
        $region70: #{tpu_custom_call.1} parent=43 // pred_check_branch
          %627 = sbr.rel (%p625) target = $region72
        $region71: #{tpu_custom_call.1} parent=43 // pred_region
          %p628 = scmp.lt.s32.totalorder %s34, 1
          %s629 = scalar_select %p628, %s34, 1
          %s630 = scalar_lea.vmem %s10, %s629
        $region72: #{tpu_custom_call.1} parent=43 // pred_fallthru
          _
        // Predicated region
        $region73: #{tpu_custom_call.1} parent=43 // pred_check
          %p631 = pneg %p334
        $region74: #{tpu_custom_call.1} parent=43 // pred_check_branch
          %633 = sbr.rel (%p631) target = $region76
        $region75: #{tpu_custom_call.1} parent=43 // pred_region
          %p634 = scmp.lt.s32.totalorder %s34, 1
          %s635 = scalar_select %p634, %s34, 1
          %s636 = scalar_lea.vmem %s11, %s635
        $region76: #{tpu_custom_call.1} parent=43 // pred_fallthru
          _
        // Predicated region
        $region77: #{tpu_custom_call.1} parent=43 // pred_check
          %p637 = pneg %p360
        $region78: #{tpu_custom_call.1} parent=43 // pred_check_branch
          %639 = sbr.rel (%p637) target = $region80
        $region79: #{tpu_custom_call.1} parent=43 // pred_region
          %p640 = scmp.lt.s32.totalorder %s34, 1
          %s641 = scalar_select %p640, %s34, 1
          %s642 = smul.addr %s641, 4
          %s643 = smul.addr %s642, 4
          %s644 = scalar_lea.vmem %s12, %s643
        $region80: #{tpu_custom_call.1} parent=43 // pred_fallthru
          _
        // Predicated region
        $region81: #{tpu_custom_call.1} parent=43 // pred_check
          %p645 = pneg %p386
        $region82: #{tpu_custom_call.1} parent=43 // pred_check_branch
          %647 = sbr.rel (%p645) target = $region84
        $region83: #{tpu_custom_call.1} parent=43 // pred_region
          %p648 = scmp.lt.s32.totalorder %s34, 1
          %s649 = scalar_select %p648, %s34, 1
          %s650 = scalar_lea.vmem %s13, %s649
        $region84: #{tpu_custom_call.1} parent=43 // pred_fallthru
          _
        // Predicated region
        $region85: #{tpu_custom_call.1} parent=43 // pred_check
          %p651 = pneg %p412
        $region86: #{tpu_custom_call.1} parent=43 // pred_check_branch
          %653 = sbr.rel (%p651) target = $region88
        $region87: #{tpu_custom_call.1} parent=43 // pred_region
          %p654 = scmp.lt.s32.totalorder %s34, 1
          %s655 = scalar_select %p654, %s34, 1
          %s656 = smul.addr %s655, 16
          %s657 = smul.addr %s656, 4
          %s658 = scalar_lea.vmem %s14, %s657
        $region88: #{tpu_custom_call.1} parent=43 // pred_fallthru
          _
        // Predicated region
        $region89: #{tpu_custom_call.1} parent=43 // pred_check
          %p659 = pneg %p438
        $region90: #{tpu_custom_call.1} parent=43 // pred_check_branch
          %661 = sbr.rel (%p659) target = $region92
        $region91: #{tpu_custom_call.1} parent=43 // pred_region
          %p662 = scmp.lt.s32.totalorder %s34, 1
          %s663 = scalar_select %p662, %s34, 1
          %s664 = scalar_lea.vmem %s15, %s663
        $region92: #{tpu_custom_call.1} parent=43 // pred_fallthru
          _
      $region44: #{tpu_custom_call.1} parent=5 // pred_fallthru
        _
      %p665 = scmp.le.s32.totalorder 1, %s26
      %p666 = scmp.lt.s32.totalorder %s26, 3
      %p667 = pnand %p665, %p666
      %p668 = pneg %p667
      // Predicated region
      $region93: #{tpu_custom_call.1} parent=5 // pred_check
        _
      $region94: #{tpu_custom_call.1} parent=5 // pred_check_branch
        %670 = sbr.rel (%p667) target = $region96
      $region95: #{tpu_custom_call.1} parent=5 // pred_region
        %s671 = ssub.s32 %s26, 1
        %s672 = smul.u32 2, %s35
        %p673 = scmp.lt.s32.totalorder %s672, 1
        %s674 = scalar_select %p673, %s672, 1
        %s675 = smul.addr %s674, 8
        %s676 = scalar_lea.vmem %s0, %s675
        %p677 = pneg %p64
        %p678 = pneg %p61
        %p679 = pneg %p85
        %p680 = pneg %p82
        %p681 = pneg %p106
        %p682 = pneg %p103
        %s683 = smul.u32 2, %s35
        %p684 = scmp.lt.s32.totalorder %s683, 1
        %s685 = scalar_select %p684, %s683, 1
        %s686 = smul.addr %s685, 8
        %s687 = scalar_lea.vmem %s3, %s686
        %p688 = pneg %p132
        %p689 = pneg %p129
        %p690 = scmp.lt.s32.totalorder %s36, 1
        %s691 = scalar_select %p690, %s36, 1
        %s692 = scalar_lea.vmem %s4, %s691
        %p693 = pneg %p158
        %p694 = pneg %p155
        %p695 = scmp.lt.s32.totalorder %s36, 1
        %s696 = scalar_select %p695, %s36, 1
        %s697 = scalar_lea.vmem %s5, %s696
        %p698 = pneg %p184
        %p699 = pneg %p181
        %p700 = scmp.lt.s32.totalorder %s36, 1
        %s701 = scalar_select %p700, %s36, 1
        %s702 = smul.addr %s701, 4
        %s703 = smul.addr %s702, 4
        %s704 = scalar_lea.vmem %s6, %s703
        %p705 = pneg %p210
        %p706 = pneg %p207
        %p707 = scmp.lt.s32.totalorder %s36, 1
        %s708 = scalar_select %p707, %s36, 1
        %s709 = scalar_lea.vmem %s7, %s708
        %p710 = pneg %p236
        %p711 = pneg %p233
        %p712 = scmp.lt.s32.totalorder %s36, 1
        %s713 = scalar_select %p712, %s36, 1
        %s714 = smul.addr %s713, 4
        %s715 = smul.addr %s714, 4
        %s716 = scalar_lea.vmem %s8, %s715
        %p717 = pneg %p262
        %p718 = pneg %p259
        %p719 = scmp.lt.s32.totalorder %s36, 1
        %s720 = scalar_select %p719, %s36, 1
        %s721 = scalar_lea.vmem %s9, %s720
        %p722 = pneg %p288
        %p723 = pneg %p285
        %p724 = scmp.lt.s32.totalorder %s36, 1
        %s725 = scalar_select %p724, %s36, 1
        %s726 = scalar_lea.vmem %s10, %s725
        %p727 = pneg %p314
        %p728 = pneg %p311
        %p729 = scmp.lt.s32.totalorder %s36, 1
        %s730 = scalar_select %p729, %s36, 1
        %s731 = scalar_lea.vmem %s11, %s730
        %p732 = pneg %p340
        %p733 = pneg %p337
        %p734 = scmp.lt.s32.totalorder %s36, 1
        %s735 = scalar_select %p734, %s36, 1
        %s736 = smul.addr %s735, 4
        %s737 = smul.addr %s736, 4
        %s738 = scalar_lea.vmem %s12, %s737
        %p739 = pneg %p366
        %p740 = pneg %p363
        %p741 = scmp.lt.s32.totalorder %s36, 1
        %s742 = scalar_select %p741, %s36, 1
        %s743 = scalar_lea.vmem %s13, %s742
        %p744 = pneg %p392
        %p745 = pneg %p389
        %p746 = scmp.lt.s32.totalorder %s36, 1
        %s747 = scalar_select %p746, %s36, 1
        %s748 = smul.addr %s747, 16
        %s749 = smul.addr %s748, 4
        %s750 = scalar_lea.vmem %s14, %s749
        %p751 = pneg %p418
        %p752 = pneg %p415
        %p753 = scmp.lt.s32.totalorder %s36, 1
        %s754 = scalar_select %p753, %s36, 1
        %s755 = scalar_lea.vmem %s15, %s754
        %p756 = pneg %p444
        %p757 = pneg %p441
        %p758 = pneg %p465
        %p759 = pneg %p462
        %p760 = pneg %p486
        %p761 = pneg %p483
        %p762 = pneg %p507
        %p763 = pneg %p504
        %p764 = pneg %p533
        %p765 = pneg %p530
        %s766 = smul.u32 2, %s35
        %p767 = scmp.lt.s32.totalorder %s766, 1
        %s768 = scalar_select %p767, %s766, 1
        %s769 = smul.addr %s768, 8
        %s770 = scalar_lea.vmem %s0, %s769
        %s771 = smul.u32 2, %s35
        %s772 = smul.u32 2, %s35
        %p773 = scmp.lt.s32.totalorder %s772, 1
        %s774 = scalar_select %p773, %s772, 1
        %s775 = smul.addr %s774, 8
        %s776 = scalar_lea.vmem %s3, %s775
        %s777 = smul.u32 2, %s35
        %p778 = scmp.lt.s32.totalorder %s36, 1
        %s779 = scalar_select %p778, %s36, 1
        %s780 = scalar_lea.vmem %s4, %s779
        %p781 = scmp.lt.s32.totalorder %s36, 1
        %s782 = scalar_select %p781, %s36, 1
        %s783 = scalar_lea.vmem %s5, %s782
        %p784 = scmp.lt.s32.totalorder %s36, 1
        %s785 = scalar_select %p784, %s36, 1
        %s786 = smul.addr %s785, 4
        %s787 = smul.addr %s786, 4
        %s788 = scalar_lea.vmem %s6, %s787
        %p789 = scmp.lt.s32.totalorder %s36, 1
        %s790 = scalar_select %p789, %s36, 1
        %s791 = scalar_lea.vmem %s7, %s790
        %p792 = scmp.lt.s32.totalorder %s36, 1
        %s793 = scalar_select %p792, %s36, 1
        %s794 = smul.addr %s793, 4
        %s795 = smul.addr %s794, 4
        %s796 = scalar_lea.vmem %s8, %s795
        %p797 = scmp.lt.s32.totalorder %s36, 1
        %s798 = scalar_select %p797, %s36, 1
        %s799 = scalar_lea.vmem %s9, %s798
        %p800 = scmp.lt.s32.totalorder %s36, 1
        %s801 = scalar_select %p800, %s36, 1
        %s802 = scalar_lea.vmem %s10, %s801
        %p803 = scmp.lt.s32.totalorder %s36, 1
        %s804 = scalar_select %p803, %s36, 1
        %s805 = scalar_lea.vmem %s11, %s804
        %p806 = scmp.lt.s32.totalorder %s36, 1
        %s807 = scalar_select %p806, %s36, 1
        %s808 = smul.addr %s807, 4
        %s809 = smul.addr %s808, 4
        %s810 = scalar_lea.vmem %s12, %s809
        %p811 = scmp.lt.s32.totalorder %s36, 1
        %s812 = scalar_select %p811, %s36, 1
        %s813 = scalar_lea.vmem %s13, %s812
        %p814 = scmp.lt.s32.totalorder %s36, 1
        %s815 = scalar_select %p814, %s36, 1
        %s816 = smul.addr %s815, 16
        %s817 = smul.addr %s816, 4
        %s818 = scalar_lea.vmem %s14, %s817
        %p819 = scmp.lt.s32.totalorder %s36, 1
        %s820 = scalar_select %p819, %s36, 1
        %s821 = scalar_lea.vmem %s15, %s820
        %p825 = scmp.eq.s32.totalorder %s36, 0
        // Predicated region
        $region97: #{tpu_custom_call.1} parent=95 // pred_check
          %p826 = pneg %p825
        $region98: #{tpu_custom_call.1} parent=95 // pred_check_branch
          %828 = sbr.rel (%p826) target = $region100
        $region99: #{tpu_custom_call.1} parent=95 // pred_region
          %v829 = vld [vmem:[%s770] sm:$0xff]
          %v830 = vld [vmem:[%s770 + $0x8] sm:$0xff]
          %v831 = vld [vmem:[%s1] sm:$0xff]
          %v832 = vadd.f32 %v829, %v831
          %v833 = vadd.f32 %v830, %v831
          %vm834 = vcmask 261120
          %835 = vst.msk [vmem:[#allocation2] sm:$0xff] %vm834, %v832
          %836 = vst.msk [vmem:[#allocation2 + $0x8] sm:$0xff] %vm834, %v833
          %v837 = vlaneseq
          %v838 = vshrl.u32 %v837, 7
          %v839 = vlaneseq
          %v840 = vand.u32 %v839, 127
          %vm841 = vcmp.gt.s32.totalorder %v840, %v838
          %v842 = vsel %vm841, -1e+30, 0.0
          %vm843 = vcmask 64512
          %844 = vst.msk [vmem:[#allocation3] sm:$0xff] %vm843, %v842
        $region100: #{tpu_custom_call.1} parent=95 // pred_fallthru
          _
        %p845 = scmp.ge.s32.totalorder %s36, 1
        %p846 = scmp.le.s32.totalorder %s36, 1
        %p847 = pnand %p845, %p846
        %p848 = pneg %p847
        // Predicated region
        $region101: #{tpu_custom_call.1} parent=95 // pred_check
          _
        $region102: #{tpu_custom_call.1} parent=95 // pred_check_branch
          %850 = sbr.rel (%p847) target = $region104
        $region103: #{tpu_custom_call.1} parent=95 // pred_region
          %s851 = ssub.s32 %s36, 1
          %s852 = smul.u32 %s851, 2
          %s853 = scalar_lea.vmem %s2, %s852
          %v854 = vld [vmem:[%s853] sm:$0x3]
          %vm855 = vcmask 254976
          %856 = vst.msk [vmem:[#allocation2 + $0x1] sm:$0x3] %vm855, %v854
          %857 = vst.msk [vmem:[#allocation2 + $0x9] sm:$0x3] %vm855, %v854
        $region104: #{tpu_custom_call.1} parent=95 // pred_fallthru
          _
        %v858 = vld [vmem:[#allocation2] sm:$0xff]
        %v859 = vld [vmem:[#allocation2 + $0x8] sm:$0xff]
        %v860 = vld [vmem:[%s780] sm:$0x1]
        %v861 = vld [vmem:[%s783] sm:$0x1]
        %vm862 = vcmask 261120
        %v863 = vsel %vm862, %v858, 0.0
        %864 = vadd.xlane.f32.xlu0 %v863
        %v865 = vpop.xlane.xlu0 %864
        %v866 = vsel %vm862, %v859, 0.0
        %867 = vadd.xlane.f32.xlu0 %v866
        %v868 = vpop.xlane.xlu0 %867
        %v869 = vrcp.pop 32.0
        %v870 = vmul.f32 %v865, %v869
        %v871 = vmul.f32 %v868, %v869
        %v872 = vsub.f32 %v858, %v870
        %v873 = vsub.f32 %v859, %v871
        %v874 = vmul.f32 %v872, %v872
        %v875 = vmul.f32 %v873, %v873
        %v876 = vsel %vm862, %v874, 0.0
        %877 = vadd.xlane.f32.xlu0 %v876
        %v878 = vpop.xlane.xlu0 %877
        %v879 = vsel %vm862, %v875, 0.0
        %880 = vadd.xlane.f32.xlu0 %v879
        %v881 = vpop.xlane.xlu0 %880
        %v882 = vmul.f32 %v878, %v869
        %v883 = vmul.f32 %v881, %v869
        %v884 = vadd.f32 %v882, 1e-05
        %v885 = vadd.f32 %v883, 1e-05
        %v886 = vrsqrt.pop %v884
        %v887 = vrsqrt.pop %v885
        %v888 = vmul.f32 %v872, %v886
        %v889 = vmul.f32 %v873, %v887
        %v891 = vlaneseq
        %v892 = vshrl.u32 %v891, 7
        %v893 = vsub.s32 0, %v892
        %v894 = vrot.slane %v860, %v893
        %v896 = vmul.f32 %v888, %v894
        %v897 = vmul.f32 %v889, %v894
        %v899 = vlaneseq
        %v900 = vshrl.u32 %v899, 7
        %v901 = vsub.s32 0, %v900
        %v902 = vrot.slane %v861, %v901
        %v904 = vadd.f32 %v896, %v902
        %v905 = vadd.f32 %v897, %v902
        %v906 = vpack.c.bf16 %v905, %v904
        %v907 = vld [vmem:[%s788] sm:$0xf]
        %v908 = vld [vmem:[%s788 + $0x4] sm:$0xf]
        %v909 = vld [vmem:[%s788 + $0x8] sm:$0xf]
        %v910 = vld [vmem:[%s788 + $0xc] sm:$0xf]
        %v911 = vld [vmem:[%s791] sm:$0x1]
        %v913 = vlaneseq
        %v914 = vshrl.u32 %v913, 7
        %v915 = vsub.s32 0, %v914
        %v916 = vrot.slane %v911, %v915
        %v922 = vunpack.c.l.b16 %v907
        %v923 = vunpack.c.l.b16 %v908
        %v924 = vunpack.c.l.b16 %v909
        %v925 = vunpack.c.l.b16 %v910
        %v926 = vpack.c.b16 %v923, %v922
        %v927 = vpack.c.b16 %v925, %v924
        %v931 = vsel %vm862, %v906, 0
        %933 = vmatprep.subr.bf16.mxu0 0
        %934 = vmatpush1.bf16.msra.mxu0 %v926
        %935 = vmatprep.subr.bf16.mxu0 0
        %936 = vmatpush1.bf16.msra.mxu0 %v927
        %937 = vmatprep.subr.bf16.mxu0 0
        %938 = vmatpush1.bf16.msra.mxu0 0
        %939 = vmatprep.subr.bf16.mxu0 0
        %940 = vmatpush1.bf16.msra.mxu0 0
        %941 = vmatprep.subr.bf16.mxu0 0
        %942 = vmatpush1.bf16.msra.mxu0 0
        %943 = vmatprep.subr.bf16.mxu0 0
        %944 = vmatpush1.bf16.msra.mxu0 0
        %945 = vmatprep.subr.bf16.mxu0 0
        %946 = vmatpush1.bf16.msra.mxu0 0
        %947 = vmatprep.subr.bf16.mxu0 0
        %948 = vmatpush1.bf16.msra.mxu0 0
        %949 = vmatprep.subr.bf16.mxu0 0
        %950 = vmatpush1.bf16.msra.mxu0 0
        %951 = vmatprep.subr.bf16.mxu0 0
        %952 = vmatpush1.bf16.msra.mxu0 0
        %953 = vmatprep.subr.bf16.mxu0 0
        %954 = vmatpush1.bf16.msra.mxu0 0
        %955 = vmatprep.subr.bf16.mxu0 0
        %956 = vmatpush1.bf16.msra.mxu0 0
        %957 = vmatprep.subr.bf16.mxu0 0
        %958 = vmatpush1.bf16.msra.mxu0 0
        %959 = vmatprep.subr.bf16.mxu0 0
        %960 = vmatpush1.bf16.msra.mxu0 0
        %961 = vmatprep.subr.bf16.mxu0 0
        %962 = vmatpush1.bf16.msra.mxu0 0
        %963 = vmatprep.subr.bf16.mxu0 0
        %964 = vmatpush1.bf16.msra.mxu0 0
        %965 = vmatprep.mubr.bf16.mxu0 0
        %966 = vmatmul.mubr.bf16.gmra.mrb[0].mxu0 %v931
        %v967 = vpop.f32.mrb[0].mxu0
        %v968 = vadd.f32 %v916, %v967
        %v969 = vpop.f32.mrb[0].mxu0
        %v970 = vpop.f32.mrb[0].mxu0
        %v971 = vadd.f32 %v916, %v970
        %v972 = vpop.f32.mrb[0].mxu0
        %973 = vdwg.mxu0
        %v974 = vpack.c.bf16 %v968, %v968
        %v975 = vpack.c.bf16 %v971, %v971
        %v976 = vld [vmem:[#allocation3] sm:$0xff]
        %978 = vrot.lane.b32.xlu0 %v974, 96
        %v979 = vpop.permute.xlu0 %978
        %vm980 = vcmask 64512
        %v982 = vsel %vm980, %v974, 0
        %v985 = vsel %vm980, %v979, 0
        %987 = vmatprep.subr.bf16.mxu0 0
        %988 = vmatpush1.bf16.xpose.msra.mxu0 %v985
        %989 = vmatprep.subr.bf16.mxu0 0
        %990 = vmatpush1.bf16.xpose.msra.mxu0 0
        %991 = vmatprep.subr.bf16.mxu0 0
        %992 = vmatpush1.bf16.xpose.msra.mxu0 0
        %993 = vmatprep.subr.bf16.mxu0 0
        %994 = vmatpush1.bf16.xpose.msra.mxu0 0
        %995 = vmatprep.subr.bf16.mxu0 0
        %996 = vmatpush1.bf16.xpose.msra.mxu0 0
        %997 = vmatprep.subr.bf16.mxu0 0
        %998 = vmatpush1.bf16.xpose.msra.mxu0 0
        %999 = vmatprep.subr.bf16.mxu0 0
        %1000 = vmatpush1.bf16.xpose.msra.mxu0 0
        %1001 = vmatprep.subr.bf16.mxu0 0
        %1002 = vmatpush1.bf16.xpose.msra.mxu0 0
        %1003 = vmatprep.subr.bf16.mxu0 0
        %1004 = vmatpush1.bf16.xpose.msra.mxu0 0
        %1005 = vmatprep.subr.bf16.mxu0 0
        %1006 = vmatpush1.bf16.xpose.msra.mxu0 0
        %1007 = vmatprep.subr.bf16.mxu0 0
        %1008 = vmatpush1.bf16.xpose.msra.mxu0 0
        %1009 = vmatprep.subr.bf16.mxu0 0
        %1010 = vmatpush1.bf16.xpose.msra.mxu0 0
        %1011 = vmatprep.subr.bf16.mxu0 0
        %1012 = vmatpush1.bf16.xpose.msra.mxu0 0
        %1013 = vmatprep.subr.bf16.mxu0 0
        %1014 = vmatpush1.bf16.xpose.msra.mxu0 0
        %1015 = vmatprep.subr.bf16.mxu0 0
        %1016 = vmatpush1.bf16.xpose.msra.mxu0 0
        %1017 = vmatprep.subr.bf16.mxu0 0
        %1018 = vmatpush1.bf16.xpose.msra.mxu0 0
        %1019 = vmatprep.mubr.bf16.mxu0 0
        %1020 = vmatmul.mubr.bf16.gmra.mrb[0].mxu0 %v982
        %v1021 = vpop.f32.mrb[0].mxu0
        %v1022 = vadd.f32 %v976, %v1021
        %v1023 = vpop.f32.mrb[0].mxu0
        %v1024 = vpop.f32.mrb[0].mxu0
        %v1025 = vpop.f32.mrb[0].mxu0
        %1026 = vdwg.mxu0
        %1028 = vrot.lane.b32.xlu0 %v975, 96
        %v1029 = vpop.permute.xlu0 %1028
        %v1031 = vsel %vm980, %v975, 0
        %v1034 = vsel %vm980, %v1029, 0
        %1036 = vmatprep.subr.bf16.mxu0 0
        %1037 = vmatpush1.bf16.xpose.msra.mxu0 %v1034
        %1038 = vmatprep.subr.bf16.mxu0 0
        %1039 = vmatpush1.bf16.xpose.msra.mxu0 0
        %1040 = vmatprep.subr.bf16.mxu0 0
        %1041 = vmatpush1.bf16.xpose.msra.mxu0 0
        %1042 = vmatprep.subr.bf16.mxu0 0
        %1043 = vmatpush1.bf16.xpose.msra.mxu0 0
        %1044 = vmatprep.subr.bf16.mxu0 0
        %1045 = vmatpush1.bf16.xpose.msra.mxu0 0
        %1046 = vmatprep.subr.bf16.mxu0 0
        %1047 = vmatpush1.bf16.xpose.msra.mxu0 0
        %1048 = vmatprep.subr.bf16.mxu0 0
        %1049 = vmatpush1.bf16.xpose.msra.mxu0 0
        %1050 = vmatprep.subr.bf16.mxu0 0
        %1051 = vmatpush1.bf16.xpose.msra.mxu0 0
        %1052 = vmatprep.subr.bf16.mxu0 0
        %1053 = vmatpush1.bf16.xpose.msra.mxu0 0
        %1054 = vmatprep.subr.bf16.mxu0 0
        %1055 = vmatpush1.bf16.xpose.msra.mxu0 0
        %1056 = vmatprep.subr.bf16.mxu0 0
        %1057 = vmatpush1.bf16.xpose.msra.mxu0 0
        %1058 = vmatprep.subr.bf16.mxu0 0
        %1059 = vmatpush1.bf16.xpose.msra.mxu0 0
        %1060 = vmatprep.subr.bf16.mxu0 0
        %1061 = vmatpush1.bf16.xpose.msra.mxu0 0
        %1062 = vmatprep.subr.bf16.mxu0 0
        %1063 = vmatpush1.bf16.xpose.msra.mxu0 0
        %1064 = vmatprep.subr.bf16.mxu0 0
        %1065 = vmatpush1.bf16.xpose.msra.mxu0 0
        %1066 = vmatprep.subr.bf16.mxu0 0
        %1067 = vmatpush1.bf16.xpose.msra.mxu0 0
        %1068 = vmatprep.mubr.bf16.mxu0 0
        %1069 = vmatmul.mubr.bf16.gmra.mrb[0].mxu0 %v1031
        %v1070 = vpop.f32.mrb[0].mxu0
        %v1071 = vadd.f32 %v976, %v1070
        %v1072 = vpop.f32.mrb[0].mxu0
        %v1073 = vpop.f32.mrb[0].mxu0
        %v1074 = vpop.f32.mrb[0].mxu0
        %1075 = vdwg.mxu0
        %v1076 = vsel %vm980, %v1022, -inf
        %1077 = vmax.xlane.f32.xlu0 %v1076
        %v1078 = vpop.xlane.xlu0 %1077
        %v1079 = vsel %vm980, %v1071, -inf
        %1080 = vmax.xlane.f32.xlu0 %v1079
        %v1081 = vpop.xlane.xlu0 %1080
        %v1082 = vsub.f32 %v1022, %v1078
        %v1083 = vsub.f32 %v1071, %v1081
        %v1084 = vmul.f32 %v1082, 1.442695
        %v1085 = vpow.pop %v1084
        %v1086 = vmul.f32 %v1083, 1.442695
        %v1087 = vpow.pop %v1086
        %v1088 = vsel %vm980, %v1085, 0.0
        %1089 = vadd.xlane.f32.xlu0 %v1088
        %v1090 = vpop.xlane.xlu0 %1089
        %v1091 = vsel %vm980, %v1087, 0.0
        %1092 = vadd.xlane.f32.xlu0 %v1091
        %v1093 = vpop.xlane.xlu0 %1092
        %v1094 = vrcp.pop %v1090
        %v1095 = vrcp.pop %v1093
        %v1096 = vmul.f32 %v1085, %v1094
        %v1097 = vmul.f32 %v1087, %v1095
        %v1098 = vpack.c.bf16 %v1096, %v1096
        %v1099 = vpack.c.bf16 %v1097, %v1097
        %1100 = vrot.lane.b32.xlu0 %v974, 64
        %v1101 = vpop.permute.xlu0 %1100
        %v1103 = vsel %vm980, %v1098, 0
        %vm1105 = vcmask 1043456
        %v1107 = vsel %vm1105, %v1101, 0
        %1109 = vmatprep.subr.bf16.mxu0 0
        %1110 = vmatpush1.bf16.msra.mxu0 %v1107
        %1111 = vmatprep.subr.bf16.mxu0 0
        %1112 = vmatpush1.bf16.msra.mxu0 0
        %1113 = vmatprep.subr.bf16.mxu0 0
        %1114 = vmatpush1.bf16.msra.mxu0 0
        %1115 = vmatprep.subr.bf16.mxu0 0
        %1116 = vmatpush1.bf16.msra.mxu0 0
        %1117 = vmatprep.subr.bf16.mxu0 0
        %1118 = vmatpush1.bf16.msra.mxu0 0
        %1119 = vmatprep.subr.bf16.mxu0 0
        %1120 = vmatpush1.bf16.msra.mxu0 0
        %1121 = vmatprep.subr.bf16.mxu0 0
        %1122 = vmatpush1.bf16.msra.mxu0 0
        %1123 = vmatprep.subr.bf16.mxu0 0
        %1124 = vmatpush1.bf16.msra.mxu0 0
        %1125 = vmatprep.subr.bf16.mxu0 0
        %1126 = vmatpush1.bf16.msra.mxu0 0
        %1127 = vmatprep.subr.bf16.mxu0 0
        %1128 = vmatpush1.bf16.msra.mxu0 0
        %1129 = vmatprep.subr.bf16.mxu0 0
        %1130 = vmatpush1.bf16.msra.mxu0 0
        %1131 = vmatprep.subr.bf16.mxu0 0
        %1132 = vmatpush1.bf16.msra.mxu0 0
        %1133 = vmatprep.subr.bf16.mxu0 0
        %1134 = vmatpush1.bf16.msra.mxu0 0
        %1135 = vmatprep.subr.bf16.mxu0 0
        %1136 = vmatpush1.bf16.msra.mxu0 0
        %1137 = vmatprep.subr.bf16.mxu0 0
        %1138 = vmatpush1.bf16.msra.mxu0 0
        %1139 = vmatprep.subr.bf16.mxu0 0
        %1140 = vmatpush1.bf16.msra.mxu0 0
        %1141 = vmatprep.mubr.bf16.mxu0 0
        %1142 = vmatmul.mubr.bf16.gmra.mrb[0].mxu0 %v1103
        %v1143 = vpop.f32.mrb[0].mxu0
        %v1144 = vadd.f32 0.0, %v1143
        %v1145 = vpop.f32.mrb[0].mxu0
        %v1146 = vpop.f32.mrb[0].mxu0
        %v1147 = vpop.f32.mrb[0].mxu0
        %1148 = vdwg.mxu0
        %1149 = vrot.lane.b32.xlu0 %v975, 64
        %v1150 = vpop.permute.xlu0 %1149
        %v1152 = vsel %vm980, %v1099, 0
        %v1155 = vsel %vm1105, %v1150, 0
        %1157 = vmatprep.subr.bf16.mxu0 0
        %1158 = vmatpush1.bf16.msra.mxu0 %v1155
        %1159 = vmatprep.subr.bf16.mxu0 0
        %1160 = vmatpush1.bf16.msra.mxu0 0
        %1161 = vmatprep.subr.bf16.mxu0 0
        %1162 = vmatpush1.bf16.msra.mxu0 0
        %1163 = vmatprep.subr.bf16.mxu0 0
        %1164 = vmatpush1.bf16.msra.mxu0 0
        %1165 = vmatprep.subr.bf16.mxu0 0
        %1166 = vmatpush1.bf16.msra.mxu0 0
        %1167 = vmatprep.subr.bf16.mxu0 0
        %1168 = vmatpush1.bf16.msra.mxu0 0
        %1169 = vmatprep.subr.bf16.mxu0 0
        %1170 = vmatpush1.bf16.msra.mxu0 0
        %1171 = vmatprep.subr.bf16.mxu0 0
        %1172 = vmatpush1.bf16.msra.mxu0 0
        %1173 = vmatprep.subr.bf16.mxu0 0
        %1174 = vmatpush1.bf16.msra.mxu0 0
        %1175 = vmatprep.subr.bf16.mxu0 0
        %1176 = vmatpush1.bf16.msra.mxu0 0
        %1177 = vmatprep.subr.bf16.mxu0 0
        %1178 = vmatpush1.bf16.msra.mxu0 0
        %1179 = vmatprep.subr.bf16.mxu0 0
        %1180 = vmatpush1.bf16.msra.mxu0 0
        %1181 = vmatprep.subr.bf16.mxu0 0
        %1182 = vmatpush1.bf16.msra.mxu0 0
        %1183 = vmatprep.subr.bf16.mxu0 0
        %1184 = vmatpush1.bf16.msra.mxu0 0
        %1185 = vmatprep.subr.bf16.mxu0 0
        %1186 = vmatpush1.bf16.msra.mxu0 0
        %1187 = vmatprep.subr.bf16.mxu0 0
        %1188 = vmatpush1.bf16.msra.mxu0 0
        %1189 = vmatprep.mubr.bf16.mxu0 0
        %1190 = vmatmul.mubr.bf16.gmra.mrb[0].mxu0 %v1152
        %v1191 = vpop.f32.mrb[0].mxu0
        %v1192 = vadd.f32 0.0, %v1191
        %v1193 = vpop.f32.mrb[0].mxu0
        %v1194 = vpop.f32.mrb[0].mxu0
        %v1195 = vpop.f32.mrb[0].mxu0
        %1196 = vdwg.mxu0
        %1197 = vrot.lane.b32.xlu0 %v974, 120
        %v1198 = vpop.permute.xlu0 %1197
        %1199 = vrot.lane.b32.xlu0 %v974, 88
        %v1200 = vpop.permute.xlu0 %1199
        %v1202 = vsel %vm980, %v1198, 0
        %v1205 = vsel %vm980, %v1200, 0
        %1207 = vmatprep.subr.bf16.mxu0 0
        %1208 = vmatpush1.bf16.xpose.msra.mxu0 %v1205
        %1209 = vmatprep.subr.bf16.mxu0 0
        %1210 = vmatpush1.bf16.xpose.msra.mxu0 0
        %1211 = vmatprep.subr.bf16.mxu0 0
        %1212 = vmatpush1.bf16.xpose.msra.mxu0 0
        %1213 = vmatprep.subr.bf16.mxu0 0
        %1214 = vmatpush1.bf16.xpose.msra.mxu0 0
        %1215 = vmatprep.subr.bf16.mxu0 0
        %1216 = vmatpush1.bf16.xpose.msra.mxu0 0
        %1217 = vmatprep.subr.bf16.mxu0 0
        %1218 = vmatpush1.bf16.xpose.msra.mxu0 0
        %1219 = vmatprep.subr.bf16.mxu0 0
        %1220 = vmatpush1.bf16.xpose.msra.mxu0 0
        %1221 = vmatprep.subr.bf16.mxu0 0
        %1222 = vmatpush1.bf16.xpose.msra.mxu0 0
        %1223 = vmatprep.subr.bf16.mxu0 0
        %1224 = vmatpush1.bf16.xpose.msra.mxu0 0
        %1225 = vmatprep.subr.bf16.mxu0 0
        %1226 = vmatpush1.bf16.xpose.msra.mxu0 0
        %1227 = vmatprep.subr.bf16.mxu0 0
        %1228 = vmatpush1.bf16.xpose.msra.mxu0 0
        %1229 = vmatprep.subr.bf16.mxu0 0
        %1230 = vmatpush1.bf16.xpose.msra.mxu0 0
        %1231 = vmatprep.subr.bf16.mxu0 0
        %1232 = vmatpush1.bf16.xpose.msra.mxu0 0
        %1233 = vmatprep.subr.bf16.mxu0 0
        %1234 = vmatpush1.bf16.xpose.msra.mxu0 0
        %1235 = vmatprep.subr.bf16.mxu0 0
        %1236 = vmatpush1.bf16.xpose.msra.mxu0 0
        %1237 = vmatprep.subr.bf16.mxu0 0
        %1238 = vmatpush1.bf16.xpose.msra.mxu0 0
        %1239 = vmatprep.mubr.bf16.mxu0 0
        %1240 = vmatmul.mubr.bf16.gmra.mrb[0].mxu0 %v1202
        %v1241 = vpop.f32.mrb[0].mxu0
        %v1242 = vadd.f32 %v976, %v1241
        %v1243 = vpop.f32.mrb[0].mxu0
        %v1244 = vpop.f32.mrb[0].mxu0
        %v1245 = vpop.f32.mrb[0].mxu0
        %1246 = vdwg.mxu0
        %1247 = vrot.lane.b32.xlu0 %v975, 120
        %v1248 = vpop.permute.xlu0 %1247
        %1249 = vrot.lane.b32.xlu0 %v975, 88
        %v1250 = vpop.permute.xlu0 %1249
        %v1252 = vsel %vm980, %v1248, 0
        %v1255 = vsel %vm980, %v1250, 0
        %1257 = vmatprep.subr.bf16.mxu0 0
        %1258 = vmatpush1.bf16.xpose.msra.mxu0 %v1255
        %1259 = vmatprep.subr.bf16.mxu0 0
        %1260 = vmatpush1.bf16.xpose.msra.mxu0 0
        %1261 = vmatprep.subr.bf16.mxu0 0
        %1262 = vmatpush1.bf16.xpose.msra.mxu0 0
        %1263 = vmatprep.subr.bf16.mxu0 0
        %1264 = vmatpush1.bf16.xpose.msra.mxu0 0
        %1265 = vmatprep.subr.bf16.mxu0 0
        %1266 = vmatpush1.bf16.xpose.msra.mxu0 0
        %1267 = vmatprep.subr.bf16.mxu0 0
        %1268 = vmatpush1.bf16.xpose.msra.mxu0 0
        %1269 = vmatprep.subr.bf16.mxu0 0
        %1270 = vmatpush1.bf16.xpose.msra.mxu0 0
        %1271 = vmatprep.subr.bf16.mxu0 0
        %1272 = vmatpush1.bf16.xpose.msra.mxu0 0
        %1273 = vmatprep.subr.bf16.mxu0 0
        %1274 = vmatpush1.bf16.xpose.msra.mxu0 0
        %1275 = vmatprep.subr.bf16.mxu0 0
        %1276 = vmatpush1.bf16.xpose.msra.mxu0 0
        %1277 = vmatprep.subr.bf16.mxu0 0
        %1278 = vmatpush1.bf16.xpose.msra.mxu0 0
        %1279 = vmatprep.subr.bf16.mxu0 0
        %1280 = vmatpush1.bf16.xpose.msra.mxu0 0
        %1281 = vmatprep.subr.bf16.mxu0 0
        %1282 = vmatpush1.bf16.xpose.msra.mxu0 0
        %1283 = vmatprep.subr.bf16.mxu0 0
        %1284 = vmatpush1.bf16.xpose.msra.mxu0 0
        %1285 = vmatprep.subr.bf16.mxu0 0
        %1286 = vmatpush1.bf16.xpose.msra.mxu0 0
        %1287 = vmatprep.subr.bf16.mxu0 0
        %1288 = vmatpush1.bf16.xpose.msra.mxu0 0
        %1289 = vmatprep.mubr.bf16.mxu0 0
        %1290 = vmatmul.mubr.bf16.gmra.mrb[0].mxu0 %v1252
        %v1291 = vpop.f32.mrb[0].mxu0
        %v1292 = vadd.f32 %v976, %v1291
        %v1293 = vpop.f32.mrb[0].mxu0
        %v1294 = vpop.f32.mrb[0].mxu0
        %v1295 = vpop.f32.mrb[0].mxu0
        %1296 = vdwg.mxu0
        %v1297 = vsel %vm980, %v1242, -inf
        %1298 = vmax.xlane.f32.xlu0 %v1297
        %v1299 = vpop.xlane.xlu0 %1298
        %v1300 = vsel %vm980, %v1292, -inf
        %1301 = vmax.xlane.f32.xlu0 %v1300
        %v1302 = vpop.xlane.xlu0 %1301
        %v1303 = vsub.f32 %v1242, %v1299
        %v1304 = vsub.f32 %v1292, %v1302
        %v1305 = vmul.f32 %v1303, 1.442695
        %v1306 = vpow.pop %v1305
        %v1307 = vmul.f32 %v1304, 1.442695
        %v1308 = vpow.pop %v1307
        %v1309 = vsel %vm980, %v1306, 0.0
        %1310 = vadd.xlane.f32.xlu0 %v1309
        %v1311 = vpop.xlane.xlu0 %1310
        %v1312 = vsel %vm980, %v1308, 0.0
        %1313 = vadd.xlane.f32.xlu0 %v1312
        %v1314 = vpop.xlane.xlu0 %1313
        %v1315 = vrcp.pop %v1311
        %v1316 = vrcp.pop %v1314
        %v1317 = vmul.f32 %v1306, %v1315
        %v1318 = vmul.f32 %v1308, %v1316
        %v1319 = vpack.c.bf16 %v1317, %v1317
        %v1320 = vpack.c.bf16 %v1318, %v1318
        %1321 = vrot.lane.b32.xlu0 %v974, 56
        %v1322 = vpop.permute.xlu0 %1321
        %v1324 = vsel %vm980, %v1319, 0
        %v1327 = vsel %vm1105, %v1322, 0
        %1329 = vmatprep.subr.bf16.mxu0 0
        %1330 = vmatpush1.bf16.msra.mxu0 %v1327
        %1331 = vmatprep.subr.bf16.mxu0 0
        %1332 = vmatpush1.bf16.msra.mxu0 0
        %1333 = vmatprep.subr.bf16.mxu0 0
        %1334 = vmatpush1.bf16.msra.mxu0 0
        %1335 = vmatprep.subr.bf16.mxu0 0
        %1336 = vmatpush1.bf16.msra.mxu0 0
        %1337 = vmatprep.subr.bf16.mxu0 0
        %1338 = vmatpush1.bf16.msra.mxu0 0
        %1339 = vmatprep.subr.bf16.mxu0 0
        %1340 = vmatpush1.bf16.msra.mxu0 0
        %1341 = vmatprep.subr.bf16.mxu0 0
        %1342 = vmatpush1.bf16.msra.mxu0 0
        %1343 = vmatprep.subr.bf16.mxu0 0
        %1344 = vmatpush1.bf16.msra.mxu0 0
        %1345 = vmatprep.subr.bf16.mxu0 0
        %1346 = vmatpush1.bf16.msra.mxu0 0
        %1347 = vmatprep.subr.bf16.mxu0 0
        %1348 = vmatpush1.bf16.msra.mxu0 0
        %1349 = vmatprep.subr.bf16.mxu0 0
        %1350 = vmatpush1.bf16.msra.mxu0 0
        %1351 = vmatprep.subr.bf16.mxu0 0
        %1352 = vmatpush1.bf16.msra.mxu0 0
        %1353 = vmatprep.subr.bf16.mxu0 0
        %1354 = vmatpush1.bf16.msra.mxu0 0
        %1355 = vmatprep.subr.bf16.mxu0 0
        %1356 = vmatpush1.bf16.msra.mxu0 0
        %1357 = vmatprep.subr.bf16.mxu0 0
        %1358 = vmatpush1.bf16.msra.mxu0 0
        %1359 = vmatprep.subr.bf16.mxu0 0
        %1360 = vmatpush1.bf16.msra.mxu0 0
        %1361 = vmatprep.mubr.bf16.mxu0 0
        %1362 = vmatmul.mubr.bf16.gmra.mrb[0].mxu0 %v1324
        %v1363 = vpop.f32.mrb[0].mxu0
        %v1364 = vadd.f32 0.0, %v1363
        %v1365 = vpop.f32.mrb[0].mxu0
        %v1366 = vpop.f32.mrb[0].mxu0
        %v1367 = vpop.f32.mrb[0].mxu0
        %1368 = vdwg.mxu0
        %1369 = vrot.lane.b32.xlu0 %v975, 56
        %v1370 = vpop.permute.xlu0 %1369
        %v1372 = vsel %vm980, %v1320, 0
        %v1375 = vsel %vm1105, %v1370, 0
        %1377 = vmatprep.subr.bf16.mxu0 0
        %1378 = vmatpush1.bf16.msra.mxu0 %v1375
        %1379 = vmatprep.subr.bf16.mxu0 0
        %1380 = vmatpush1.bf16.msra.mxu0 0
        %1381 = vmatprep.subr.bf16.mxu0 0
        %1382 = vmatpush1.bf16.msra.mxu0 0
        %1383 = vmatprep.subr.bf16.mxu0 0
        %1384 = vmatpush1.bf16.msra.mxu0 0
        %1385 = vmatprep.subr.bf16.mxu0 0
        %1386 = vmatpush1.bf16.msra.mxu0 0
        %1387 = vmatprep.subr.bf16.mxu0 0
        %1388 = vmatpush1.bf16.msra.mxu0 0
        %1389 = vmatprep.subr.bf16.mxu0 0
        %1390 = vmatpush1.bf16.msra.mxu0 0
        %1391 = vmatprep.subr.bf16.mxu0 0
        %1392 = vmatpush1.bf16.msra.mxu0 0
        %1393 = vmatprep.subr.bf16.mxu0 0
        %1394 = vmatpush1.bf16.msra.mxu0 0
        %1395 = vmatprep.subr.bf16.mxu0 0
        %1396 = vmatpush1.bf16.msra.mxu0 0
        %1397 = vmatprep.subr.bf16.mxu0 0
        %1398 = vmatpush1.bf16.msra.mxu0 0
        %1399 = vmatprep.subr.bf16.mxu0 0
        %1400 = vmatpush1.bf16.msra.mxu0 0
        %1401 = vmatprep.subr.bf16.mxu0 0
        %1402 = vmatpush1.bf16.msra.mxu0 0
        %1403 = vmatprep.subr.bf16.mxu0 0
        %1404 = vmatpush1.bf16.msra.mxu0 0
        %1405 = vmatprep.subr.bf16.mxu0 0
        %1406 = vmatpush1.bf16.msra.mxu0 0
        %1407 = vmatprep.subr.bf16.mxu0 0
        %1408 = vmatpush1.bf16.msra.mxu0 0
        %1409 = vmatprep.mubr.bf16.mxu0 0
        %1410 = vmatmul.mubr.bf16.gmra.mrb[0].mxu0 %v1372
        %v1411 = vpop.f32.mrb[0].mxu0
        %v1412 = vadd.f32 0.0, %v1411
        %v1413 = vpop.f32.mrb[0].mxu0
        %v1414 = vpop.f32.mrb[0].mxu0
        %v1415 = vpop.f32.mrb[0].mxu0
        %1416 = vdwg.mxu0
        %1417 = vrot.lane.b32.xlu0 %v974, 112
        %v1418 = vpop.permute.xlu0 %1417
        %1419 = vrot.lane.b32.xlu0 %v974, 80
        %v1420 = vpop.permute.xlu0 %1419
        %v1422 = vsel %vm980, %v1418, 0
        %v1425 = vsel %vm980, %v1420, 0
        %1427 = vmatprep.subr.bf16.mxu0 0
        %1428 = vmatpush1.bf16.xpose.msra.mxu0 %v1425
        %1429 = vmatprep.subr.bf16.mxu0 0
        %1430 = vmatpush1.bf16.xpose.msra.mxu0 0
        %1431 = vmatprep.subr.bf16.mxu0 0
        %1432 = vmatpush1.bf16.xpose.msra.mxu0 0
        %1433 = vmatprep.subr.bf16.mxu0 0
        %1434 = vmatpush1.bf16.xpose.msra.mxu0 0
        %1435 = vmatprep.subr.bf16.mxu0 0
        %1436 = vmatpush1.bf16.xpose.msra.mxu0 0
        %1437 = vmatprep.subr.bf16.mxu0 0
        %1438 = vmatpush1.bf16.xpose.msra.mxu0 0
        %1439 = vmatprep.subr.bf16.mxu0 0
        %1440 = vmatpush1.bf16.xpose.msra.mxu0 0
        %1441 = vmatprep.subr.bf16.mxu0 0
        %1442 = vmatpush1.bf16.xpose.msra.mxu0 0
        %1443 = vmatprep.subr.bf16.mxu0 0
        %1444 = vmatpush1.bf16.xpose.msra.mxu0 0
        %1445 = vmatprep.subr.bf16.mxu0 0
        %1446 = vmatpush1.bf16.xpose.msra.mxu0 0
        %1447 = vmatprep.subr.bf16.mxu0 0
        %1448 = vmatpush1.bf16.xpose.msra.mxu0 0
        %1449 = vmatprep.subr.bf16.mxu0 0
        %1450 = vmatpush1.bf16.xpose.msra.mxu0 0
        %1451 = vmatprep.subr.bf16.mxu0 0
        %1452 = vmatpush1.bf16.xpose.msra.mxu0 0
        %1453 = vmatprep.subr.bf16.mxu0 0
        %1454 = vmatpush1.bf16.xpose.msra.mxu0 0
        %1455 = vmatprep.subr.bf16.mxu0 0
        %1456 = vmatpush1.bf16.xpose.msra.mxu0 0
        %1457 = vmatprep.subr.bf16.mxu0 0
        %1458 = vmatpush1.bf16.xpose.msra.mxu0 0
        %1459 = vmatprep.mubr.bf16.mxu0 0
        %1460 = vmatmul.mubr.bf16.gmra.mrb[0].mxu0 %v1422
        %v1461 = vpop.f32.mrb[0].mxu0
        %v1462 = vadd.f32 %v976, %v1461
        %v1463 = vpop.f32.mrb[0].mxu0
        %v1464 = vpop.f32.mrb[0].mxu0
        %v1465 = vpop.f32.mrb[0].mxu0
        %1466 = vdwg.mxu0
        %1467 = vrot.lane.b32.xlu0 %v975, 112
        %v1468 = vpop.permute.xlu0 %1467
        %1469 = vrot.lane.b32.xlu0 %v975, 80
        %v1470 = vpop.permute.xlu0 %1469
        %v1472 = vsel %vm980, %v1468, 0
        %v1475 = vsel %vm980, %v1470, 0
        %1477 = vmatprep.subr.bf16.mxu0 0
        %1478 = vmatpush1.bf16.xpose.msra.mxu0 %v1475
        %1479 = vmatprep.subr.bf16.mxu0 0
        %1480 = vmatpush1.bf16.xpose.msra.mxu0 0
        %1481 = vmatprep.subr.bf16.mxu0 0
        %1482 = vmatpush1.bf16.xpose.msra.mxu0 0
        %1483 = vmatprep.subr.bf16.mxu0 0
        %1484 = vmatpush1.bf16.xpose.msra.mxu0 0
        %1485 = vmatprep.subr.bf16.mxu0 0
        %1486 = vmatpush1.bf16.xpose.msra.mxu0 0
        %1487 = vmatprep.subr.bf16.mxu0 0
        %1488 = vmatpush1.bf16.xpose.msra.mxu0 0
        %1489 = vmatprep.subr.bf16.mxu0 0
        %1490 = vmatpush1.bf16.xpose.msra.mxu0 0
        %1491 = vmatprep.subr.bf16.mxu0 0
        %1492 = vmatpush1.bf16.xpose.msra.mxu0 0
        %1493 = vmatprep.subr.bf16.mxu0 0
        %1494 = vmatpush1.bf16.xpose.msra.mxu0 0
        %1495 = vmatprep.subr.bf16.mxu0 0
        %1496 = vmatpush1.bf16.xpose.msra.mxu0 0
        %1497 = vmatprep.subr.bf16.mxu0 0
        %1498 = vmatpush1.bf16.xpose.msra.mxu0 0
        %1499 = vmatprep.subr.bf16.mxu0 0
        %1500 = vmatpush1.bf16.xpose.msra.mxu0 0
        %1501 = vmatprep.subr.bf16.mxu0 0
        %1502 = vmatpush1.bf16.xpose.msra.mxu0 0
        %1503 = vmatprep.subr.bf16.mxu0 0
        %1504 = vmatpush1.bf16.xpose.msra.mxu0 0
        %1505 = vmatprep.subr.bf16.mxu0 0
        %1506 = vmatpush1.bf16.xpose.msra.mxu0 0
        %1507 = vmatprep.subr.bf16.mxu0 0
        %1508 = vmatpush1.bf16.xpose.msra.mxu0 0
        %1509 = vmatprep.mubr.bf16.mxu0 0
        %1510 = vmatmul.mubr.bf16.gmra.mrb[0].mxu0 %v1472
        %v1511 = vpop.f32.mrb[0].mxu0
        %v1512 = vadd.f32 %v976, %v1511
        %v1513 = vpop.f32.mrb[0].mxu0
        %v1514 = vpop.f32.mrb[0].mxu0
        %v1515 = vpop.f32.mrb[0].mxu0
        %1516 = vdwg.mxu0
        %v1517 = vsel %vm980, %v1462, -inf
        %1518 = vmax.xlane.f32.xlu0 %v1517
        %v1519 = vpop.xlane.xlu0 %1518
        %v1520 = vsel %vm980, %v1512, -inf
        %1521 = vmax.xlane.f32.xlu0 %v1520
        %v1522 = vpop.xlane.xlu0 %1521
        %v1523 = vsub.f32 %v1462, %v1519
        %v1524 = vsub.f32 %v1512, %v1522
        %v1525 = vmul.f32 %v1523, 1.442695
        %v1526 = vpow.pop %v1525
        %v1527 = vmul.f32 %v1524, 1.442695
        %v1528 = vpow.pop %v1527
        %v1529 = vsel %vm980, %v1526, 0.0
        %1530 = vadd.xlane.f32.xlu0 %v1529
        %v1531 = vpop.xlane.xlu0 %1530
        %v1532 = vsel %vm980, %v1528, 0.0
        %1533 = vadd.xlane.f32.xlu0 %v1532
        %v1534 = vpop.xlane.xlu0 %1533
        %v1535 = vrcp.pop %v1531
        %v1536 = vrcp.pop %v1534
        %v1537 = vmul.f32 %v1526, %v1535
        %v1538 = vmul.f32 %v1528, %v1536
        %v1539 = vpack.c.bf16 %v1537, %v1537
        %v1540 = vpack.c.bf16 %v1538, %v1538
        %1541 = vrot.lane.b32.xlu0 %v974, 48
        %v1542 = vpop.permute.xlu0 %1541
        %v1544 = vsel %vm980, %v1539, 0
        %v1547 = vsel %vm1105, %v1542, 0
        %1549 = vmatprep.subr.bf16.mxu0 0
        %1550 = vmatpush1.bf16.msra.mxu0 %v1547
        %1551 = vmatprep.subr.bf16.mxu0 0
        %1552 = vmatpush1.bf16.msra.mxu0 0
        %1553 = vmatprep.subr.bf16.mxu0 0
        %1554 = vmatpush1.bf16.msra.mxu0 0
        %1555 = vmatprep.subr.bf16.mxu0 0
        %1556 = vmatpush1.bf16.msra.mxu0 0
        %1557 = vmatprep.subr.bf16.mxu0 0
        %1558 = vmatpush1.bf16.msra.mxu0 0
        %1559 = vmatprep.subr.bf16.mxu0 0
        %1560 = vmatpush1.bf16.msra.mxu0 0
        %1561 = vmatprep.subr.bf16.mxu0 0
        %1562 = vmatpush1.bf16.msra.mxu0 0
        %1563 = vmatprep.subr.bf16.mxu0 0
        %1564 = vmatpush1.bf16.msra.mxu0 0
        %1565 = vmatprep.subr.bf16.mxu0 0
        %1566 = vmatpush1.bf16.msra.mxu0 0
        %1567 = vmatprep.subr.bf16.mxu0 0
        %1568 = vmatpush1.bf16.msra.mxu0 0
        %1569 = vmatprep.subr.bf16.mxu0 0
        %1570 = vmatpush1.bf16.msra.mxu0 0
        %1571 = vmatprep.subr.bf16.mxu0 0
        %1572 = vmatpush1.bf16.msra.mxu0 0
        %1573 = vmatprep.subr.bf16.mxu0 0
        %1574 = vmatpush1.bf16.msra.mxu0 0
        %1575 = vmatprep.subr.bf16.mxu0 0
        %1576 = vmatpush1.bf16.msra.mxu0 0
        %1577 = vmatprep.subr.bf16.mxu0 0
        %1578 = vmatpush1.bf16.msra.mxu0 0
        %1579 = vmatprep.subr.bf16.mxu0 0
        %1580 = vmatpush1.bf16.msra.mxu0 0
        %1581 = vmatprep.mubr.bf16.mxu0 0
        %1582 = vmatmul.mubr.bf16.gmra.mrb[0].mxu0 %v1544
        %v1583 = vpop.f32.mrb[0].mxu0
        %v1584 = vadd.f32 0.0, %v1583
        %v1585 = vpop.f32.mrb[0].mxu0
        %v1586 = vpop.f32.mrb[0].mxu0
        %v1587 = vpop.f32.mrb[0].mxu0
        %1588 = vdwg.mxu0
        %1589 = vrot.lane.b32.xlu0 %v975, 48
        %v1590 = vpop.permute.xlu0 %1589
        %v1592 = vsel %vm980, %v1540, 0
        %v1595 = vsel %vm1105, %v1590, 0
        %1597 = vmatprep.subr.bf16.mxu0 0
        %1598 = vmatpush1.bf16.msra.mxu0 %v1595
        %1599 = vmatprep.subr.bf16.mxu0 0
        %1600 = vmatpush1.bf16.msra.mxu0 0
        %1601 = vmatprep.subr.bf16.mxu0 0
        %1602 = vmatpush1.bf16.msra.mxu0 0
        %1603 = vmatprep.subr.bf16.mxu0 0
        %1604 = vmatpush1.bf16.msra.mxu0 0
        %1605 = vmatprep.subr.bf16.mxu0 0
        %1606 = vmatpush1.bf16.msra.mxu0 0
        %1607 = vmatprep.subr.bf16.mxu0 0
        %1608 = vmatpush1.bf16.msra.mxu0 0
        %1609 = vmatprep.subr.bf16.mxu0 0
        %1610 = vmatpush1.bf16.msra.mxu0 0
        %1611 = vmatprep.subr.bf16.mxu0 0
        %1612 = vmatpush1.bf16.msra.mxu0 0
        %1613 = vmatprep.subr.bf16.mxu0 0
        %1614 = vmatpush1.bf16.msra.mxu0 0
        %1615 = vmatprep.subr.bf16.mxu0 0
        %1616 = vmatpush1.bf16.msra.mxu0 0
        %1617 = vmatprep.subr.bf16.mxu0 0
        %1618 = vmatpush1.bf16.msra.mxu0 0
        %1619 = vmatprep.subr.bf16.mxu0 0
        %1620 = vmatpush1.bf16.msra.mxu0 0
        %1621 = vmatprep.subr.bf16.mxu0 0
        %1622 = vmatpush1.bf16.msra.mxu0 0
        %1623 = vmatprep.subr.bf16.mxu0 0
        %1624 = vmatpush1.bf16.msra.mxu0 0
        %1625 = vmatprep.subr.bf16.mxu0 0
        %1626 = vmatpush1.bf16.msra.mxu0 0
        %1627 = vmatprep.subr.bf16.mxu0 0
        %1628 = vmatpush1.bf16.msra.mxu0 0
        %1629 = vmatprep.mubr.bf16.mxu0 0
        %1630 = vmatmul.mubr.bf16.gmra.mrb[0].mxu0 %v1592
        %v1631 = vpop.f32.mrb[0].mxu0
        %v1632 = vadd.f32 0.0, %v1631
        %v1633 = vpop.f32.mrb[0].mxu0
        %v1634 = vpop.f32.mrb[0].mxu0
        %v1635 = vpop.f32.mrb[0].mxu0
        %1636 = vdwg.mxu0
        %1637 = vrot.lane.b32.xlu0 %v974, 104
        %v1638 = vpop.permute.xlu0 %1637
        %1639 = vrot.lane.b32.xlu0 %v974, 72
        %v1640 = vpop.permute.xlu0 %1639
        %v1642 = vsel %vm980, %v1638, 0
        %v1645 = vsel %vm980, %v1640, 0
        %1647 = vmatprep.subr.bf16.mxu0 0
        %1648 = vmatpush1.bf16.xpose.msra.mxu0 %v1645
        %1649 = vmatprep.subr.bf16.mxu0 0
        %1650 = vmatpush1.bf16.xpose.msra.mxu0 0
        %1651 = vmatprep.subr.bf16.mxu0 0
        %1652 = vmatpush1.bf16.xpose.msra.mxu0 0
        %1653 = vmatprep.subr.bf16.mxu0 0
        %1654 = vmatpush1.bf16.xpose.msra.mxu0 0
        %1655 = vmatprep.subr.bf16.mxu0 0
        %1656 = vmatpush1.bf16.xpose.msra.mxu0 0
        %1657 = vmatprep.subr.bf16.mxu0 0
        %1658 = vmatpush1.bf16.xpose.msra.mxu0 0
        %1659 = vmatprep.subr.bf16.mxu0 0
        %1660 = vmatpush1.bf16.xpose.msra.mxu0 0
        %1661 = vmatprep.subr.bf16.mxu0 0
        %1662 = vmatpush1.bf16.xpose.msra.mxu0 0
        %1663 = vmatprep.subr.bf16.mxu0 0
        %1664 = vmatpush1.bf16.xpose.msra.mxu0 0
        %1665 = vmatprep.subr.bf16.mxu0 0
        %1666 = vmatpush1.bf16.xpose.msra.mxu0 0
        %1667 = vmatprep.subr.bf16.mxu0 0
        %1668 = vmatpush1.bf16.xpose.msra.mxu0 0
        %1669 = vmatprep.subr.bf16.mxu0 0
        %1670 = vmatpush1.bf16.xpose.msra.mxu0 0
        %1671 = vmatprep.subr.bf16.mxu0 0
        %1672 = vmatpush1.bf16.xpose.msra.mxu0 0
        %1673 = vmatprep.subr.bf16.mxu0 0
        %1674 = vmatpush1.bf16.xpose.msra.mxu0 0
        %1675 = vmatprep.subr.bf16.mxu0 0
        %1676 = vmatpush1.bf16.xpose.msra.mxu0 0
        %1677 = vmatprep.subr.bf16.mxu0 0
        %1678 = vmatpush1.bf16.xpose.msra.mxu0 0
        %1679 = vmatprep.mubr.bf16.mxu0 0
        %1680 = vmatmul.mubr.bf16.gmra.mrb[0].mxu0 %v1642
        %v1681 = vpop.f32.mrb[0].mxu0
        %v1682 = vadd.f32 %v976, %v1681
        %v1683 = vpop.f32.mrb[0].mxu0
        %v1684 = vpop.f32.mrb[0].mxu0
        %v1685 = vpop.f32.mrb[0].mxu0
        %1686 = vdwg.mxu0
        %1687 = vrot.lane.b32.xlu0 %v975, 104
        %v1688 = vpop.permute.xlu0 %1687
        %1689 = vrot.lane.b32.xlu0 %v975, 72
        %v1690 = vpop.permute.xlu0 %1689
        %v1692 = vsel %vm980, %v1688, 0
        %v1695 = vsel %vm980, %v1690, 0
        %1697 = vmatprep.subr.bf16.mxu0 0
        %1698 = vmatpush1.bf16.xpose.msra.mxu0 %v1695
        %1699 = vmatprep.subr.bf16.mxu0 0
        %1700 = vmatpush1.bf16.xpose.msra.mxu0 0
        %1701 = vmatprep.subr.bf16.mxu0 0
        %1702 = vmatpush1.bf16.xpose.msra.mxu0 0
        %1703 = vmatprep.subr.bf16.mxu0 0
        %1704 = vmatpush1.bf16.xpose.msra.mxu0 0
        %1705 = vmatprep.subr.bf16.mxu0 0
        %1706 = vmatpush1.bf16.xpose.msra.mxu0 0
        %1707 = vmatprep.subr.bf16.mxu0 0
        %1708 = vmatpush1.bf16.xpose.msra.mxu0 0
        %1709 = vmatprep.subr.bf16.mxu0 0
        %1710 = vmatpush1.bf16.xpose.msra.mxu0 0
        %1711 = vmatprep.subr.bf16.mxu0 0
        %1712 = vmatpush1.bf16.xpose.msra.mxu0 0
        %1713 = vmatprep.subr.bf16.mxu0 0
        %1714 = vmatpush1.bf16.xpose.msra.mxu0 0
        %1715 = vmatprep.subr.bf16.mxu0 0
        %1716 = vmatpush1.bf16.xpose.msra.mxu0 0
        %1717 = vmatprep.subr.bf16.mxu0 0
        %1718 = vmatpush1.bf16.xpose.msra.mxu0 0
        %1719 = vmatprep.subr.bf16.mxu0 0
        %1720 = vmatpush1.bf16.xpose.msra.mxu0 0
        %1721 = vmatprep.subr.bf16.mxu0 0
        %1722 = vmatpush1.bf16.xpose.msra.mxu0 0
        %1723 = vmatprep.subr.bf16.mxu0 0
        %1724 = vmatpush1.bf16.xpose.msra.mxu0 0
        %1725 = vmatprep.subr.bf16.mxu0 0
        %1726 = vmatpush1.bf16.xpose.msra.mxu0 0
        %1727 = vmatprep.subr.bf16.mxu0 0
        %1728 = vmatpush1.bf16.xpose.msra.mxu0 0
        %1729 = vmatprep.mubr.bf16.mxu0 0
        %1730 = vmatmul.mubr.bf16.gmra.mrb[0].mxu0 %v1692
        %v1731 = vpop.f32.mrb[0].mxu0
        %v1732 = vadd.f32 %v976, %v1731
        %v1733 = vpop.f32.mrb[0].mxu0
        %v1734 = vpop.f32.mrb[0].mxu0
        %v1735 = vpop.f32.mrb[0].mxu0
        %1736 = vdwg.mxu0
        %v1737 = vsel %vm980, %v1682, -inf
        %1738 = vmax.xlane.f32.xlu0 %v1737
        %v1739 = vpop.xlane.xlu0 %1738
        %v1740 = vsel %vm980, %v1732, -inf
        %1741 = vmax.xlane.f32.xlu0 %v1740
        %v1742 = vpop.xlane.xlu0 %1741
        %v1743 = vsub.f32 %v1682, %v1739
        %v1744 = vsub.f32 %v1732, %v1742
        %v1745 = vmul.f32 %v1743, 1.442695
        %v1746 = vpow.pop %v1745
        %v1747 = vmul.f32 %v1744, 1.442695
        %v1748 = vpow.pop %v1747
        %v1749 = vsel %vm980, %v1746, 0.0
        %1750 = vadd.xlane.f32.xlu0 %v1749
        %v1751 = vpop.xlane.xlu0 %1750
        %v1752 = vsel %vm980, %v1748, 0.0
        %1753 = vadd.xlane.f32.xlu0 %v1752
        %v1754 = vpop.xlane.xlu0 %1753
        %v1755 = vrcp.pop %v1751
        %v1756 = vrcp.pop %v1754
        %v1757 = vmul.f32 %v1746, %v1755
        %v1758 = vmul.f32 %v1748, %v1756
        %v1759 = vpack.c.bf16 %v1757, %v1757
        %v1760 = vpack.c.bf16 %v1758, %v1758
        %1761 = vrot.lane.b32.xlu0 %v974, 40
        %v1762 = vpop.permute.xlu0 %1761
        %v1764 = vsel %vm980, %v1759, 0
        %v1767 = vsel %vm1105, %v1762, 0
        %1769 = vmatprep.subr.bf16.mxu0 0
        %1770 = vmatpush1.bf16.msra.mxu0 %v1767
        %1771 = vmatprep.subr.bf16.mxu0 0
        %1772 = vmatpush1.bf16.msra.mxu0 0
        %1773 = vmatprep.subr.bf16.mxu0 0
        %1774 = vmatpush1.bf16.msra.mxu0 0
        %1775 = vmatprep.subr.bf16.mxu0 0
        %1776 = vmatpush1.bf16.msra.mxu0 0
        %1777 = vmatprep.subr.bf16.mxu0 0
        %1778 = vmatpush1.bf16.msra.mxu0 0
        %1779 = vmatprep.subr.bf16.mxu0 0
        %1780 = vmatpush1.bf16.msra.mxu0 0
        %1781 = vmatprep.subr.bf16.mxu0 0
        %1782 = vmatpush1.bf16.msra.mxu0 0
        %1783 = vmatprep.subr.bf16.mxu0 0
        %1784 = vmatpush1.bf16.msra.mxu0 0
        %1785 = vmatprep.subr.bf16.mxu0 0
        %1786 = vmatpush1.bf16.msra.mxu0 0
        %1787 = vmatprep.subr.bf16.mxu0 0
        %1788 = vmatpush1.bf16.msra.mxu0 0
        %1789 = vmatprep.subr.bf16.mxu0 0
        %1790 = vmatpush1.bf16.msra.mxu0 0
        %1791 = vmatprep.subr.bf16.mxu0 0
        %1792 = vmatpush1.bf16.msra.mxu0 0
        %1793 = vmatprep.subr.bf16.mxu0 0
        %1794 = vmatpush1.bf16.msra.mxu0 0
        %1795 = vmatprep.subr.bf16.mxu0 0
        %1796 = vmatpush1.bf16.msra.mxu0 0
        %1797 = vmatprep.subr.bf16.mxu0 0
        %1798 = vmatpush1.bf16.msra.mxu0 0
        %1799 = vmatprep.subr.bf16.mxu0 0
        %1800 = vmatpush1.bf16.msra.mxu0 0
        %1801 = vmatprep.mubr.bf16.mxu0 0
        %1802 = vmatmul.mubr.bf16.gmra.mrb[0].mxu0 %v1764
        %v1803 = vpop.f32.mrb[0].mxu0
        %v1804 = vadd.f32 0.0, %v1803
        %v1805 = vpop.f32.mrb[0].mxu0
        %v1806 = vpop.f32.mrb[0].mxu0
        %v1807 = vpop.f32.mrb[0].mxu0
        %1808 = vdwg.mxu0
        %1809 = vrot.lane.b32.xlu0 %v975, 40
        %v1810 = vpop.permute.xlu0 %1809
        %v1812 = vsel %vm980, %v1760, 0
        %v1815 = vsel %vm1105, %v1810, 0
        %1817 = vmatprep.subr.bf16.mxu0 0
        %1818 = vmatpush1.bf16.msra.mxu0 %v1815
        %1819 = vmatprep.subr.bf16.mxu0 0
        %1820 = vmatpush1.bf16.msra.mxu0 0
        %1821 = vmatprep.subr.bf16.mxu0 0
        %1822 = vmatpush1.bf16.msra.mxu0 0
        %1823 = vmatprep.subr.bf16.mxu0 0
        %1824 = vmatpush1.bf16.msra.mxu0 0
        %1825 = vmatprep.subr.bf16.mxu0 0
        %1826 = vmatpush1.bf16.msra.mxu0 0
        %1827 = vmatprep.subr.bf16.mxu0 0
        %1828 = vmatpush1.bf16.msra.mxu0 0
        %1829 = vmatprep.subr.bf16.mxu0 0
        %1830 = vmatpush1.bf16.msra.mxu0 0
        %1831 = vmatprep.subr.bf16.mxu0 0
        %1832 = vmatpush1.bf16.msra.mxu0 0
        %1833 = vmatprep.subr.bf16.mxu0 0
        %1834 = vmatpush1.bf16.msra.mxu0 0
        %1835 = vmatprep.subr.bf16.mxu0 0
        %1836 = vmatpush1.bf16.msra.mxu0 0
        %1837 = vmatprep.subr.bf16.mxu0 0
        %1838 = vmatpush1.bf16.msra.mxu0 0
        %1839 = vmatprep.subr.bf16.mxu0 0
        %1840 = vmatpush1.bf16.msra.mxu0 0
        %1841 = vmatprep.subr.bf16.mxu0 0
        %1842 = vmatpush1.bf16.msra.mxu0 0
        %1843 = vmatprep.subr.bf16.mxu0 0
        %1844 = vmatpush1.bf16.msra.mxu0 0
        %1845 = vmatprep.subr.bf16.mxu0 0
        %1846 = vmatpush1.bf16.msra.mxu0 0
        %1847 = vmatprep.subr.bf16.mxu0 0
        %1848 = vmatpush1.bf16.msra.mxu0 0
        %1849 = vmatprep.mubr.bf16.mxu0 0
        %1850 = vmatmul.mubr.bf16.gmra.mrb[0].mxu0 %v1812
        %v1851 = vpop.f32.mrb[0].mxu0
        %v1852 = vadd.f32 0.0, %v1851
        %v1853 = vpop.f32.mrb[0].mxu0
        %v1854 = vpop.f32.mrb[0].mxu0
        %v1855 = vpop.f32.mrb[0].mxu0
        %1856 = vdwg.mxu0
        %1859 = vrot.lane.b32.xlu0 %v1364, 8
        %v1860 = vpop.permute.xlu0 %1859
        %1861 = vrot.lane.b32.xlu0 %v1412, 8
        %v1862 = vpop.permute.xlu0 %1861
        %1867 = vrot.lane.b32.xlu0 %v1584, 16
        %v1868 = vpop.permute.xlu0 %1867
        %1869 = vrot.lane.b32.xlu0 %v1632, 16
        %v1870 = vpop.permute.xlu0 %1869
        %1875 = vrot.lane.b32.xlu0 %v1804, 24
        %v1876 = vpop.permute.xlu0 %1875
        %1877 = vrot.lane.b32.xlu0 %v1852, 24
        %v1878 = vpop.permute.xlu0 %1877
        %v1881 = vsel %vm980, %v1144, %v1860
        %v1882 = vsel %vm980, %v1192, %v1862
        %vm1883 = vcmask 130048
        %v1884 = vsel %vm1883, %v1881, %v1868
        %v1885 = vsel %vm1883, %v1882, %v1870
        %vm1886 = vcmask 195584
        %v1887 = vsel %vm1886, %v1884, %v1876
        %v1888 = vsel %vm1886, %v1885, %v1878
        %v1889 = vpack.c.bf16 %v1888, %v1887
        %v1890 = vld [vmem:[%s796] sm:$0xf]
        %v1891 = vld [vmem:[%s796 + $0x4] sm:$0xf]
        %v1892 = vld [vmem:[%s796 + $0x8] sm:$0xf]
        %v1893 = vld [vmem:[%s796 + $0xc] sm:$0xf]
        %v1894 = vld [vmem:[%s799] sm:$0x1]
        %v1896 = vlaneseq
        %v1897 = vshrl.u32 %v1896, 7
        %v1898 = vsub.s32 0, %v1897
        %v1899 = vrot.slane %v1894, %v1898
        %v1905 = vunpack.c.l.b16 %v1890
        %v1906 = vunpack.c.l.b16 %v1891
        %v1907 = vunpack.c.l.b16 %v1892
        %v1908 = vunpack.c.l.b16 %v1893
        %v1909 = vpack.c.b16 %v1906, %v1905
        %v1910 = vpack.c.b16 %v1908, %v1907
        %v1914 = vsel %vm862, %v1889, 0
        %1916 = vmatprep.subr.bf16.mxu0 0
        %1917 = vmatpush1.bf16.msra.mxu0 %v1909
        %1918 = vmatprep.subr.bf16.mxu0 0
        %1919 = vmatpush1.bf16.msra.mxu0 %v1910
        %1920 = vmatprep.subr.bf16.mxu0 0
        %1921 = vmatpush1.bf16.msra.mxu0 0
        %1922 = vmatprep.subr.bf16.mxu0 0
        %1923 = vmatpush1.bf16.msra.mxu0 0
        %1924 = vmatprep.subr.bf16.mxu0 0
        %1925 = vmatpush1.bf16.msra.mxu0 0
        %1926 = vmatprep.subr.bf16.mxu0 0
        %1927 = vmatpush1.bf16.msra.mxu0 0
        %1928 = vmatprep.subr.bf16.mxu0 0
        %1929 = vmatpush1.bf16.msra.mxu0 0
        %1930 = vmatprep.subr.bf16.mxu0 0
        %1931 = vmatpush1.bf16.msra.mxu0 0
        %1932 = vmatprep.subr.bf16.mxu0 0
        %1933 = vmatpush1.bf16.msra.mxu0 0
        %1934 = vmatprep.subr.bf16.mxu0 0
        %1935 = vmatpush1.bf16.msra.mxu0 0
        %1936 = vmatprep.subr.bf16.mxu0 0
        %1937 = vmatpush1.bf16.msra.mxu0 0
        %1938 = vmatprep.subr.bf16.mxu0 0
        %1939 = vmatpush1.bf16.msra.mxu0 0
        %1940 = vmatprep.subr.bf16.mxu0 0
        %1941 = vmatpush1.bf16.msra.mxu0 0
        %1942 = vmatprep.subr.bf16.mxu0 0
        %1943 = vmatpush1.bf16.msra.mxu0 0
        %1944 = vmatprep.subr.bf16.mxu0 0
        %1945 = vmatpush1.bf16.msra.mxu0 0
        %1946 = vmatprep.subr.bf16.mxu0 0
        %1947 = vmatpush1.bf16.msra.mxu0 0
        %1948 = vmatprep.mubr.bf16.mxu0 0
        %1949 = vmatmul.mubr.bf16.gmra.mrb[0].mxu0 %v1914
        %v1950 = vpop.f32.mrb[0].mxu0
        %v1951 = vadd.f32 %v1899, %v1950
        %v1952 = vpop.f32.mrb[0].mxu0
        %v1953 = vpop.f32.mrb[0].mxu0
        %v1954 = vadd.f32 %v1899, %v1953
        %v1955 = vpop.f32.mrb[0].mxu0
        %1956 = vdwg.mxu0
        %v1957 = vadd.f32 %v858, %v1951
        %v1958 = vadd.f32 %v859, %v1954
        %v1959 = vld [vmem:[%s802] sm:$0x1]
        %v1960 = vld [vmem:[%s805] sm:$0x1]
        %v1961 = vsel %vm862, %v1957, 0.0
        %1962 = vadd.xlane.f32.xlu0 %v1961
        %v1963 = vpop.xlane.xlu0 %1962
        %v1964 = vsel %vm862, %v1958, 0.0
        %1965 = vadd.xlane.f32.xlu0 %v1964
        %v1966 = vpop.xlane.xlu0 %1965
        %v1967 = vmul.f32 %v1963, %v869
        %v1968 = vmul.f32 %v1966, %v869
        %v1969 = vsub.f32 %v1957, %v1967
        %v1970 = vsub.f32 %v1958, %v1968
        %v1971 = vmul.f32 %v1969, %v1969
        %v1972 = vmul.f32 %v1970, %v1970
        %v1973 = vsel %vm862, %v1971, 0.0
        %1974 = vadd.xlane.f32.xlu0 %v1973
        %v1975 = vpop.xlane.xlu0 %1974
        %v1976 = vsel %vm862, %v1972, 0.0
        %1977 = vadd.xlane.f32.xlu0 %v1976
        %v1978 = vpop.xlane.xlu0 %1977
        %v1979 = vmul.f32 %v1975, %v869
        %v1980 = vmul.f32 %v1978, %v869
        %v1981 = vadd.f32 %v1979, 1e-05
        %v1982 = vadd.f32 %v1980, 1e-05
        %v1983 = vrsqrt.pop %v1981
        %v1984 = vrsqrt.pop %v1982
        %v1985 = vmul.f32 %v1969, %v1983
        %v1986 = vmul.f32 %v1970, %v1984
        %v1988 = vlaneseq
        %v1989 = vshrl.u32 %v1988, 7
        %v1990 = vsub.s32 0, %v1989
        %v1991 = vrot.slane %v1959, %v1990
        %v1993 = vmul.f32 %v1985, %v1991
        %v1994 = vmul.f32 %v1986, %v1991
        %v1996 = vlaneseq
        %v1997 = vshrl.u32 %v1996, 7
        %v1998 = vsub.s32 0, %v1997
        %v1999 = vrot.slane %v1960, %v1998
        %v2001 = vadd.f32 %v1993, %v1999
        %v2002 = vadd.f32 %v1994, %v1999
        %v2003 = vpack.c.bf16 %v2002, %v2001
        %v2004 = vld [vmem:[%s810] sm:$0xf]
        %v2005 = vld [vmem:[%s810 + $0x4] sm:$0xf]
        %v2006 = vld [vmem:[%s810 + $0x8] sm:$0xf]
        %v2007 = vld [vmem:[%s810 + $0xc] sm:$0xf]
        %v2008 = vld [vmem:[%s813] sm:$0x1]
        %v2010 = vlaneseq
        %v2011 = vshrl.u32 %v2010, 7
        %v2012 = vsub.s32 0, %v2011
        %v2013 = vrot.slane %v2008, %v2012
        %v2019 = vunpack.c.l.b16 %v2004
        %v2020 = vunpack.c.l.b16 %v2005
        %v2021 = vunpack.c.l.b16 %v2006
        %v2022 = vunpack.c.l.b16 %v2007
        %v2023 = vpack.c.b16 %v2020, %v2019
        %v2024 = vpack.c.b16 %v2022, %v2021
        %v2028 = vsel %vm862, %v2003, 0
        %2030 = vmatprep.subr.bf16.mxu0 0
        %2031 = vmatpush1.bf16.msra.mxu0 %v2023
        %2032 = vmatprep.subr.bf16.mxu0 0
        %2033 = vmatpush1.bf16.msra.mxu0 %v2024
        %2034 = vmatprep.subr.bf16.mxu0 0
        %2035 = vmatpush1.bf16.msra.mxu0 0
        %2036 = vmatprep.subr.bf16.mxu0 0
        %2037 = vmatpush1.bf16.msra.mxu0 0
        %2038 = vmatprep.subr.bf16.mxu0 0
        %2039 = vmatpush1.bf16.msra.mxu0 0
        %2040 = vmatprep.subr.bf16.mxu0 0
        %2041 = vmatpush1.bf16.msra.mxu0 0
        %2042 = vmatprep.subr.bf16.mxu0 0
        %2043 = vmatpush1.bf16.msra.mxu0 0
        %2044 = vmatprep.subr.bf16.mxu0 0
        %2045 = vmatpush1.bf16.msra.mxu0 0
        %2046 = vmatprep.subr.bf16.mxu0 0
        %2047 = vmatpush1.bf16.msra.mxu0 0
        %2048 = vmatprep.subr.bf16.mxu0 0
        %2049 = vmatpush1.bf16.msra.mxu0 0
        %2050 = vmatprep.subr.bf16.mxu0 0
        %2051 = vmatpush1.bf16.msra.mxu0 0
        %2052 = vmatprep.subr.bf16.mxu0 0
        %2053 = vmatpush1.bf16.msra.mxu0 0
        %2054 = vmatprep.subr.bf16.mxu0 0
        %2055 = vmatpush1.bf16.msra.mxu0 0
        %2056 = vmatprep.subr.bf16.mxu0 0
        %2057 = vmatpush1.bf16.msra.mxu0 0
        %2058 = vmatprep.subr.bf16.mxu0 0
        %2059 = vmatpush1.bf16.msra.mxu0 0
        %2060 = vmatprep.subr.bf16.mxu0 0
        %2061 = vmatpush1.bf16.msra.mxu0 0
        %2062 = vmatprep.mubr.bf16.mxu0 0
        %2063 = vmatmul.mubr.bf16.gmra.mrb[0].mxu0 %v2028
        %v2064 = vpop.f32.mrb[0].mxu0
        %v2065 = vadd.f32 %v2013, %v2064
        %v2066 = vpop.f32.mrb[0].mxu0
        %v2067 = vpop.f32.mrb[0].mxu0
        %v2068 = vadd.f32 %v2013, %v2067
        %v2069 = vpop.f32.mrb[0].mxu0
        %2070 = vdwg.mxu0
        %v2071 = vpack.c.bf16 %v2068, %v2065
        %v2072 = vmul.bf16 %v2071, 1071267802
        %v2073 = vxor.u32 %v2072, 2147516416
        %v2075 = vmul.bf16 %v2073, 1069105081
        %v2076 = vpow.bf16.pop %v2075
        %v2077 = vadd.bf16 %v2076, 1065369472
        %v2078 = vrcp.bf16.pop %v2077
        %v2079 = vmul.bf16 1065369472, %v2078
        %v2080 = vmul.bf16 %v2071, %v2079
        %v2081 = vld [vmem:[%s818] sm:$0xf]
        %v2082 = vld [vmem:[%s818 + $0x4] sm:$0xf]
        %v2083 = vld [vmem:[%s818 + $0x8] sm:$0xf]
        %v2084 = vld [vmem:[%s818 + $0xc] sm:$0xf]
        %v2085 = vld [vmem:[%s818 + $0x10] sm:$0xf]
        %v2086 = vld [vmem:[%s818 + $0x14] sm:$0xf]
        %v2087 = vld [vmem:[%s818 + $0x18] sm:$0xf]
        %v2088 = vld [vmem:[%s818 + $0x1c] sm:$0xf]
        %v2089 = vld [vmem:[%s818 + $0x20] sm:$0xf]
        %v2090 = vld [vmem:[%s818 + $0x24] sm:$0xf]
        %v2091 = vld [vmem:[%s818 + $0x28] sm:$0xf]
        %v2092 = vld [vmem:[%s818 + $0x2c] sm:$0xf]
        %v2093 = vld [vmem:[%s818 + $0x30] sm:$0xf]
        %v2094 = vld [vmem:[%s818 + $0x34] sm:$0xf]
        %v2095 = vld [vmem:[%s818 + $0x38] sm:$0xf]
        %v2096 = vld [vmem:[%s818 + $0x3c] sm:$0xf]
        %v2097 = vld [vmem:[%s821] sm:$0x1]
        %v2099 = vlaneseq
        %v2100 = vshrl.u32 %v2099, 7
        %v2101 = vsub.s32 0, %v2100
        %v2102 = vrot.slane %v2097, %v2101
        %v2120 = vunpack.c.l.b16 %v2081
        %v2121 = vunpack.c.l.b16 %v2082
        %v2122 = vunpack.c.l.b16 %v2083
        %v2123 = vunpack.c.l.b16 %v2084
        %v2124 = vunpack.c.l.b16 %v2085
        %v2125 = vunpack.c.l.b16 %v2086
        %v2126 = vunpack.c.l.b16 %v2087
        %v2127 = vunpack.c.l.b16 %v2088
        %v2128 = vunpack.c.l.b16 %v2089
        %v2129 = vunpack.c.l.b16 %v2090
        %v2130 = vunpack.c.l.b16 %v2091
        %v2131 = vunpack.c.l.b16 %v2092
        %v2132 = vunpack.c.l.b16 %v2093
        %v2133 = vunpack.c.l.b16 %v2094
        %v2134 = vunpack.c.l.b16 %v2095
        %v2135 = vunpack.c.l.b16 %v2096
        %v2136 = vpack.c.b16 %v2121, %v2120
        %v2137 = vpack.c.b16 %v2123, %v2122
        %v2138 = vpack.c.b16 %v2125, %v2124
        %v2139 = vpack.c.b16 %v2127, %v2126
        %v2140 = vpack.c.b16 %v2129, %v2128
        %v2141 = vpack.c.b16 %v2131, %v2130
        %v2142 = vpack.c.b16 %v2133, %v2132
        %v2143 = vpack.c.b16 %v2135, %v2134
        %2152 = vmatprep.subr.bf16.mxu0 0
        %2153 = vmatpush1.bf16.msra.mxu0 %v2136
        %2154 = vmatprep.subr.bf16.mxu0 0
        %2155 = vmatpush1.bf16.msra.mxu0 %v2137
        %2156 = vmatprep.subr.bf16.mxu0 0
        %2157 = vmatpush1.bf16.msra.mxu0 %v2138
        %2158 = vmatprep.subr.bf16.mxu0 0
        %2159 = vmatpush1.bf16.msra.mxu0 %v2139
        %2160 = vmatprep.subr.bf16.mxu0 0
        %2161 = vmatpush1.bf16.msra.mxu0 %v2140
        %2162 = vmatprep.subr.bf16.mxu0 0
        %2163 = vmatpush1.bf16.msra.mxu0 %v2141
        %2164 = vmatprep.subr.bf16.mxu0 0
        %2165 = vmatpush1.bf16.msra.mxu0 %v2142
        %2166 = vmatprep.subr.bf16.mxu0 0
        %2167 = vmatpush1.bf16.msra.mxu0 %v2143
        %2168 = vmatprep.subr.bf16.mxu0 0
        %2169 = vmatpush1.bf16.msra.mxu0 0
        %2170 = vmatprep.subr.bf16.mxu0 0
        %2171 = vmatpush1.bf16.msra.mxu0 0
        %2172 = vmatprep.subr.bf16.mxu0 0
        %2173 = vmatpush1.bf16.msra.mxu0 0
        %2174 = vmatprep.subr.bf16.mxu0 0
        %2175 = vmatpush1.bf16.msra.mxu0 0
        %2176 = vmatprep.subr.bf16.mxu0 0
        %2177 = vmatpush1.bf16.msra.mxu0 0
        %2178 = vmatprep.subr.bf16.mxu0 0
        %2179 = vmatpush1.bf16.msra.mxu0 0
        %2180 = vmatprep.subr.bf16.mxu0 0
        %2181 = vmatpush1.bf16.msra.mxu0 0
        %2182 = vmatprep.subr.bf16.mxu0 0
        %2183 = vmatpush1.bf16.msra.mxu0 0
        %2184 = vmatprep.mubr.bf16.mxu0 0
        %2185 = vmatmul.mubr.bf16.gmra.mrb[0].mxu0 %v2080
        %v2186 = vpop.f32.mrb[0].mxu0
        %v2187 = vadd.f32 %v2102, %v2186
        %v2188 = vpop.f32.mrb[0].mxu0
        %v2189 = vpop.f32.mrb[0].mxu0
        %v2190 = vadd.f32 %v2102, %v2189
        %v2191 = vpop.f32.mrb[0].mxu0
        %2192 = vdwg.mxu0
        %v2193 = vadd.f32 %v1957, %v2187
        %v2194 = vadd.f32 %v1958, %v2190
        %2195 = vst.msk [vmem:[#allocation2] sm:$0xff] %vm862, %v2193
        %2196 = vst.msk [vmem:[#allocation2 + $0x8] sm:$0xff] %vm862, %v2194
        %p2197 = scmp.eq.s32.totalorder %s36, 1
        // Predicated region
        $region105: #{tpu_custom_call.1} parent=95 // pred_check
          %p2198 = pneg %p2197
        $region106: #{tpu_custom_call.1} parent=95 // pred_check_branch
          %2200 = sbr.rel (%p2198) target = $region108
        $region107: #{tpu_custom_call.1} parent=95 // pred_region
          %v2201 = vld [vmem:[#allocation2] sm:$0xff]
          %v2202 = vld [vmem:[#allocation2 + $0x8] sm:$0xff]
          %v2203 = vld [vmem:[%s776] sm:$0xff]
          %v2204 = vld [vmem:[%s776 + $0x8] sm:$0xff]
          %2206 = vset.pattern.permute.xlu0 0
          %2207 = vperm.xlu0 %2206, %v2203
          %v2208 = vpop.permute.xlu0 %2207
          %2211 = vset.pattern.permute.xlu0 0
          %2212 = vperm.xlu0 %2211, %v2204
          %v2213 = vpop.permute.xlu0 %2212
          %v2215 = vmul.f32 %v2201, %v2208
          %v2216 = vmul.f32 %v2202, %v2213
          %v2217 = vsel %vm862, %v2215, 0.0
          %v2218 = vrot.slane %v2217, 4
          %v2219 = vadd.f32 %v2217, %v2218
          %v2220 = vrot.slane %v2219, 2
          %v2221 = vadd.f32 %v2219, %v2220
          %v2222 = vrot.slane %v2221, 1
          %v2223 = vadd.f32 %v2221, %v2222
          %v2224 = vsel %vm862, %v2216, 0.0
          %v2225 = vrot.slane %v2224, 4
          %v2226 = vadd.f32 %v2224, %v2225
          %v2227 = vrot.slane %v2226, 2
          %v2228 = vadd.f32 %v2226, %v2227
          %v2229 = vrot.slane %v2228, 1
          %v2230 = vadd.f32 %v2228, %v2229
          %v2231 = vld [vmem:[%s16] sm:$0x1]
          %v2232 = vld [vmem:[%s17] sm:$0x1]
          %vm2235 = vcmask 1041409
          %v2236 = vsel %vm2235, %v2230, %v2223
          %vm2238 = vcmask 254976
          %v2239 = vsel %vm2238, %v2236, 0.0
          %2240 = vadd.xlane.f32.xlu0 %v2239
          %v2241 = vpop.xlane.xlu0 %2240
          %v2242 = vmul.f32 %v2241, %v869
          %v2244 = vrot.slane %v2242, 1
          %v2247 = vsub.f32 %v2223, %v2242
          %v2248 = vsub.f32 %v2230, %v2244
          %v2249 = vmul.f32 %v2247, %v2247
          %v2250 = vmul.f32 %v2248, %v2248
          %v2253 = vrot.slane %v2250, 7
          %v2254 = vsel %vm2235, %v2253, %v2249
          %v2256 = vsel %vm2238, %v2254, 0.0
          %2257 = vadd.xlane.f32.xlu0 %v2256
          %v2258 = vpop.xlane.xlu0 %2257
          %v2259 = vmul.f32 %v2258, %v869
          %v2260 = vadd.f32 %v2259, 1e-05
          %v2261 = vrsqrt.pop %v2260
          %v2263 = vrot.slane %v2261, 1
          %v2266 = vmul.f32 %v2247, %v2261
          %v2267 = vmul.f32 %v2248, %v2263
          %v2269 = vlaneseq
          %v2270 = vshrl.u32 %v2269, 7
          %v2271 = vsub.s32 0, %v2270
          %v2272 = vrot.slane %v2231, %v2271
          %v2274 = vmul.f32 %v2266, %v2272
          %v2275 = vmul.f32 %v2267, %v2272
          %v2277 = vlaneseq
          %v2278 = vshrl.u32 %v2277, 7
          %v2279 = vsub.s32 0, %v2278
          %v2280 = vrot.slane %v2232, %v2279
          %v2282 = vadd.f32 %v2274, %v2280
          %v2283 = vadd.f32 %v2275, %v2280
          %v2284 = vpack.c.bf16 %v2282, %v2282
          %v2285 = vpack.c.bf16 %v2283, %v2283
          %v2286 = vld [vmem:[%s18] sm:$0xf]
          %v2287 = vld [vmem:[%s18 + $0x4] sm:$0xf]
          %v2288 = vld [vmem:[%s18 + $0x8] sm:$0xf]
          %v2289 = vld [vmem:[%s18 + $0xc] sm:$0xf]
          %v2292 = vunpack.c.l.b16 %v2284
          %v2293 = vunpack.c.l.b16 %v2285
          %v2294 = vrot.slane %v2293, 7
          %v2295 = vsel %vm2235, %v2294, %v2292
          %v2296 = vpack.c.b16 %v2295, %v2295
          %v2301 = vunpack.c.l.b16 %v2286
          %v2302 = vunpack.c.l.b16 %v2287
          %v2303 = vunpack.c.l.b16 %v2288
          %v2304 = vunpack.c.l.b16 %v2289
          %v2305 = vpack.c.b16 %v2302, %v2301
          %v2306 = vpack.c.b16 %v2304, %v2303
          %v2310 = vsel %vm862, %v2296, 0
          %2312 = vmatprep.subr.bf16.mxu0 0
          %2313 = vmatpush1.bf16.msra.mxu0 %v2305
          %2314 = vmatprep.subr.bf16.mxu0 0
          %2315 = vmatpush1.bf16.msra.mxu0 %v2306
          %2316 = vmatprep.subr.bf16.mxu0 0
          %2317 = vmatpush1.bf16.msra.mxu0 0
          %2318 = vmatprep.subr.bf16.mxu0 0
          %2319 = vmatpush1.bf16.msra.mxu0 0
          %2320 = vmatprep.subr.bf16.mxu0 0
          %2321 = vmatpush1.bf16.msra.mxu0 0
          %2322 = vmatprep.subr.bf16.mxu0 0
          %2323 = vmatpush1.bf16.msra.mxu0 0
          %2324 = vmatprep.subr.bf16.mxu0 0
          %2325 = vmatpush1.bf16.msra.mxu0 0
          %2326 = vmatprep.subr.bf16.mxu0 0
          %2327 = vmatpush1.bf16.msra.mxu0 0
          %2328 = vmatprep.subr.bf16.mxu0 0
          %2329 = vmatpush1.bf16.msra.mxu0 0
          %2330 = vmatprep.subr.bf16.mxu0 0
          %2331 = vmatpush1.bf16.msra.mxu0 0
          %2332 = vmatprep.subr.bf16.mxu0 0
          %2333 = vmatpush1.bf16.msra.mxu0 0
          %2334 = vmatprep.subr.bf16.mxu0 0
          %2335 = vmatpush1.bf16.msra.mxu0 0
          %2336 = vmatprep.subr.bf16.mxu0 0
          %2337 = vmatpush1.bf16.msra.mxu0 0
          %2338 = vmatprep.subr.bf16.mxu0 0
          %2339 = vmatpush1.bf16.msra.mxu0 0
          %2340 = vmatprep.subr.bf16.mxu0 0
          %2341 = vmatpush1.bf16.msra.mxu0 0
          %2342 = vmatprep.subr.bf16.mxu0 0
          %2343 = vmatpush1.bf16.msra.mxu0 0
          %2344 = vmatprep.mubr.bf16.mxu0 0
          %2345 = vmatmul.mubr.bf16.gmra.mrb[0].mxu0 %v2310
          %v2346 = vpop.f32.mrb[0].mxu0
          %v2347 = vadd.f32 0.0, %v2346
          %v2348 = vpop.f32.mrb[0].mxu0
          %v2349 = vpop.f32.mrb[0].mxu0
          %v2350 = vpop.f32.mrb[0].mxu0
          %2351 = vdwg.mxu0
          %2352 = vst.msk [vmem:[#allocation4] sm:$0x3] %vm2238, %v2347
        $region108: #{tpu_custom_call.1} parent=95 // pred_fallthru
          _
        // Predicated region
        $region109: #{tpu_custom_call.1} parent=95 // pred_check
          %p2353 = pneg %p530
        $region110: #{tpu_custom_call.1} parent=95 // pred_check_branch
          %2355 = sbr.rel (%p2353) target = $region112
        $region111: #{tpu_custom_call.1} parent=95 // pred_region
          %s2357 = ssub.s32 32, 32
          %2358 = vsyncadd [#allocation5], %s2357
          %s2359 = smul.addr %s35, 32
          %s2360 = scalar_lea.hbm %s19, %s2359
          %s2362 = sshll.u32 [#allocation4], 4
          %s2363 = int_to_ptr.vmem [resolvable:$true] %s2362
          %2365 = dma.vmem_to_hbm [thread:$0]  %s2363, 32, %s2360, [#allocation5]
        $region112: #{tpu_custom_call.1} parent=95 // pred_fallthru
          _
        // Predicated region
        $region113: #{tpu_custom_call.1} parent=95 // pred_check
          %p2366 = pneg %p530
        $region114: #{tpu_custom_call.1} parent=95 // pred_check_branch
          %2368 = sbr.rel (%p2366) target = $region116
        $region115: #{tpu_custom_call.1} parent=95 // pred_region
          %2369 = dma.done [#allocation5], 32
        $region116: #{tpu_custom_call.1} parent=95 // pred_fallthru
          _
      $region96: #{tpu_custom_call.1} parent=5 // pred_fallthru
        _
      %p2370 = scmp.le.s32.totalorder 2, %s26
      // Predicated region
      $region117: #{tpu_custom_call.1} parent=5 // pred_check
        %p2371 = pneg %p2370
      $region118: #{tpu_custom_call.1} parent=5 // pred_check_branch
        %2373 = sbr.rel (%p2371) target = $region120
      $region119: #{tpu_custom_call.1} parent=5 // pred_region
        %s2374 = ssub.s32 %s26, 2
      $region120: #{tpu_custom_call.1} parent=5 // pred_fallthru
        _
    $region6: #{tpu_custom_call.1} parent=1 // loop_footer
      %s30 = sadd.s32 1, %s26
    $region7: #{tpu_custom_call.1} parent=1 // loop_footer_branch
      %25 = sbr.rel target = $region3
    $region8: #{tpu_custom_call.1} parent=1 // loop_exit
      _
    %2375 = vsyncpa [#allocation5], 1
    %s2376 = scalar_lea.sflag [#allocation5], 1
    %2377 = vsyncpa %s2376, 1

</llo_original>
